<compile_context>
chip_gen: v5e
topology: v5e:2x2
jax: 0.10.0
libtpu: 0.0.40
codegen_flags: <defaults>
</compile_context>

<pallas_src>
import math
import jax
import jax.numpy as jnp
from jax.experimental import pallas as pl
from jax.experimental.pallas import tpu as pltpu

# ---- small synthetic hyper-parameters (module defaults scaled down) ---------
B = 2              # batch
S = 16             # obs_dim / sequence length   (module default 400)
E = 128            # emb_dim                     (module default 128, lane-dense)
H = 4              # nhead
D = E // H         # per-head dim = 32
F = 256            # dim_feedforward             (PyTorch default 2048, scaled)
L = 2              # num_encoder_layers          (module default 4, scaled)
ACT = 1            # act_dim
EPS = 1e-5         # LayerNorm eps (PyTorch default)
N = B * S          # rows of the activation slab

MATMUL_DTYPE = jnp.bfloat16   # MXU operand dtype; use jnp.float32 for parity
NEG_INF = -1e30               # additive mask; exp underflows to exactly 0.0


def _layernorm(z, g, b):
    mean = jnp.mean(z, axis=-1, keepdims=True)
    var = jnp.mean(jnp.square(z - mean), axis=-1, keepdims=True)
    return (z - mean) * jax.lax.rsqrt(var + EPS) * g + b


# --------------------------- fused forward kernel ----------------------------
def _fused_forward_kernel(
    obs_ref, pe_bias_ref, emb_w_ref, attn_mask_ref, seg_ref,
    in_w_ref, in_b_ref, out_w_ref, out_b_ref,
    ln1_g_ref, ln1_b_ref, lin1_w_ref, lin1_b_ref,
    lin2_w_ref, lin2_b_ref, ln2_g_ref, ln2_b_ref,
    dec_w_ref, dec_b_ref, o_ref,
):
    f32 = jnp.float32
    mm = MATMUL_DTYPE

    # ---- embedding nn.Linear(1, E) + (bias + positional encoding), one FMA --
    x = obs_ref[...] * emb_w_ref[...] + pe_bias_ref[...]        # (N, E) f32

    scale = 1.0 / math.sqrt(D)
    attn_mask = attn_mask_ref[...]                              # (N, N) f32

    # ---- L encoder layers (post-norm, ReLU FFN), statically unrolled --------
    for l in range(L):
        qkv = (jnp.dot(x.astype(mm), in_w_ref[l], preferred_element_type=f32)
               + in_b_ref[l])                                   # (N, 3E) f32

        # per-head attention over ALL B*S rows at once; the additive mask
        # zeros cross-batch attention weights exactly (f32 exp underflow).
        heads = []
        for h in range(H):
            c0 = h * D
            qh = qkv[:, 0 * E + c0:0 * E + c0 + D].astype(mm)   # (N, D)
            kh = qkv[:, 1 * E + c0:1 * E + c0 + D].astype(mm)   # (N, D)
            vh = qkv[:, 2 * E + c0:2 * E + c0 + D].astype(mm)   # (N, D)
            s = jax.lax.dot_general(qh, kh, (((1,), (1,)), ((), ())),
                                    preferred_element_type=f32)  # (N, N)
            s = s * scale + attn_mask
            s = s - jnp.max(s, axis=-1, keepdims=True)
            p = jnp.exp(s)
            p = p * pl.reciprocal(jnp.sum(p, axis=-1, keepdims=True),
                                  approx=True)
            heads.append(jnp.dot(p.astype(mm), vh,
                                 preferred_element_type=f32))    # (N, D)
        attn = jnp.concatenate(heads, axis=-1)                   # (N, E) f32

        attn = (jnp.dot(attn.astype(mm), out_w_ref[l],
                        preferred_element_type=f32) + out_b_ref[l])
        x = _layernorm(x + attn, ln1_g_ref[l], ln1_b_ref[l])

        hmid = (jnp.dot(x.astype(mm), lin1_w_ref[l],
                        preferred_element_type=f32) + lin1_b_ref[l])
        hmid = jnp.maximum(hmid, 0.0)
        ff = (jnp.dot(hmid.astype(mm), lin2_w_ref[l],
                      preferred_element_type=f32) + lin2_b_ref[l])
        x = _layernorm(x + ff, ln2_g_ref[l], ln2_b_ref[l])

    # ---- decoder nn.Linear(E*S, ACT), specialized to ACT == 1 ---------------
    # out[b] = sum_{s,e} x[b,s,e] * dec_w[s,e] + dec_b   (dec_w pre-tiled to N,E)
    prod = x * dec_w_ref[...]                                   # (N, E) f32
    tmp = jnp.dot(seg_ref[...], prod, preferred_element_type=f32)   # (B, E)
    o_ref[...] = jnp.sum(tmp, axis=-1, keepdims=True) + dec_b_ref[...]


# ------------------------------- wrapper --------------------------------------
def transformer_nn_forward(obs, params):
    # obs: (B, S, ACT=1)  ->  output: (B, ACT)
    obs2d = obs.reshape(N, 1)          # only wrapper-side reshape (tiny, once)
    vmem = pl.BlockSpec(memory_space=pltpu.MemorySpace.VMEM)
    args = (
        obs2d, params["pe_bias"], params["emb_w"],
        params["attn_mask"], params["seg"],
        params["in_w"], params["in_b"], params["out_w"], params["out_b"],
        params["ln1_g"], params["ln1_b"], params["lin1_w"], params["lin1_b"],
        params["lin2_w"], params["lin2_b"], params["ln2_g"], params["ln2_b"],
        params["dec_w"], params["dec_b"],
    )

    in_bytes = sum(int(a.size) * a.dtype.itemsize for a in args)
    out_bytes = B * ACT * 4
    per_layer_flops = (2 * N * E * 3 * E                     # QKV projection
                       + H * (2 * N * N * D + 2 * N * N * D)  # scores + P@V
                       + 2 * N * E * E                        # out projection
                       + 2 * N * E * F + 2 * N * F * E)       # FFN
    flops = L * per_layer_flops + 2 * N * E + 2 * B * N * E   # emb + decoder
    transcendentals = L * (H * N * N + 4 * N)                 # exp + rsqrt/rcp
    cost = pl.CostEstimate(flops=flops, transcendentals=transcendentals,
                           bytes_accessed=in_bytes + out_bytes)

    return pl.pallas_call(
        _fused_forward_kernel,
        out_shape=jax.ShapeDtypeStruct((B, ACT), jnp.float32),
        in_specs=[vmem] * len(args),
        out_specs=vmem,
        compiler_params=pltpu.CompilerParams(
            vmem_limit_bytes=int(2 * in_bytes + (12 << 20))),
        cost_estimate=cost,
    )(*args)


# ---------------------------- parameter init ----------------------------------
def make_positional_encoding(seq_len, dim):
    pos = jnp.arange(seq_len, dtype=jnp.float32)[:, None]
    div = jnp.exp(jnp.arange(0, dim, 2, dtype=jnp.float32)
                  * (-math.log(10000.0) / dim))
    sin = jnp.sin(pos * div)
    cos = jnp.cos(pos * div)
    # interleave: even columns = sin, odd columns = cos (matches torch)
    return jnp.stack([sin, cos], axis=-1).reshape(seq_len, dim)


def init_params(seed=0):
    key = jax.random.PRNGKey(seed)

    def nxt():
        nonlocal key
        key, sub = jax.random.split(key)
        return sub

    def rnd(shape, fan_in):
        bound = 1.0 / math.sqrt(fan_in)
        return jax.random.uniform(nxt(), shape, jnp.float32, -bound, bound)

    mm = MATMUL_DTYPE

    # Per-layer weights generated in torch layout, pre-transposed, cast to the
    # MXU dtype and stacked along a leading layer axis ONCE here.
    in_w, in_b, out_w, out_b = [], [], [], []
    ln1_g, ln1_b, lin1_w, lin1_b = [], [], [], []
    lin2_w, lin2_b, ln2_g, ln2_b = [], [], [], []
    for _ in range(L):
        in_w.append(rnd((3 * E, E), E).T.astype(mm))            # (E, 3E)
        in_b.append(jnp.zeros((1, 3 * E), jnp.float32))
        out_w.append(rnd((E, E), E).T.astype(mm))               # (E, E)
        out_b.append(jnp.zeros((1, E), jnp.float32))
        ln1_g.append(jnp.ones((1, E), jnp.float32))
        ln1_b.append(jnp.zeros((1, E), jnp.float32))
        lin1_w.append(rnd((F, E), E).T.astype(mm))               # (E, F)
        lin1_b.append(rnd((1, F), E))
        lin2_w.append(rnd((E, F), F).T.astype(mm))               # (F, E)
        lin2_b.append(rnd((1, E), F))
        ln2_g.append(jnp.ones((1, E), jnp.float32))
        ln2_b.append(jnp.zeros((1, E), jnp.float32))

    emb_w = rnd((E, 1), 1).T                                    # (1, E)
    emb_b = rnd((1, E), 1)
    pe = make_positional_encoding(S, E)                         # (S, E)
    pe_bias = jnp.tile(pe, (B, 1)) + emb_b                      # (N, E)

    dec_w = rnd((ACT, S * E), S * E)                            # torch layout
    # ACT == 1: dec_w[s, e] multiplies x[b, s, e]; pre-tile to the (N, E) slab.
    dec_w_tiled = jnp.tile(dec_w.reshape(ACT, S, E)[0], (B, 1))  # (N, E)

    # Static structural constants (same-batch attention mask, batch-segment
    # one-hot matrix for the decoder reduction).
    row_b = jnp.arange(N)[:, None] // S
    col_b = jnp.arange(N)[None, :] // S
    attn_mask = jnp.where(row_b == col_b, 0.0, NEG_INF).astype(jnp.float32)
    seg = (jnp.arange(B)[:, None] == (jnp.arange(N)[None, :] // S)
           ).astype(jnp.float32)                                # (B, N)

    return {
        "emb_w": emb_w,
        "pe_bias": pe_bias,
        "attn_mask": attn_mask,
        "seg": seg,
        "in_w": jnp.stack(in_w),   "in_b": jnp.stack(in_b),
        "out_w": jnp.stack(out_w), "out_b": jnp.stack(out_b),
        "ln1_g": jnp.stack(ln1_g), "ln1_b": jnp.stack(ln1_b),
        "lin1_w": jnp.stack(lin1_w), "lin1_b": jnp.stack(lin1_b),
        "lin2_w": jnp.stack(lin2_w), "lin2_b": jnp.stack(lin2_b),
        "ln2_g": jnp.stack(ln2_g), "ln2_b": jnp.stack(ln2_b),
        "dec_w": dec_w_tiled,
        "dec_b": rnd((1, ACT), S * E),
    }


if __name__ == "__main__":
    params = init_params(seed=0)
    obs = jax.random.normal(jax.random.PRNGKey(0), (B, S, ACT), jnp.float32)

    fwd = jax.jit(lambda o: transformer_nn_forward(o, params))
    out = jax.block_until_ready(fwd(obs))
    assert out.shape == (B, ACT) and out.dtype == jnp.float32
    assert bool(jnp.all(jnp.isfinite(out)))
    print("KERNEL_OK")
</pallas_src>

<mosaic_0001>
module attributes {stable_mosaic.version = 11 : i64} {
  func.func @_fused_forward_kernel(%arg0: memref<32x1xf32, #tpu.memory_space<vmem>>, %arg1: memref<32x128xf32, #tpu.memory_space<vmem>>, %arg2: memref<1x128xf32, #tpu.memory_space<vmem>>, %arg3: memref<32x32xf32, #tpu.memory_space<vmem>>, %arg4: memref<2x32xf32, #tpu.memory_space<vmem>>, %arg5: memref<2x128x384xbf16, #tpu.memory_space<vmem>>, %arg6: memref<2x1x384xf32, #tpu.memory_space<vmem>>, %arg7: memref<2x128x128xbf16, #tpu.memory_space<vmem>>, %arg8: memref<2x1x128xf32, #tpu.memory_space<vmem>>, %arg9: memref<2x1x128xf32, #tpu.memory_space<vmem>>, %arg10: memref<2x1x128xf32, #tpu.memory_space<vmem>>, %arg11: memref<2x128x256xbf16, #tpu.memory_space<vmem>>, %arg12: memref<2x1x256xf32, #tpu.memory_space<vmem>>, %arg13: memref<2x256x128xbf16, #tpu.memory_space<vmem>>, %arg14: memref<2x1x128xf32, #tpu.memory_space<vmem>>, %arg15: memref<2x1x128xf32, #tpu.memory_space<vmem>>, %arg16: memref<2x1x128xf32, #tpu.memory_space<vmem>>, %arg17: memref<32x128xf32, #tpu.memory_space<vmem>>, %arg18: memref<1x1xf32, #tpu.memory_space<vmem>>, %arg19: memref<2x1xf32, #tpu.memory_space<vmem>>) attributes {dimension_semantics = [], scalar_prefetch = 0 : i64, scratch_operands = 0 : i64, tpu.core_type = #tpu.core_type<tc>} {
    %c0 = arith.constant 0 : index
    %c0_0 = arith.constant 0 : index
    %0 = vector.load %arg0[%c0, %c0_0] : memref<32x1xf32, #tpu.memory_space<vmem>>, vector<32x1xf32>
    %c0_1 = arith.constant 0 : index
    %c0_2 = arith.constant 0 : index
    %1 = vector.load %arg2[%c0_1, %c0_2] : memref<1x128xf32, #tpu.memory_space<vmem>>, vector<1x128xf32>
    %2 = vector.broadcast %0 : vector<32x1xf32> to vector<32x128xf32>
    %3 = vector.broadcast %1 : vector<1x128xf32> to vector<32x128xf32>
    %4 = arith.mulf %2, %3 : vector<32x128xf32>
    %c0_3 = arith.constant 0 : index
    %c0_4 = arith.constant 0 : index
    %5 = vector.load %arg1[%c0_3, %c0_4] : memref<32x128xf32, #tpu.memory_space<vmem>>, vector<32x128xf32>
    %6 = arith.addf %4, %5 : vector<32x128xf32>
    %c0_5 = arith.constant 0 : index
    %c0_6 = arith.constant 0 : index
    %7 = vector.load %arg3[%c0_5, %c0_6] : memref<32x32xf32, #tpu.memory_space<vmem>>, vector<32x32xf32>
    %8 = arith.truncf %6 : vector<32x128xf32> to vector<32x128xbf16>
    %c0_7 = arith.constant 0 : index
    %c0_8 = arith.constant 0 : index
    %c0_9 = arith.constant 0 : index
    %9 = vector.load %arg5[%c0_7, %c0_8, %c0_9] : memref<2x128x384xbf16, #tpu.memory_space<vmem>>, vector<1x128x384xbf16>
    %10 = vector.shape_cast %9 : vector<1x128x384xbf16> to vector<128x384xbf16>
    %cst = arith.constant dense<0.000000e+00> : vector<32x384xf32>
    %11 = tpu.matmul %8, %10, %cst {dimension_numbers = #tpu.dot_dimension_numbers<[1], [0], [0], [1], [0, 0, 1, 1], [], []>} : vector<32x128xbf16>, vector<128x384xbf16>, vector<32x384xf32> -> vector<32x384xf32>
    %c0_10 = arith.constant 0 : index
    %c0_11 = arith.constant 0 : index
    %c0_12 = arith.constant 0 : index
    %12 = vector.load %arg6[%c0_10, %c0_11, %c0_12] : memref<2x1x384xf32, #tpu.memory_space<vmem>>, vector<1x1x384xf32>
    %13 = vector.shape_cast %12 : vector<1x1x384xf32> to vector<1x384xf32>
    %14 = vector.broadcast %13 : vector<1x384xf32> to vector<32x384xf32>
    %15 = arith.addf %11, %14 : vector<32x384xf32>
    %16 = vector.extract_strided_slice %15 {offsets = [0, 0], sizes = [32, 32], strides = [1, 1]} : vector<32x384xf32> to vector<32x32xf32>
    %17 = arith.truncf %16 : vector<32x32xf32> to vector<32x32xbf16>
    %18 = vector.extract_strided_slice %15 {offsets = [0, 128], sizes = [32, 32], strides = [1, 1]} : vector<32x384xf32> to vector<32x32xf32>
    %19 = arith.truncf %18 : vector<32x32xf32> to vector<32x32xbf16>
    %20 = vector.extract_strided_slice %15 {offsets = [0, 256], sizes = [32, 32], strides = [1, 1]} : vector<32x384xf32> to vector<32x32xf32>
    %21 = arith.truncf %20 : vector<32x32xf32> to vector<32x32xbf16>
    %cst_13 = arith.constant dense<0.000000e+00> : vector<32x32xf32>
    %22 = tpu.matmul %17, %19, %cst_13 {dimension_numbers = #tpu.dot_dimension_numbers<[1], [1], [0], [0], [0, 0, 1, 0], [], []>} : vector<32x32xbf16>, vector<32x32xbf16>, vector<32x32xf32> -> vector<32x32xf32>
    %cst_14 = arith.constant 0.176776692 : f32
    %23 = vector.broadcast %cst_14 : f32 to vector<32x32xf32>
    %24 = arith.mulf %22, %23 : vector<32x32xf32>
    %25 = arith.addf %24, %7 : vector<32x32xf32>
    %cst_15 = arith.constant dense<0xFF800000> : vector<32xf32>
    %26 = vector.multi_reduction <maximumf>, %25, %cst_15 [1] : vector<32x32xf32> to vector<32xf32>
    %27 = vector.shape_cast %26 : vector<32xf32> to vector<32x1xf32>
    %28 = vector.broadcast %27 : vector<32x1xf32> to vector<32x32xf32>
    %29 = arith.subf %25, %28 : vector<32x32xf32>
    %30 = math.exp %29 : vector<32x32xf32>
    %cst_16 = arith.constant dense<0.000000e+00> : vector<32xf32>
    %31 = vector.multi_reduction <add>, %30, %cst_16 [1] : vector<32x32xf32> to vector<32xf32>
    %32 = vector.shape_cast %31 : vector<32xf32> to vector<32x1xf32>
    %33 = tpu.reciprocal %32 {approx = true} : vector<32x1xf32> -> vector<32x1xf32>
    %34 = vector.broadcast %33 : vector<32x1xf32> to vector<32x32xf32>
    %35 = arith.mulf %30, %34 : vector<32x32xf32>
    %36 = arith.truncf %35 : vector<32x32xf32> to vector<32x32xbf16>
    %cst_17 = arith.constant dense<0.000000e+00> : vector<32x32xf32>
    %37 = tpu.matmul %36, %21, %cst_17 {dimension_numbers = #tpu.dot_dimension_numbers<[1], [0], [0], [1], [0, 0, 1, 1], [], []>} : vector<32x32xbf16>, vector<32x32xbf16>, vector<32x32xf32> -> vector<32x32xf32>
    %38 = vector.extract_strided_slice %15 {offsets = [0, 32], sizes = [32, 32], strides = [1, 1]} : vector<32x384xf32> to vector<32x32xf32>
    %39 = arith.truncf %38 : vector<32x32xf32> to vector<32x32xbf16>
    %40 = vector.extract_strided_slice %15 {offsets = [0, 160], sizes = [32, 32], strides = [1, 1]} : vector<32x384xf32> to vector<32x32xf32>
    %41 = arith.truncf %40 : vector<32x32xf32> to vector<32x32xbf16>
    %42 = vector.extract_strided_slice %15 {offsets = [0, 288], sizes = [32, 32], strides = [1, 1]} : vector<32x384xf32> to vector<32x32xf32>
    %43 = arith.truncf %42 : vector<32x32xf32> to vector<32x32xbf16>
    %cst_18 = arith.constant dense<0.000000e+00> : vector<32x32xf32>
    %44 = tpu.matmul %39, %41, %cst_18 {dimension_numbers = #tpu.dot_dimension_numbers<[1], [1], [0], [0], [0, 0, 1, 0], [], []>} : vector<32x32xbf16>, vector<32x32xbf16>, vector<32x32xf32> -> vector<32x32xf32>
    %cst_19 = arith.constant 0.176776692 : f32
    %45 = vector.broadcast %cst_19 : f32 to vector<32x32xf32>
    %46 = arith.mulf %44, %45 : vector<32x32xf32>
    %47 = arith.addf %46, %7 : vector<32x32xf32>
    %cst_20 = arith.constant dense<0xFF800000> : vector<32xf32>
    %48 = vector.multi_reduction <maximumf>, %47, %cst_20 [1] : vector<32x32xf32> to vector<32xf32>
    %49 = vector.shape_cast %48 : vector<32xf32> to vector<32x1xf32>
    %50 = vector.broadcast %49 : vector<32x1xf32> to vector<32x32xf32>
    %51 = arith.subf %47, %50 : vector<32x32xf32>
    %52 = math.exp %51 : vector<32x32xf32>
    %cst_21 = arith.constant dense<0.000000e+00> : vector<32xf32>
    %53 = vector.multi_reduction <add>, %52, %cst_21 [1] : vector<32x32xf32> to vector<32xf32>
    %54 = vector.shape_cast %53 : vector<32xf32> to vector<32x1xf32>
    %55 = tpu.reciprocal %54 {approx = true} : vector<32x1xf32> -> vector<32x1xf32>
    %56 = vector.broadcast %55 : vector<32x1xf32> to vector<32x32xf32>
    %57 = arith.mulf %52, %56 : vector<32x32xf32>
    %58 = arith.truncf %57 : vector<32x32xf32> to vector<32x32xbf16>
    %cst_22 = arith.constant dense<0.000000e+00> : vector<32x32xf32>
    %59 = tpu.matmul %58, %43, %cst_22 {dimension_numbers = #tpu.dot_dimension_numbers<[1], [0], [0], [1], [0, 0, 1, 1], [], []>} : vector<32x32xbf16>, vector<32x32xbf16>, vector<32x32xf32> -> vector<32x32xf32>
    %60 = vector.extract_strided_slice %15 {offsets = [0, 64], sizes = [32, 32], strides = [1, 1]} : vector<32x384xf32> to vector<32x32xf32>
    %61 = arith.truncf %60 : vector<32x32xf32> to vector<32x32xbf16>
    %62 = vector.extract_strided_slice %15 {offsets = [0, 192], sizes = [32, 32], strides = [1, 1]} : vector<32x384xf32> to vector<32x32xf32>
    %63 = arith.truncf %62 : vector<32x32xf32> to vector<32x32xbf16>
    %64 = vector.extract_strided_slice %15 {offsets = [0, 320], sizes = [32, 32], strides = [1, 1]} : vector<32x384xf32> to vector<32x32xf32>
    %65 = arith.truncf %64 : vector<32x32xf32> to vector<32x32xbf16>
    %cst_23 = arith.constant dense<0.000000e+00> : vector<32x32xf32>
    %66 = tpu.matmul %61, %63, %cst_23 {dimension_numbers = #tpu.dot_dimension_numbers<[1], [1], [0], [0], [0, 0, 1, 0], [], []>} : vector<32x32xbf16>, vector<32x32xbf16>, vector<32x32xf32> -> vector<32x32xf32>
    %cst_24 = arith.constant 0.176776692 : f32
    %67 = vector.broadcast %cst_24 : f32 to vector<32x32xf32>
    %68 = arith.mulf %66, %67 : vector<32x32xf32>
    %69 = arith.addf %68, %7 : vector<32x32xf32>
    %cst_25 = arith.constant dense<0xFF800000> : vector<32xf32>
    %70 = vector.multi_reduction <maximumf>, %69, %cst_25 [1] : vector<32x32xf32> to vector<32xf32>
    %71 = vector.shape_cast %70 : vector<32xf32> to vector<32x1xf32>
    %72 = vector.broadcast %71 : vector<32x1xf32> to vector<32x32xf32>
    %73 = arith.subf %69, %72 : vector<32x32xf32>
    %74 = math.exp %73 : vector<32x32xf32>
    %cst_26 = arith.constant dense<0.000000e+00> : vector<32xf32>
    %75 = vector.multi_reduction <add>, %74, %cst_26 [1] : vector<32x32xf32> to vector<32xf32>
    %76 = vector.shape_cast %75 : vector<32xf32> to vector<32x1xf32>
    %77 = tpu.reciprocal %76 {approx = true} : vector<32x1xf32> -> vector<32x1xf32>
    %78 = vector.broadcast %77 : vector<32x1xf32> to vector<32x32xf32>
    %79 = arith.mulf %74, %78 : vector<32x32xf32>
    %80 = arith.truncf %79 : vector<32x32xf32> to vector<32x32xbf16>
    %cst_27 = arith.constant dense<0.000000e+00> : vector<32x32xf32>
    %81 = tpu.matmul %80, %65, %cst_27 {dimension_numbers = #tpu.dot_dimension_numbers<[1], [0], [0], [1], [0, 0, 1, 1], [], []>} : vector<32x32xbf16>, vector<32x32xbf16>, vector<32x32xf32> -> vector<32x32xf32>
    %82 = vector.extract_strided_slice %15 {offsets = [0, 96], sizes = [32, 32], strides = [1, 1]} : vector<32x384xf32> to vector<32x32xf32>
    %83 = arith.truncf %82 : vector<32x32xf32> to vector<32x32xbf16>
    %84 = vector.extract_strided_slice %15 {offsets = [0, 224], sizes = [32, 32], strides = [1, 1]} : vector<32x384xf32> to vector<32x32xf32>
    %85 = arith.truncf %84 : vector<32x32xf32> to vector<32x32xbf16>
    %86 = vector.extract_strided_slice %15 {offsets = [0, 352], sizes = [32, 32], strides = [1, 1]} : vector<32x384xf32> to vector<32x32xf32>
    %87 = arith.truncf %86 : vector<32x32xf32> to vector<32x32xbf16>
    %cst_28 = arith.constant dense<0.000000e+00> : vector<32x32xf32>
    %88 = tpu.matmul %83, %85, %cst_28 {dimension_numbers = #tpu.dot_dimension_numbers<[1], [1], [0], [0], [0, 0, 1, 0], [], []>} : vector<32x32xbf16>, vector<32x32xbf16>, vector<32x32xf32> -> vector<32x32xf32>
    %cst_29 = arith.constant 0.176776692 : f32
    %89 = vector.broadcast %cst_29 : f32 to vector<32x32xf32>
    %90 = arith.mulf %88, %89 : vector<32x32xf32>
    %91 = arith.addf %90, %7 : vector<32x32xf32>
    %cst_30 = arith.constant dense<0xFF800000> : vector<32xf32>
    %92 = vector.multi_reduction <maximumf>, %91, %cst_30 [1] : vector<32x32xf32> to vector<32xf32>
    %93 = vector.shape_cast %92 : vector<32xf32> to vector<32x1xf32>
    %94 = vector.broadcast %93 : vector<32x1xf32> to vector<32x32xf32>
    %95 = arith.subf %91, %94 : vector<32x32xf32>
    %96 = math.exp %95 : vector<32x32xf32>
    %cst_31 = arith.constant dense<0.000000e+00> : vector<32xf32>
    %97 = vector.multi_reduction <add>, %96, %cst_31 [1] : vector<32x32xf32> to vector<32xf32>
    %98 = vector.shape_cast %97 : vector<32xf32> to vector<32x1xf32>
    %99 = tpu.reciprocal %98 {approx = true} : vector<32x1xf32> -> vector<32x1xf32>
    %100 = vector.broadcast %99 : vector<32x1xf32> to vector<32x32xf32>
    %101 = arith.mulf %96, %100 : vector<32x32xf32>
    %102 = arith.truncf %101 : vector<32x32xf32> to vector<32x32xbf16>
    %cst_32 = arith.constant dense<0.000000e+00> : vector<32x32xf32>
    %103 = tpu.matmul %102, %87, %cst_32 {dimension_numbers = #tpu.dot_dimension_numbers<[1], [0], [0], [1], [0, 0, 1, 1], [], []>} : vector<32x32xbf16>, vector<32x32xbf16>, vector<32x32xf32> -> vector<32x32xf32>
    %104 = tpu.concatenate %37, %59, %81, %103 in 1 : vector<32x32xf32>, vector<32x32xf32>, vector<32x32xf32>, vector<32x32xf32> -> vector<32x128xf32>
    %105 = arith.truncf %104 : vector<32x128xf32> to vector<32x128xbf16>
    %c0_33 = arith.constant 0 : index
    %c0_34 = arith.constant 0 : index
    %c0_35 = arith.constant 0 : index
    %106 = vector.load %arg7[%c0_33, %c0_34, %c0_35] : memref<2x128x128xbf16, #tpu.memory_space<vmem>>, vector<1x128x128xbf16>
    %107 = vector.shape_cast %106 : vector<1x128x128xbf16> to vector<128x128xbf16>
    %cst_36 = arith.constant dense<0.000000e+00> : vector<32x128xf32>
    %108 = tpu.matmul %105, %107, %cst_36 {dimension_numbers = #tpu.dot_dimension_numbers<[1], [0], [0], [1], [0, 0, 1, 1], [], []>} : vector<32x128xbf16>, vector<128x128xbf16>, vector<32x128xf32> -> vector<32x128xf32>
    %c0_37 = arith.constant 0 : index
    %c0_38 = arith.constant 0 : index
    %c0_39 = arith.constant 0 : index
    %109 = vector.load %arg8[%c0_37, %c0_38, %c0_39] : memref<2x1x128xf32, #tpu.memory_space<vmem>>, vector<1x1x128xf32>
    %110 = vector.shape_cast %109 : vector<1x1x128xf32> to vector<1x128xf32>
    %111 = vector.broadcast %110 : vector<1x128xf32> to vector<32x128xf32>
    %112 = arith.addf %108, %111 : vector<32x128xf32>
    %113 = arith.addf %6, %112 : vector<32x128xf32>
    %c0_40 = arith.constant 0 : index
    %c0_41 = arith.constant 0 : index
    %c0_42 = arith.constant 0 : index
    %114 = vector.load %arg9[%c0_40, %c0_41, %c0_42] : memref<2x1x128xf32, #tpu.memory_space<vmem>>, vector<1x1x128xf32>
    %115 = vector.shape_cast %114 : vector<1x1x128xf32> to vector<1x128xf32>
    %c0_43 = arith.constant 0 : index
    %c0_44 = arith.constant 0 : index
    %c0_45 = arith.constant 0 : index
    %116 = vector.load %arg10[%c0_43, %c0_44, %c0_45] : memref<2x1x128xf32, #tpu.memory_space<vmem>>, vector<1x1x128xf32>
    %117 = vector.shape_cast %116 : vector<1x1x128xf32> to vector<1x128xf32>
    %cst_46 = arith.constant dense<0.000000e+00> : vector<32xf32>
    %118 = vector.multi_reduction <add>, %113, %cst_46 [1] : vector<32x128xf32> to vector<32xf32>
    %119 = vector.shape_cast %118 : vector<32xf32> to vector<32x1xf32>
    %cst_47 = arith.constant 1.280000e+02 : f32
    %120 = vector.broadcast %cst_47 : f32 to vector<32x1xf32>
    %121 = arith.divf %119, %120 : vector<32x1xf32>
    %122 = vector.broadcast %121 : vector<32x1xf32> to vector<32x128xf32>
    %123 = arith.subf %113, %122 : vector<32x128xf32>
    %124 = arith.mulf %123, %123 : vector<32x128xf32>
    %cst_48 = arith.constant dense<0.000000e+00> : vector<32xf32>
    %125 = vector.multi_reduction <add>, %124, %cst_48 [1] : vector<32x128xf32> to vector<32xf32>
    %126 = vector.shape_cast %125 : vector<32xf32> to vector<32x1xf32>
    %cst_49 = arith.constant 1.280000e+02 : f32
    %127 = vector.broadcast %cst_49 : f32 to vector<32x1xf32>
    %128 = arith.divf %126, %127 : vector<32x1xf32>
    %129 = vector.broadcast %121 : vector<32x1xf32> to vector<32x128xf32>
    %130 = arith.subf %113, %129 : vector<32x128xf32>
    %cst_50 = arith.constant 9.99999974E-6 : f32
    %131 = vector.broadcast %cst_50 : f32 to vector<32x1xf32>
    %132 = arith.addf %128, %131 : vector<32x1xf32>
    %133 = math.rsqrt %132 : vector<32x1xf32>
    %134 = vector.broadcast %133 : vector<32x1xf32> to vector<32x128xf32>
    %135 = arith.mulf %130, %134 : vector<32x128xf32>
    %136 = vector.broadcast %115 : vector<1x128xf32> to vector<32x128xf32>
    %137 = arith.mulf %135, %136 : vector<32x128xf32>
    %138 = vector.broadcast %117 : vector<1x128xf32> to vector<32x128xf32>
    %139 = arith.addf %137, %138 : vector<32x128xf32>
    %140 = arith.truncf %139 : vector<32x128xf32> to vector<32x128xbf16>
    %c0_51 = arith.constant 0 : index
    %c0_52 = arith.constant 0 : index
    %c0_53 = arith.constant 0 : index
    %141 = vector.load %arg11[%c0_51, %c0_52, %c0_53] : memref<2x128x256xbf16, #tpu.memory_space<vmem>>, vector<1x128x256xbf16>
    %142 = vector.shape_cast %141 : vector<1x128x256xbf16> to vector<128x256xbf16>
    %cst_54 = arith.constant dense<0.000000e+00> : vector<32x256xf32>
    %143 = tpu.matmul %140, %142, %cst_54 {dimension_numbers = #tpu.dot_dimension_numbers<[1], [0], [0], [1], [0, 0, 1, 1], [], []>} : vector<32x128xbf16>, vector<128x256xbf16>, vector<32x256xf32> -> vector<32x256xf32>
    %c0_55 = arith.constant 0 : index
    %c0_56 = arith.constant 0 : index
    %c0_57 = arith.constant 0 : index
    %144 = vector.load %arg12[%c0_55, %c0_56, %c0_57] : memref<2x1x256xf32, #tpu.memory_space<vmem>>, vector<1x1x256xf32>
    %145 = vector.shape_cast %144 : vector<1x1x256xf32> to vector<1x256xf32>
    %146 = vector.broadcast %145 : vector<1x256xf32> to vector<32x256xf32>
    %147 = arith.addf %143, %146 : vector<32x256xf32>
    %cst_58 = arith.constant 0.000000e+00 : f32
    %148 = vector.broadcast %cst_58 : f32 to vector<32x256xf32>
    %149 = arith.maximumf %147, %148 : vector<32x256xf32>
    %150 = arith.truncf %149 : vector<32x256xf32> to vector<32x256xbf16>
    %c0_59 = arith.constant 0 : index
    %c0_60 = arith.constant 0 : index
    %c0_61 = arith.constant 0 : index
    %151 = vector.load %arg13[%c0_59, %c0_60, %c0_61] : memref<2x256x128xbf16, #tpu.memory_space<vmem>>, vector<1x256x128xbf16>
    %152 = vector.shape_cast %151 : vector<1x256x128xbf16> to vector<256x128xbf16>
    %cst_62 = arith.constant dense<0.000000e+00> : vector<32x128xf32>
    %153 = tpu.matmul %150, %152, %cst_62 {dimension_numbers = #tpu.dot_dimension_numbers<[1], [0], [0], [1], [0, 0, 1, 1], [], []>} : vector<32x256xbf16>, vector<256x128xbf16>, vector<32x128xf32> -> vector<32x128xf32>
    %c0_63 = arith.constant 0 : index
    %c0_64 = arith.constant 0 : index
    %c0_65 = arith.constant 0 : index
    %154 = vector.load %arg14[%c0_63, %c0_64, %c0_65] : memref<2x1x128xf32, #tpu.memory_space<vmem>>, vector<1x1x128xf32>
    %155 = vector.shape_cast %154 : vector<1x1x128xf32> to vector<1x128xf32>
    %156 = vector.broadcast %155 : vector<1x128xf32> to vector<32x128xf32>
    %157 = arith.addf %153, %156 : vector<32x128xf32>
    %158 = arith.addf %139, %157 : vector<32x128xf32>
    %c0_66 = arith.constant 0 : index
    %c0_67 = arith.constant 0 : index
    %c0_68 = arith.constant 0 : index
    %159 = vector.load %arg15[%c0_66, %c0_67, %c0_68] : memref<2x1x128xf32, #tpu.memory_space<vmem>>, vector<1x1x128xf32>
    %160 = vector.shape_cast %159 : vector<1x1x128xf32> to vector<1x128xf32>
    %c0_69 = arith.constant 0 : index
    %c0_70 = arith.constant 0 : index
    %c0_71 = arith.constant 0 : index
    %161 = vector.load %arg16[%c0_69, %c0_70, %c0_71] : memref<2x1x128xf32, #tpu.memory_space<vmem>>, vector<1x1x128xf32>
    %162 = vector.shape_cast %161 : vector<1x1x128xf32> to vector<1x128xf32>
    %cst_72 = arith.constant dense<0.000000e+00> : vector<32xf32>
    %163 = vector.multi_reduction <add>, %158, %cst_72 [1] : vector<32x128xf32> to vector<32xf32>
    %164 = vector.shape_cast %163 : vector<32xf32> to vector<32x1xf32>
    %cst_73 = arith.constant 1.280000e+02 : f32
    %165 = vector.broadcast %cst_73 : f32 to vector<32x1xf32>
    %166 = arith.divf %164, %165 : vector<32x1xf32>
    %167 = vector.broadcast %166 : vector<32x1xf32> to vector<32x128xf32>
    %168 = arith.subf %158, %167 : vector<32x128xf32>
    %169 = arith.mulf %168, %168 : vector<32x128xf32>
    %cst_74 = arith.constant dense<0.000000e+00> : vector<32xf32>
    %170 = vector.multi_reduction <add>, %169, %cst_74 [1] : vector<32x128xf32> to vector<32xf32>
    %171 = vector.shape_cast %170 : vector<32xf32> to vector<32x1xf32>
    %cst_75 = arith.constant 1.280000e+02 : f32
    %172 = vector.broadcast %cst_75 : f32 to vector<32x1xf32>
    %173 = arith.divf %171, %172 : vector<32x1xf32>
    %174 = vector.broadcast %166 : vector<32x1xf32> to vector<32x128xf32>
    %175 = arith.subf %158, %174 : vector<32x128xf32>
    %cst_76 = arith.constant 9.99999974E-6 : f32
    %176 = vector.broadcast %cst_76 : f32 to vector<32x1xf32>
    %177 = arith.addf %173, %176 : vector<32x1xf32>
    %178 = math.rsqrt %177 : vector<32x1xf32>
    %179 = vector.broadcast %178 : vector<32x1xf32> to vector<32x128xf32>
    %180 = arith.mulf %175, %179 : vector<32x128xf32>
    %181 = vector.broadcast %160 : vector<1x128xf32> to vector<32x128xf32>
    %182 = arith.mulf %180, %181 : vector<32x128xf32>
    %183 = vector.broadcast %162 : vector<1x128xf32> to vector<32x128xf32>
    %184 = arith.addf %182, %183 : vector<32x128xf32>
    %185 = arith.truncf %184 : vector<32x128xf32> to vector<32x128xbf16>
    %c1 = arith.constant 1 : index
    %c0_77 = arith.constant 0 : index
    %c0_78 = arith.constant 0 : index
    %186 = vector.load %arg5[%c1, %c0_77, %c0_78] : memref<2x128x384xbf16, #tpu.memory_space<vmem>>, vector<1x128x384xbf16>
    %187 = vector.shape_cast %186 : vector<1x128x384xbf16> to vector<128x384xbf16>
    %cst_79 = arith.constant dense<0.000000e+00> : vector<32x384xf32>
    %188 = tpu.matmul %185, %187, %cst_79 {dimension_numbers = #tpu.dot_dimension_numbers<[1], [0], [0], [1], [0, 0, 1, 1], [], []>} : vector<32x128xbf16>, vector<128x384xbf16>, vector<32x384xf32> -> vector<32x384xf32>
    %c1_80 = arith.constant 1 : index
    %c0_81 = arith.constant 0 : index
    %c0_82 = arith.constant 0 : index
    %189 = vector.load %arg6[%c1_80, %c0_81, %c0_82] : memref<2x1x384xf32, #tpu.memory_space<vmem>>, vector<1x1x384xf32>
    %190 = vector.shape_cast %189 : vector<1x1x384xf32> to vector<1x384xf32>
    %191 = vector.broadcast %190 : vector<1x384xf32> to vector<32x384xf32>
    %192 = arith.addf %188, %191 : vector<32x384xf32>
    %193 = vector.extract_strided_slice %192 {offsets = [0, 0], sizes = [32, 32], strides = [1, 1]} : vector<32x384xf32> to vector<32x32xf32>
    %194 = arith.truncf %193 : vector<32x32xf32> to vector<32x32xbf16>
    %195 = vector.extract_strided_slice %192 {offsets = [0, 128], sizes = [32, 32], strides = [1, 1]} : vector<32x384xf32> to vector<32x32xf32>
    %196 = arith.truncf %195 : vector<32x32xf32> to vector<32x32xbf16>
    %197 = vector.extract_strided_slice %192 {offsets = [0, 256], sizes = [32, 32], strides = [1, 1]} : vector<32x384xf32> to vector<32x32xf32>
    %198 = arith.truncf %197 : vector<32x32xf32> to vector<32x32xbf16>
    %cst_83 = arith.constant dense<0.000000e+00> : vector<32x32xf32>
    %199 = tpu.matmul %194, %196, %cst_83 {dimension_numbers = #tpu.dot_dimension_numbers<[1], [1], [0], [0], [0, 0, 1, 0], [], []>} : vector<32x32xbf16>, vector<32x32xbf16>, vector<32x32xf32> -> vector<32x32xf32>
    %cst_84 = arith.constant 0.176776692 : f32
    %200 = vector.broadcast %cst_84 : f32 to vector<32x32xf32>
    %201 = arith.mulf %199, %200 : vector<32x32xf32>
    %202 = arith.addf %201, %7 : vector<32x32xf32>
    %cst_85 = arith.constant dense<0xFF800000> : vector<32xf32>
    %203 = vector.multi_reduction <maximumf>, %202, %cst_85 [1] : vector<32x32xf32> to vector<32xf32>
    %204 = vector.shape_cast %203 : vector<32xf32> to vector<32x1xf32>
    %205 = vector.broadcast %204 : vector<32x1xf32> to vector<32x32xf32>
    %206 = arith.subf %202, %205 : vector<32x32xf32>
    %207 = math.exp %206 : vector<32x32xf32>
    %cst_86 = arith.constant dense<0.000000e+00> : vector<32xf32>
    %208 = vector.multi_reduction <add>, %207, %cst_86 [1] : vector<32x32xf32> to vector<32xf32>
    %209 = vector.shape_cast %208 : vector<32xf32> to vector<32x1xf32>
    %210 = tpu.reciprocal %209 {approx = true} : vector<32x1xf32> -> vector<32x1xf32>
    %211 = vector.broadcast %210 : vector<32x1xf32> to vector<32x32xf32>
    %212 = arith.mulf %207, %211 : vector<32x32xf32>
    %213 = arith.truncf %212 : vector<32x32xf32> to vector<32x32xbf16>
    %cst_87 = arith.constant dense<0.000000e+00> : vector<32x32xf32>
    %214 = tpu.matmul %213, %198, %cst_87 {dimension_numbers = #tpu.dot_dimension_numbers<[1], [0], [0], [1], [0, 0, 1, 1], [], []>} : vector<32x32xbf16>, vector<32x32xbf16>, vector<32x32xf32> -> vector<32x32xf32>
    %215 = vector.extract_strided_slice %192 {offsets = [0, 32], sizes = [32, 32], strides = [1, 1]} : vector<32x384xf32> to vector<32x32xf32>
    %216 = arith.truncf %215 : vector<32x32xf32> to vector<32x32xbf16>
    %217 = vector.extract_strided_slice %192 {offsets = [0, 160], sizes = [32, 32], strides = [1, 1]} : vector<32x384xf32> to vector<32x32xf32>
    %218 = arith.truncf %217 : vector<32x32xf32> to vector<32x32xbf16>
    %219 = vector.extract_strided_slice %192 {offsets = [0, 288], sizes = [32, 32], strides = [1, 1]} : vector<32x384xf32> to vector<32x32xf32>
    %220 = arith.truncf %219 : vector<32x32xf32> to vector<32x32xbf16>
    %cst_88 = arith.constant dense<0.000000e+00> : vector<32x32xf32>
    %221 = tpu.matmul %216, %218, %cst_88 {dimension_numbers = #tpu.dot_dimension_numbers<[1], [1], [0], [0], [0, 0, 1, 0], [], []>} : vector<32x32xbf16>, vector<32x32xbf16>, vector<32x32xf32> -> vector<32x32xf32>
    %cst_89 = arith.constant 0.176776692 : f32
    %222 = vector.broadcast %cst_89 : f32 to vector<32x32xf32>
    %223 = arith.mulf %221, %222 : vector<32x32xf32>
    %224 = arith.addf %223, %7 : vector<32x32xf32>
    %cst_90 = arith.constant dense<0xFF800000> : vector<32xf32>
    %225 = vector.multi_reduction <maximumf>, %224, %cst_90 [1] : vector<32x32xf32> to vector<32xf32>
    %226 = vector.shape_cast %225 : vector<32xf32> to vector<32x1xf32>
    %227 = vector.broadcast %226 : vector<32x1xf32> to vector<32x32xf32>
    %228 = arith.subf %224, %227 : vector<32x32xf32>
    %229 = math.exp %228 : vector<32x32xf32>
    %cst_91 = arith.constant dense<0.000000e+00> : vector<32xf32>
    %230 = vector.multi_reduction <add>, %229, %cst_91 [1] : vector<32x32xf32> to vector<32xf32>
    %231 = vector.shape_cast %230 : vector<32xf32> to vector<32x1xf32>
    %232 = tpu.reciprocal %231 {approx = true} : vector<32x1xf32> -> vector<32x1xf32>
    %233 = vector.broadcast %232 : vector<32x1xf32> to vector<32x32xf32>
    %234 = arith.mulf %229, %233 : vector<32x32xf32>
    %235 = arith.truncf %234 : vector<32x32xf32> to vector<32x32xbf16>
    %cst_92 = arith.constant dense<0.000000e+00> : vector<32x32xf32>
    %236 = tpu.matmul %235, %220, %cst_92 {dimension_numbers = #tpu.dot_dimension_numbers<[1], [0], [0], [1], [0, 0, 1, 1], [], []>} : vector<32x32xbf16>, vector<32x32xbf16>, vector<32x32xf32> -> vector<32x32xf32>
    %237 = vector.extract_strided_slice %192 {offsets = [0, 64], sizes = [32, 32], strides = [1, 1]} : vector<32x384xf32> to vector<32x32xf32>
    %238 = arith.truncf %237 : vector<32x32xf32> to vector<32x32xbf16>
    %239 = vector.extract_strided_slice %192 {offsets = [0, 192], sizes = [32, 32], strides = [1, 1]} : vector<32x384xf32> to vector<32x32xf32>
    %240 = arith.truncf %239 : vector<32x32xf32> to vector<32x32xbf16>
    %241 = vector.extract_strided_slice %192 {offsets = [0, 320], sizes = [32, 32], strides = [1, 1]} : vector<32x384xf32> to vector<32x32xf32>
    %242 = arith.truncf %241 : vector<32x32xf32> to vector<32x32xbf16>
    %cst_93 = arith.constant dense<0.000000e+00> : vector<32x32xf32>
    %243 = tpu.matmul %238, %240, %cst_93 {dimension_numbers = #tpu.dot_dimension_numbers<[1], [1], [0], [0], [0, 0, 1, 0], [], []>} : vector<32x32xbf16>, vector<32x32xbf16>, vector<32x32xf32> -> vector<32x32xf32>
    %cst_94 = arith.constant 0.176776692 : f32
    %244 = vector.broadcast %cst_94 : f32 to vector<32x32xf32>
    %245 = arith.mulf %243, %244 : vector<32x32xf32>
    %246 = arith.addf %245, %7 : vector<32x32xf32>
    %cst_95 = arith.constant dense<0xFF800000> : vector<32xf32>
    %247 = vector.multi_reduction <maximumf>, %246, %cst_95 [1] : vector<32x32xf32> to vector<32xf32>
    %248 = vector.shape_cast %247 : vector<32xf32> to vector<32x1xf32>
    %249 = vector.broadcast %248 : vector<32x1xf32> to vector<32x32xf32>
    %250 = arith.subf %246, %249 : vector<32x32xf32>
    %251 = math.exp %250 : vector<32x32xf32>
    %cst_96 = arith.constant dense<0.000000e+00> : vector<32xf32>
    %252 = vector.multi_reduction <add>, %251, %cst_96 [1] : vector<32x32xf32> to vector<32xf32>
    %253 = vector.shape_cast %252 : vector<32xf32> to vector<32x1xf32>
    %254 = tpu.reciprocal %253 {approx = true} : vector<32x1xf32> -> vector<32x1xf32>
    %255 = vector.broadcast %254 : vector<32x1xf32> to vector<32x32xf32>
    %256 = arith.mulf %251, %255 : vector<32x32xf32>
    %257 = arith.truncf %256 : vector<32x32xf32> to vector<32x32xbf16>
    %cst_97 = arith.constant dense<0.000000e+00> : vector<32x32xf32>
    %258 = tpu.matmul %257, %242, %cst_97 {dimension_numbers = #tpu.dot_dimension_numbers<[1], [0], [0], [1], [0, 0, 1, 1], [], []>} : vector<32x32xbf16>, vector<32x32xbf16>, vector<32x32xf32> -> vector<32x32xf32>
    %259 = vector.extract_strided_slice %192 {offsets = [0, 96], sizes = [32, 32], strides = [1, 1]} : vector<32x384xf32> to vector<32x32xf32>
    %260 = arith.truncf %259 : vector<32x32xf32> to vector<32x32xbf16>
    %261 = vector.extract_strided_slice %192 {offsets = [0, 224], sizes = [32, 32], strides = [1, 1]} : vector<32x384xf32> to vector<32x32xf32>
    %262 = arith.truncf %261 : vector<32x32xf32> to vector<32x32xbf16>
    %263 = vector.extract_strided_slice %192 {offsets = [0, 352], sizes = [32, 32], strides = [1, 1]} : vector<32x384xf32> to vector<32x32xf32>
    %264 = arith.truncf %263 : vector<32x32xf32> to vector<32x32xbf16>
    %cst_98 = arith.constant dense<0.000000e+00> : vector<32x32xf32>
    %265 = tpu.matmul %260, %262, %cst_98 {dimension_numbers = #tpu.dot_dimension_numbers<[1], [1], [0], [0], [0, 0, 1, 0], [], []>} : vector<32x32xbf16>, vector<32x32xbf16>, vector<32x32xf32> -> vector<32x32xf32>
    %cst_99 = arith.constant 0.176776692 : f32
    %266 = vector.broadcast %cst_99 : f32 to vector<32x32xf32>
    %267 = arith.mulf %265, %266 : vector<32x32xf32>
    %268 = arith.addf %267, %7 : vector<32x32xf32>
    %cst_100 = arith.constant dense<0xFF800000> : vector<32xf32>
    %269 = vector.multi_reduction <maximumf>, %268, %cst_100 [1] : vector<32x32xf32> to vector<32xf32>
    %270 = vector.shape_cast %269 : vector<32xf32> to vector<32x1xf32>
    %271 = vector.broadcast %270 : vector<32x1xf32> to vector<32x32xf32>
    %272 = arith.subf %268, %271 : vector<32x32xf32>
    %273 = math.exp %272 : vector<32x32xf32>
    %cst_101 = arith.constant dense<0.000000e+00> : vector<32xf32>
    %274 = vector.multi_reduction <add>, %273, %cst_101 [1] : vector<32x32xf32> to vector<32xf32>
    %275 = vector.shape_cast %274 : vector<32xf32> to vector<32x1xf32>
    %276 = tpu.reciprocal %275 {approx = true} : vector<32x1xf32> -> vector<32x1xf32>
    %277 = vector.broadcast %276 : vector<32x1xf32> to vector<32x32xf32>
    %278 = arith.mulf %273, %277 : vector<32x32xf32>
    %279 = arith.truncf %278 : vector<32x32xf32> to vector<32x32xbf16>
    %cst_102 = arith.constant dense<0.000000e+00> : vector<32x32xf32>
    %280 = tpu.matmul %279, %264, %cst_102 {dimension_numbers = #tpu.dot_dimension_numbers<[1], [0], [0], [1], [0, 0, 1, 1], [], []>} : vector<32x32xbf16>, vector<32x32xbf16>, vector<32x32xf32> -> vector<32x32xf32>
    %281 = tpu.concatenate %214, %236, %258, %280 in 1 : vector<32x32xf32>, vector<32x32xf32>, vector<32x32xf32>, vector<32x32xf32> -> vector<32x128xf32>
    %282 = arith.truncf %281 : vector<32x128xf32> to vector<32x128xbf16>
    %c1_103 = arith.constant 1 : index
    %c0_104 = arith.constant 0 : index
    %c0_105 = arith.constant 0 : index
    %283 = vector.load %arg7[%c1_103, %c0_104, %c0_105] : memref<2x128x128xbf16, #tpu.memory_space<vmem>>, vector<1x128x128xbf16>
    %284 = vector.shape_cast %283 : vector<1x128x128xbf16> to vector<128x128xbf16>
    %cst_106 = arith.constant dense<0.000000e+00> : vector<32x128xf32>
    %285 = tpu.matmul %282, %284, %cst_106 {dimension_numbers = #tpu.dot_dimension_numbers<[1], [0], [0], [1], [0, 0, 1, 1], [], []>} : vector<32x128xbf16>, vector<128x128xbf16>, vector<32x128xf32> -> vector<32x128xf32>
    %c1_107 = arith.constant 1 : index
    %c0_108 = arith.constant 0 : index
    %c0_109 = arith.constant 0 : index
    %286 = vector.load %arg8[%c1_107, %c0_108, %c0_109] : memref<2x1x128xf32, #tpu.memory_space<vmem>>, vector<1x1x128xf32>
    %287 = vector.shape_cast %286 : vector<1x1x128xf32> to vector<1x128xf32>
    %288 = vector.broadcast %287 : vector<1x128xf32> to vector<32x128xf32>
    %289 = arith.addf %285, %288 : vector<32x128xf32>
    %290 = arith.addf %184, %289 : vector<32x128xf32>
    %c1_110 = arith.constant 1 : index
    %c0_111 = arith.constant 0 : index
    %c0_112 = arith.constant 0 : index
    %291 = vector.load %arg9[%c1_110, %c0_111, %c0_112] : memref<2x1x128xf32, #tpu.memory_space<vmem>>, vector<1x1x128xf32>
    %292 = vector.shape_cast %291 : vector<1x1x128xf32> to vector<1x128xf32>
    %c1_113 = arith.constant 1 : index
    %c0_114 = arith.constant 0 : index
    %c0_115 = arith.constant 0 : index
    %293 = vector.load %arg10[%c1_113, %c0_114, %c0_115] : memref<2x1x128xf32, #tpu.memory_space<vmem>>, vector<1x1x128xf32>
    %294 = vector.shape_cast %293 : vector<1x1x128xf32> to vector<1x128xf32>
    %cst_116 = arith.constant dense<0.000000e+00> : vector<32xf32>
    %295 = vector.multi_reduction <add>, %290, %cst_116 [1] : vector<32x128xf32> to vector<32xf32>
    %296 = vector.shape_cast %295 : vector<32xf32> to vector<32x1xf32>
    %cst_117 = arith.constant 1.280000e+02 : f32
    %297 = vector.broadcast %cst_117 : f32 to vector<32x1xf32>
    %298 = arith.divf %296, %297 : vector<32x1xf32>
    %299 = vector.broadcast %298 : vector<32x1xf32> to vector<32x128xf32>
    %300 = arith.subf %290, %299 : vector<32x128xf32>
    %301 = arith.mulf %300, %300 : vector<32x128xf32>
    %cst_118 = arith.constant dense<0.000000e+00> : vector<32xf32>
    %302 = vector.multi_reduction <add>, %301, %cst_118 [1] : vector<32x128xf32> to vector<32xf32>
    %303 = vector.shape_cast %302 : vector<32xf32> to vector<32x1xf32>
    %cst_119 = arith.constant 1.280000e+02 : f32
    %304 = vector.broadcast %cst_119 : f32 to vector<32x1xf32>
    %305 = arith.divf %303, %304 : vector<32x1xf32>
    %306 = vector.broadcast %298 : vector<32x1xf32> to vector<32x128xf32>
    %307 = arith.subf %290, %306 : vector<32x128xf32>
    %cst_120 = arith.constant 9.99999974E-6 : f32
    %308 = vector.broadcast %cst_120 : f32 to vector<32x1xf32>
    %309 = arith.addf %305, %308 : vector<32x1xf32>
    %310 = math.rsqrt %309 : vector<32x1xf32>
    %311 = vector.broadcast %310 : vector<32x1xf32> to vector<32x128xf32>
    %312 = arith.mulf %307, %311 : vector<32x128xf32>
    %313 = vector.broadcast %292 : vector<1x128xf32> to vector<32x128xf32>
    %314 = arith.mulf %312, %313 : vector<32x128xf32>
    %315 = vector.broadcast %294 : vector<1x128xf32> to vector<32x128xf32>
    %316 = arith.addf %314, %315 : vector<32x128xf32>
    %317 = arith.truncf %316 : vector<32x128xf32> to vector<32x128xbf16>
    %c1_121 = arith.constant 1 : index
    %c0_122 = arith.constant 0 : index
    %c0_123 = arith.constant 0 : index
    %318 = vector.load %arg11[%c1_121, %c0_122, %c0_123] : memref<2x128x256xbf16, #tpu.memory_space<vmem>>, vector<1x128x256xbf16>
    %319 = vector.shape_cast %318 : vector<1x128x256xbf16> to vector<128x256xbf16>
    %cst_124 = arith.constant dense<0.000000e+00> : vector<32x256xf32>
    %320 = tpu.matmul %317, %319, %cst_124 {dimension_numbers = #tpu.dot_dimension_numbers<[1], [0], [0], [1], [0, 0, 1, 1], [], []>} : vector<32x128xbf16>, vector<128x256xbf16>, vector<32x256xf32> -> vector<32x256xf32>
    %c1_125 = arith.constant 1 : index
    %c0_126 = arith.constant 0 : index
    %c0_127 = arith.constant 0 : index
    %321 = vector.load %arg12[%c1_125, %c0_126, %c0_127] : memref<2x1x256xf32, #tpu.memory_space<vmem>>, vector<1x1x256xf32>
    %322 = vector.shape_cast %321 : vector<1x1x256xf32> to vector<1x256xf32>
    %323 = vector.broadcast %322 : vector<1x256xf32> to vector<32x256xf32>
    %324 = arith.addf %320, %323 : vector<32x256xf32>
    %cst_128 = arith.constant 0.000000e+00 : f32
    %325 = vector.broadcast %cst_128 : f32 to vector<32x256xf32>
    %326 = arith.maximumf %324, %325 : vector<32x256xf32>
    %327 = arith.truncf %326 : vector<32x256xf32> to vector<32x256xbf16>
    %c1_129 = arith.constant 1 : index
    %c0_130 = arith.constant 0 : index
    %c0_131 = arith.constant 0 : index
    %328 = vector.load %arg13[%c1_129, %c0_130, %c0_131] : memref<2x256x128xbf16, #tpu.memory_space<vmem>>, vector<1x256x128xbf16>
    %329 = vector.shape_cast %328 : vector<1x256x128xbf16> to vector<256x128xbf16>
    %cst_132 = arith.constant dense<0.000000e+00> : vector<32x128xf32>
    %330 = tpu.matmul %327, %329, %cst_132 {dimension_numbers = #tpu.dot_dimension_numbers<[1], [0], [0], [1], [0, 0, 1, 1], [], []>} : vector<32x256xbf16>, vector<256x128xbf16>, vector<32x128xf32> -> vector<32x128xf32>
    %c1_133 = arith.constant 1 : index
    %c0_134 = arith.constant 0 : index
    %c0_135 = arith.constant 0 : index
    %331 = vector.load %arg14[%c1_133, %c0_134, %c0_135] : memref<2x1x128xf32, #tpu.memory_space<vmem>>, vector<1x1x128xf32>
    %332 = vector.shape_cast %331 : vector<1x1x128xf32> to vector<1x128xf32>
    %333 = vector.broadcast %332 : vector<1x128xf32> to vector<32x128xf32>
    %334 = arith.addf %330, %333 : vector<32x128xf32>
    %335 = arith.addf %316, %334 : vector<32x128xf32>
    %c1_136 = arith.constant 1 : index
    %c0_137 = arith.constant 0 : index
    %c0_138 = arith.constant 0 : index
    %336 = vector.load %arg15[%c1_136, %c0_137, %c0_138] : memref<2x1x128xf32, #tpu.memory_space<vmem>>, vector<1x1x128xf32>
    %337 = vector.shape_cast %336 : vector<1x1x128xf32> to vector<1x128xf32>
    %c1_139 = arith.constant 1 : index
    %c0_140 = arith.constant 0 : index
    %c0_141 = arith.constant 0 : index
    %338 = vector.load %arg16[%c1_139, %c0_140, %c0_141] : memref<2x1x128xf32, #tpu.memory_space<vmem>>, vector<1x1x128xf32>
    %339 = vector.shape_cast %338 : vector<1x1x128xf32> to vector<1x128xf32>
    %cst_142 = arith.constant dense<0.000000e+00> : vector<32xf32>
    %340 = vector.multi_reduction <add>, %335, %cst_142 [1] : vector<32x128xf32> to vector<32xf32>
    %341 = vector.shape_cast %340 : vector<32xf32> to vector<32x1xf32>
    %cst_143 = arith.constant 1.280000e+02 : f32
    %342 = vector.broadcast %cst_143 : f32 to vector<32x1xf32>
    %343 = arith.divf %341, %342 : vector<32x1xf32>
    %344 = vector.broadcast %343 : vector<32x1xf32> to vector<32x128xf32>
    %345 = arith.subf %335, %344 : vector<32x128xf32>
    %346 = arith.mulf %345, %345 : vector<32x128xf32>
    %cst_144 = arith.constant dense<0.000000e+00> : vector<32xf32>
    %347 = vector.multi_reduction <add>, %346, %cst_144 [1] : vector<32x128xf32> to vector<32xf32>
    %348 = vector.shape_cast %347 : vector<32xf32> to vector<32x1xf32>
    %cst_145 = arith.constant 1.280000e+02 : f32
    %349 = vector.broadcast %cst_145 : f32 to vector<32x1xf32>
    %350 = arith.divf %348, %349 : vector<32x1xf32>
    %351 = vector.broadcast %343 : vector<32x1xf32> to vector<32x128xf32>
    %352 = arith.subf %335, %351 : vector<32x128xf32>
    %cst_146 = arith.constant 9.99999974E-6 : f32
    %353 = vector.broadcast %cst_146 : f32 to vector<32x1xf32>
    %354 = arith.addf %350, %353 : vector<32x1xf32>
    %355 = math.rsqrt %354 : vector<32x1xf32>
    %356 = vector.broadcast %355 : vector<32x1xf32> to vector<32x128xf32>
    %357 = arith.mulf %352, %356 : vector<32x128xf32>
    %358 = vector.broadcast %337 : vector<1x128xf32> to vector<32x128xf32>
    %359 = arith.mulf %357, %358 : vector<32x128xf32>
    %360 = vector.broadcast %339 : vector<1x128xf32> to vector<32x128xf32>
    %361 = arith.addf %359, %360 : vector<32x128xf32>
    %c0_147 = arith.constant 0 : index
    %c0_148 = arith.constant 0 : index
    %362 = vector.load %arg17[%c0_147, %c0_148] : memref<32x128xf32, #tpu.memory_space<vmem>>, vector<32x128xf32>
    %363 = arith.mulf %361, %362 : vector<32x128xf32>
    %c0_149 = arith.constant 0 : index
    %c0_150 = arith.constant 0 : index
    %364 = vector.load %arg4[%c0_149, %c0_150] : memref<2x32xf32, #tpu.memory_space<vmem>>, vector<2x32xf32>
    %cst_151 = arith.constant dense<0.000000e+00> : vector<2x128xf32>
    %365 = tpu.matmul %364, %363, %cst_151 {dimension_numbers = #tpu.dot_dimension_numbers<[1], [0], [0], [1], [0, 0, 1, 1], [], []>} : vector<2x32xf32>, vector<32x128xf32>, vector<2x128xf32> -> vector<2x128xf32>
    %cst_152 = arith.constant dense<0.000000e+00> : vector<2xf32>
    %366 = vector.multi_reduction <add>, %365, %cst_152 [1] : vector<2x128xf32> to vector<2xf32>
    %367 = vector.shape_cast %366 : vector<2xf32> to vector<2x1xf32>
    %c0_153 = arith.constant 0 : index
    %c0_154 = arith.constant 0 : index
    %368 = vector.load %arg18[%c0_153, %c0_154] : memref<1x1xf32, #tpu.memory_space<vmem>>, vector<1x1xf32>
    %369 = vector.broadcast %368 : vector<1x1xf32> to vector<2x1xf32>
    %370 = arith.addf %367, %369 : vector<2x1xf32>
    %c0_155 = arith.constant 0 : index
    %c0_156 = arith.constant 0 : index
    %371 = vector.load %arg19[%c0_155, %c0_156] : memref<2x1xf32, #tpu.memory_space<vmem>>, vector<2x1xf32>
    tpu.vector_store %arg19[%c0_155, %c0_156], %370 {strides = array<i32>} : memref<2x1xf32, #tpu.memory_space<vmem>>, vector<2x1xf32>,
    return
  }
}

</mosaic_0001>

<llo_original>
// kernel: _lambda_.1
$region0: #{_lambda_.1}
  #allocation0 [shape = 'u32[]', space=smem, size = 0x4, offset = 0x4, fixed_abs, tag = 'smem constant byte address 0x4 - core index']
  #allocation1 [shape = 'u32[72,128]{1,0:T(1,128)}', space=vmem, size = 0x9000, scoped, tag = 'internal scratch']
  #allocation2 [shape = 'f32[1,1]{1,0:T(1,128)S(1)}', space=vmem, size = 0x200, scoped, tag = 'scoped memory for _lambda_.1']
  %s0 = inlined_call_operand.vmem [shape: f32[32,1], index: 0, kind: input, shape index: {}]
  %s1 = inlined_call_operand.hbm [shape: f32[32,128], index: 1, kind: input, shape index: {}]
  %s2 = inlined_call_operand.vmem [shape: f32[1,128], index: 2, kind: input, shape index: {}]
  %s3 = inlined_call_operand.hbm [shape: f32[32,32], index: 3, kind: input, shape index: {}]
  %s4 = inlined_call_operand.vmem [shape: f32[2,32], index: 4, kind: input, shape index: {}]
  %s5 = inlined_call_operand.hbm [shape: bf16[2,128,384], index: 5, kind: input, shape index: {}]
  %s6 = inlined_call_operand.vmem [shape: f32[2,1,384], index: 6, kind: input, shape index: {}]
  %s7 = inlined_call_operand.hbm [shape: bf16[2,128,128], index: 7, kind: input, shape index: {}]
  %s8 = inlined_call_operand.vmem [shape: f32[2,1,128], index: 8, kind: input, shape index: {}, may-alias: {8,10,16}]
  %s9 = inlined_call_operand.vmem [shape: f32[2,1,128], index: 9, kind: input, shape index: {}, may-alias: {9,15}]
  %s10 = inlined_call_operand.vmem [shape: f32[2,1,128], index: 10, kind: input, shape index: {}, may-alias: {8,10,16}]
  %s11 = inlined_call_operand.hbm [shape: bf16[2,128,256], index: 11, kind: input, shape index: {}]
  %s12 = inlined_call_operand.vmem [shape: f32[2,1,256], index: 12, kind: input, shape index: {}]
  %s13 = inlined_call_operand.hbm [shape: bf16[2,256,128], index: 13, kind: input, shape index: {}]
  %s14 = inlined_call_operand.vmem [shape: f32[2,1,128], index: 14, kind: input, shape index: {}]
  %s15 = inlined_call_operand.vmem [shape: f32[2,1,128], index: 15, kind: input, shape index: {}, may-alias: {9,15}]
  %s16 = inlined_call_operand.vmem [shape: f32[2,1,128], index: 16, kind: input, shape index: {}, may-alias: {8,10,16}]
  %s17 = inlined_call_operand.vmem [shape: f32[32,128], index: 17, kind: input, shape index: {}]
  %s18 = inlined_call_operand.<no memory space> [shape: f32[1,1], index: 18, kind: input, shape index: {}]
  %s19 = inlined_call_operand.vmem [shape: f32[2,1], index: 19, kind: output, shape index: {}]
  %s20 = sld [smem:[#allocation0]]
  $region110: #{_lambda_.1} parent=0
    _
  %s22 = ssub.s32 1, %s20
  %s23 = scalar_select 0, %s22, %s20
  %v24 = vstv %s18
  %25 = vst [vmem:[#allocation2] sm:$0x1] %v24
  $region1: #{_lambda_.1} parent=0
    #allocation3 [shape = 'u8[16384]{0}', space=vmem, size = 0x4000, scoped, tag = 'input window, operand 1, single buffered']
    #allocation4 [shape = 's32[1]{0}', space=sflag, size = 0x4, scoped, tag = 'scoped memory for _lambda_.1']
    #allocation5 [shape = 'u8[16384]{0}', space=vmem, size = 0x4000, scoped, tag = 'input window, operand 3, single buffered']
    #allocation6 [shape = 's32[1]{0}', space=sflag, size = 0x4, scoped, tag = 'scoped memory for _lambda_.1']
    #allocation7 [shape = 'u8[196608]{0}', space=vmem, size = 0x30000, scoped, tag = 'input window, operand 5, single buffered']
    #allocation8 [shape = 'u8[65536]{0}', space=vmem, size = 0x10000, scoped, tag = 'input window, operand 7, single buffered']
    #allocation9 [shape = 's32[1]{0}', space=sflag, size = 0x4, scoped, tag = 'scoped memory for _lambda_.1']
    #allocation10 [shape = 'u8[131072]{0}', space=vmem, size = 0x20000, scoped, tag = 'input window, operand 11, single buffered']
    #allocation11 [shape = 'u8[131072]{0}', space=vmem, size = 0x20000, scoped, tag = 'input window, operand 13, single buffered']
    #allocation12 [shape = 's32[1]{0}', space=sflag, size = 0x4, scoped, tag = 'scoped memory for _lambda_.1']
    %26 = vsyncpa [#allocation4], 0
    %27 = vsyncpa [#allocation6], 0
    %28 = vsyncpa [#allocation9], 0
    %29 = vsyncpa [#allocation12], 0
    // Predicated region
    $region2: #{_lambda_.1} parent=1 // pred_check
      _
    $region3: #{_lambda_.1} parent=1 // pred_check_branch
      %31 = sbr.rel (0) target = $region5
    $region4: #{_lambda_.1} parent=1 // pred_region
      _
    $region5: #{_lambda_.1} parent=1 // pred_fallthru
      _
    // Predicated region
    $region6: #{_lambda_.1} parent=1 // pred_check
      _
    $region7: #{_lambda_.1} parent=1 // pred_check_branch
      %33 = sbr.rel (0) target = $region9
    $region8: #{_lambda_.1} parent=1 // pred_region
      %35 = vsyncadd [#allocation4], 0
      %s36 = sshll.u32 %s1, 4
      %s37 = int_to_ptr.hbm [resolvable:$true] %s36
      %s38 = sshll.u32 [#allocation3], 4
      %s39 = int_to_ptr.vmem [resolvable:$true] %s38
      %44 = dma.hbm_to_vmem [thread:$0]  %s37, 512, %s39, [#allocation4], 128, 128, 8
    $region9: #{_lambda_.1} parent=1 // pred_fallthru
      _
    // Predicated region
    $region10: #{_lambda_.1} parent=1 // pred_check
      _
    $region11: #{_lambda_.1} parent=1 // pred_check_branch
      %46 = sbr.rel (0) target = $region13
    $region12: #{_lambda_.1} parent=1 // pred_region
      _
    $region13: #{_lambda_.1} parent=1 // pred_fallthru
      _
    // Predicated region
    $region14: #{_lambda_.1} parent=1 // pred_check
      _
    $region15: #{_lambda_.1} parent=1 // pred_check_branch
      %48 = sbr.rel (0) target = $region17
    $region16: #{_lambda_.1} parent=1 // pred_region
      %50 = vsyncadd [#allocation6], 0
      %s51 = sshll.u32 %s3, 4
      %s52 = int_to_ptr.hbm [resolvable:$true] %s51
      %s53 = sshll.u32 [#allocation5], 4
      %s54 = int_to_ptr.vmem [resolvable:$true] %s53
      %59 = dma.hbm_to_vmem [thread:$0]  %s52, 512, %s54, [#allocation6], 128, 128, 8
    $region17: #{_lambda_.1} parent=1 // pred_fallthru
      _
    // Predicated region
    $region18: #{_lambda_.1} parent=1 // pred_check
      _
    $region19: #{_lambda_.1} parent=1 // pred_check_branch
      %61 = sbr.rel (0) target = $region21
    $region20: #{_lambda_.1} parent=1 // pred_region
      _
    $region21: #{_lambda_.1} parent=1 // pred_fallthru
      _
    // Predicated region
    $region22: #{_lambda_.1} parent=1 // pred_check
      _
    $region23: #{_lambda_.1} parent=1 // pred_check_branch
      %63 = sbr.rel (0) target = $region25
    $region24: #{_lambda_.1} parent=1 // pred_region
      %65 = vsyncadd [#allocation6], 0
      %s66 = sshll.u32 %s5, 4
      %s67 = int_to_ptr.hbm [resolvable:$true] %s66
      %s68 = sshll.u32 [#allocation7], 4
      %s69 = int_to_ptr.vmem [resolvable:$true] %s68
      %74 = dma.hbm_to_vmem [thread:$0]  %s67, 6144, %s69, [#allocation6], 192, 192, 12
    $region25: #{_lambda_.1} parent=1 // pred_fallthru
      _
    // Predicated region
    $region26: #{_lambda_.1} parent=1 // pred_check
      _
    $region27: #{_lambda_.1} parent=1 // pred_check_branch
      %76 = sbr.rel (0) target = $region29
    $region28: #{_lambda_.1} parent=1 // pred_region
      _
    $region29: #{_lambda_.1} parent=1 // pred_fallthru
      _
    // Predicated region
    $region30: #{_lambda_.1} parent=1 // pred_check
      _
    $region31: #{_lambda_.1} parent=1 // pred_check_branch
      %78 = sbr.rel (0) target = $region33
    $region32: #{_lambda_.1} parent=1 // pred_region
      %80 = vsyncadd [#allocation9], 0
      %s81 = sshll.u32 %s7, 4
      %s82 = int_to_ptr.hbm [resolvable:$true] %s81
      %s83 = sshll.u32 [#allocation8], 4
      %s84 = int_to_ptr.vmem [resolvable:$true] %s83
      %89 = dma.hbm_to_vmem [thread:$0]  %s82, 2048, %s84, [#allocation9], 64, 64, 4
    $region33: #{_lambda_.1} parent=1 // pred_fallthru
      _
    // Predicated region
    $region34: #{_lambda_.1} parent=1 // pred_check
      _
    $region35: #{_lambda_.1} parent=1 // pred_check_branch
      %91 = sbr.rel (0) target = $region37
    $region36: #{_lambda_.1} parent=1 // pred_region
      _
    $region37: #{_lambda_.1} parent=1 // pred_fallthru
      _
    // Predicated region
    $region38: #{_lambda_.1} parent=1 // pred_check
      _
    $region39: #{_lambda_.1} parent=1 // pred_check_branch
      %93 = sbr.rel (0) target = $region41
    $region40: #{_lambda_.1} parent=1 // pred_region
      _
    $region41: #{_lambda_.1} parent=1 // pred_fallthru
      _
    // Predicated region
    $region42: #{_lambda_.1} parent=1 // pred_check
      _
    $region43: #{_lambda_.1} parent=1 // pred_check_branch
      %95 = sbr.rel (0) target = $region45
    $region44: #{_lambda_.1} parent=1 // pred_region
      _
    $region45: #{_lambda_.1} parent=1 // pred_fallthru
      _
    // Predicated region
    $region46: #{_lambda_.1} parent=1 // pred_check
      _
    $region47: #{_lambda_.1} parent=1 // pred_check_branch
      %97 = sbr.rel (0) target = $region49
    $region48: #{_lambda_.1} parent=1 // pred_region
      %99 = vsyncadd [#allocation9], 0
      %s100 = sshll.u32 %s11, 4
      %s101 = int_to_ptr.hbm [resolvable:$true] %s100
      %s102 = sshll.u32 [#allocation10], 4
      %s103 = int_to_ptr.vmem [resolvable:$true] %s102
      %108 = dma.hbm_to_vmem [thread:$0]  %s101, 4096, %s103, [#allocation9], 128, 128, 8
    $region49: #{_lambda_.1} parent=1 // pred_fallthru
      _
    // Predicated region
    $region50: #{_lambda_.1} parent=1 // pred_check
      _
    $region51: #{_lambda_.1} parent=1 // pred_check_branch
      %110 = sbr.rel (0) target = $region53
    $region52: #{_lambda_.1} parent=1 // pred_region
      _
    $region53: #{_lambda_.1} parent=1 // pred_fallthru
      _
    // Predicated region
    $region54: #{_lambda_.1} parent=1 // pred_check
      _
    $region55: #{_lambda_.1} parent=1 // pred_check_branch
      %112 = sbr.rel (0) target = $region57
    $region56: #{_lambda_.1} parent=1 // pred_region
      %114 = vsyncadd [#allocation12], 0
      %s115 = sshll.u32 %s13, 4
      %s116 = int_to_ptr.hbm [resolvable:$true] %s115
      %s117 = sshll.u32 [#allocation11], 4
      %s118 = int_to_ptr.vmem [resolvable:$true] %s117
      %123 = dma.hbm_to_vmem [thread:$0]  %s116, 4096, %s118, [#allocation12], 64, 64, 4
    $region57: #{_lambda_.1} parent=1 // pred_fallthru
      _
    // Predicated region
    $region58: #{_lambda_.1} parent=1 // pred_check
      _
    $region59: #{_lambda_.1} parent=1 // pred_check_branch
      %125 = sbr.rel (0) target = $region61
    $region60: #{_lambda_.1} parent=1 // pred_region
      _
    $region61: #{_lambda_.1} parent=1 // pred_fallthru
      _
    // Predicated region
    $region62: #{_lambda_.1} parent=1 // pred_check
      _
    $region63: #{_lambda_.1} parent=1 // pred_check_branch
      %127 = sbr.rel (0) target = $region65
    $region64: #{_lambda_.1} parent=1 // pred_region
      _
    $region65: #{_lambda_.1} parent=1 // pred_fallthru
      _
    // Predicated region
    $region66: #{_lambda_.1} parent=1 // pred_check
      _
    $region67: #{_lambda_.1} parent=1 // pred_check_branch
      %129 = sbr.rel (0) target = $region69
    $region68: #{_lambda_.1} parent=1 // pred_region
      _
    $region69: #{_lambda_.1} parent=1 // pred_fallthru
      _
    // Predicated region
    $region70: #{_lambda_.1} parent=1 // pred_check
      _
    $region71: #{_lambda_.1} parent=1 // pred_check_branch
      %131 = sbr.rel (0) target = $region73
    $region72: #{_lambda_.1} parent=1 // pred_region
      _
    $region73: #{_lambda_.1} parent=1 // pred_fallthru
      _
    // Predicated region
    $region74: #{_lambda_.1} parent=1 // pred_check
      _
    $region75: #{_lambda_.1} parent=1 // pred_check_branch
      %133 = sbr.rel (0) target = $region77
    $region76: #{_lambda_.1} parent=1 // pred_region
      _
    $region77: #{_lambda_.1} parent=1 // pred_fallthru
      _
    // Predicated region
    $region78: #{_lambda_.1} parent=1 // pred_check
      _
    $region79: #{_lambda_.1} parent=1 // pred_check_branch
      %135 = sbr.rel (0) target = $region81
    $region80: #{_lambda_.1} parent=1 // pred_region
      %137 = dma.done [#allocation4], 512
    $region81: #{_lambda_.1} parent=1 // pred_fallthru
      _
    // Predicated region
    $region82: #{_lambda_.1} parent=1 // pred_check
      _
    $region83: #{_lambda_.1} parent=1 // pred_check_branch
      %139 = sbr.rel (0) target = $region85
    $region84: #{_lambda_.1} parent=1 // pred_region
      %141 = dma.done [#allocation6], 512
    $region85: #{_lambda_.1} parent=1 // pred_fallthru
      _
    // Predicated region
    $region86: #{_lambda_.1} parent=1 // pred_check
      _
    $region87: #{_lambda_.1} parent=1 // pred_check_branch
      %143 = sbr.rel (0) target = $region89
    $region88: #{_lambda_.1} parent=1 // pred_region
      %145 = dma.done [#allocation6], 6144
    $region89: #{_lambda_.1} parent=1 // pred_fallthru
      _
    // Predicated region
    $region90: #{_lambda_.1} parent=1 // pred_check
      _
    $region91: #{_lambda_.1} parent=1 // pred_check_branch
      %147 = sbr.rel (0) target = $region93
    $region92: #{_lambda_.1} parent=1 // pred_region
      %149 = dma.done [#allocation9], 2048
    $region93: #{_lambda_.1} parent=1 // pred_fallthru
      _
    // Predicated region
    $region94: #{_lambda_.1} parent=1 // pred_check
      _
    $region95: #{_lambda_.1} parent=1 // pred_check_branch
      %151 = sbr.rel (0) target = $region97
    $region96: #{_lambda_.1} parent=1 // pred_region
      %153 = dma.done [#allocation9], 4096
    $region97: #{_lambda_.1} parent=1 // pred_fallthru
      _
    // Predicated region
    $region98: #{_lambda_.1} parent=1 // pred_check
      _
    $region99: #{_lambda_.1} parent=1 // pred_check_branch
      %155 = sbr.rel (0) target = $region101
    $region100: #{_lambda_.1} parent=1 // pred_region
      %157 = dma.done [#allocation12], 4096
    $region101: #{_lambda_.1} parent=1 // pred_fallthru
      _
    %v159 = vld [vmem:[%s0] sm:$0xff]
    %v160 = vld [vmem:[%s0 + $0x8] sm:$0xff]
    %v161 = vld [vmem:[%s0 + $0x10] sm:$0xff]
    %v162 = vld [vmem:[%s0 + $0x18] sm:$0xff]
    %v163 = vld [vmem:[%s2] sm:$0x1]
    %165 = vset.pattern.permute.xlu0 0
    %166 = vperm.xlu0 %165, %v159
    %v167 = vpop.permute.xlu0 %166
    %170 = vset.pattern.permute.xlu0 0
    %171 = vperm.xlu0 %170, %v160
    %v172 = vpop.permute.xlu0 %171
    %175 = vset.pattern.permute.xlu0 0
    %176 = vperm.xlu0 %175, %v161
    %v177 = vpop.permute.xlu0 %176
    %180 = vset.pattern.permute.xlu0 0
    %181 = vperm.xlu0 %180, %v162
    %v182 = vpop.permute.xlu0 %181
    %v185 = vperm.slane %v163, 0
    %v187 = vmul.f32 %v167, %v185
    %v188 = vmul.f32 %v172, %v185
    %v189 = vmul.f32 %v177, %v185
    %v190 = vmul.f32 %v182, %v185
    %v191 = vld [vmem:[#allocation3] sm:$0xff]
    %v192 = vld [vmem:[#allocation3 + $0x8] sm:$0xff]
    %v193 = vld [vmem:[#allocation3 + $0x10] sm:$0xff]
    %v194 = vld [vmem:[#allocation3 + $0x18] sm:$0xff]
    %v195 = vadd.f32 %v187, %v191
    %v196 = vadd.f32 %v188, %v192
    %v197 = vadd.f32 %v189, %v193
    %v198 = vadd.f32 %v190, %v194
    %v199 = vld [vmem:[#allocation5] sm:$0xff]
    %v200 = vld [vmem:[#allocation5 + $0x8] sm:$0xff]
    %v201 = vld [vmem:[#allocation5 + $0x10] sm:$0xff]
    %v202 = vld [vmem:[#allocation5 + $0x18] sm:$0xff]
    %v203 = vpack.c.bf16 %v196, %v195
    %v204 = vpack.c.bf16 %v198, %v197
    %v205 = vld [vmem:[#allocation7] sm:$0xff]
    %v206 = vld [vmem:[#allocation7 + $0x8] sm:$0xf]
    %v207 = vld [vmem:[#allocation7 + $0xc] sm:$0xff]
    %v208 = vld [vmem:[#allocation7 + $0x14] sm:$0xf]
    %v209 = vld [vmem:[#allocation7 + $0x18] sm:$0xff]
    %v210 = vld [vmem:[#allocation7 + $0x20] sm:$0xf]
    %v211 = vld [vmem:[#allocation7 + $0x24] sm:$0xff]
    %v212 = vld [vmem:[#allocation7 + $0x2c] sm:$0xf]
    %v213 = vld [vmem:[#allocation7 + $0x30] sm:$0xff]
    %v214 = vld [vmem:[#allocation7 + $0x38] sm:$0xf]
    %v215 = vld [vmem:[#allocation7 + $0x3c] sm:$0xff]
    %v216 = vld [vmem:[#allocation7 + $0x44] sm:$0xf]
    %v217 = vld [vmem:[#allocation7 + $0x48] sm:$0xff]
    %v218 = vld [vmem:[#allocation7 + $0x50] sm:$0xf]
    %v219 = vld [vmem:[#allocation7 + $0x54] sm:$0xff]
    %v220 = vld [vmem:[#allocation7 + $0x5c] sm:$0xf]
    %v221 = vld [vmem:[#allocation7 + $0x60] sm:$0xff]
    %v222 = vld [vmem:[#allocation7 + $0x68] sm:$0xf]
    %v223 = vld [vmem:[#allocation7 + $0x6c] sm:$0xff]
    %v224 = vld [vmem:[#allocation7 + $0x74] sm:$0xf]
    %v225 = vld [vmem:[#allocation7 + $0x78] sm:$0xff]
    %v226 = vld [vmem:[#allocation7 + $0x80] sm:$0xf]
    %v227 = vld [vmem:[#allocation7 + $0x84] sm:$0xff]
    %v228 = vld [vmem:[#allocation7 + $0x8c] sm:$0xf]
    %v229 = vld [vmem:[#allocation7 + $0x90] sm:$0xff]
    %v230 = vld [vmem:[#allocation7 + $0x98] sm:$0xf]
    %v231 = vld [vmem:[#allocation7 + $0x9c] sm:$0xff]
    %v232 = vld [vmem:[#allocation7 + $0xa4] sm:$0xf]
    %v233 = vld [vmem:[#allocation7 + $0xa8] sm:$0xff]
    %v234 = vld [vmem:[#allocation7 + $0xb0] sm:$0xf]
    %v235 = vld [vmem:[#allocation7 + $0xb4] sm:$0xff]
    %v236 = vld [vmem:[#allocation7 + $0xbc] sm:$0xf]
    %v237 = vld [vmem:[%s6] sm:$0x7]
    %v239 = vperm.slane %v237, 0
    %v240 = vperm.slane %v237, 1
    %v241 = vperm.slane %v237, 2
    %v277 = vunpack.c.l.b16 %v205
    %v278 = vunpack.c.h.b16 %v205
    %v279 = vunpack.c.l.b16 %v206
    %v280 = vunpack.c.l.b16 %v207
    %v281 = vunpack.c.h.b16 %v207
    %v282 = vunpack.c.l.b16 %v208
    %v283 = vunpack.c.l.b16 %v209
    %v284 = vunpack.c.h.b16 %v209
    %v285 = vunpack.c.l.b16 %v210
    %v286 = vunpack.c.l.b16 %v211
    %v287 = vunpack.c.h.b16 %v211
    %v288 = vunpack.c.l.b16 %v212
    %v289 = vunpack.c.l.b16 %v213
    %v290 = vunpack.c.h.b16 %v213
    %v291 = vunpack.c.l.b16 %v214
    %v292 = vunpack.c.l.b16 %v215
    %v293 = vunpack.c.h.b16 %v215
    %v294 = vunpack.c.l.b16 %v216
    %v295 = vunpack.c.l.b16 %v217
    %v296 = vunpack.c.h.b16 %v217
    %v297 = vunpack.c.l.b16 %v218
    %v298 = vunpack.c.l.b16 %v219
    %v299 = vunpack.c.h.b16 %v219
    %v300 = vunpack.c.l.b16 %v220
    %v301 = vunpack.c.l.b16 %v221
    %v302 = vunpack.c.h.b16 %v221
    %v303 = vunpack.c.l.b16 %v222
    %v304 = vunpack.c.l.b16 %v223
    %v305 = vunpack.c.h.b16 %v223
    %v306 = vunpack.c.l.b16 %v224
    %v307 = vunpack.c.l.b16 %v225
    %v308 = vunpack.c.h.b16 %v225
    %v309 = vunpack.c.l.b16 %v226
    %v310 = vunpack.c.l.b16 %v227
    %v311 = vunpack.c.h.b16 %v227
    %v312 = vunpack.c.l.b16 %v228
    %v313 = vunpack.c.l.b16 %v229
    %v314 = vunpack.c.h.b16 %v229
    %v315 = vunpack.c.l.b16 %v230
    %v316 = vunpack.c.l.b16 %v231
    %v317 = vunpack.c.h.b16 %v231
    %v318 = vunpack.c.l.b16 %v232
    %v319 = vunpack.c.l.b16 %v233
    %v320 = vunpack.c.h.b16 %v233
    %v321 = vunpack.c.l.b16 %v234
    %v322 = vunpack.c.l.b16 %v235
    %v323 = vunpack.c.h.b16 %v235
    %v324 = vunpack.c.l.b16 %v236
    %v325 = vpack.c.b16 %v280, %v277
    %v326 = vpack.c.b16 %v281, %v278
    %v327 = vpack.c.b16 %v282, %v279
    %v328 = vpack.c.b16 %v286, %v283
    %v329 = vpack.c.b16 %v287, %v284
    %v330 = vpack.c.b16 %v288, %v285
    %v331 = vpack.c.b16 %v292, %v289
    %v332 = vpack.c.b16 %v293, %v290
    %v333 = vpack.c.b16 %v294, %v291
    %v334 = vpack.c.b16 %v298, %v295
    %v335 = vpack.c.b16 %v299, %v296
    %v336 = vpack.c.b16 %v300, %v297
    %v337 = vpack.c.b16 %v304, %v301
    %v338 = vpack.c.b16 %v305, %v302
    %v339 = vpack.c.b16 %v306, %v303
    %v340 = vpack.c.b16 %v310, %v307
    %v341 = vpack.c.b16 %v311, %v308
    %v342 = vpack.c.b16 %v312, %v309
    %v343 = vpack.c.b16 %v316, %v313
    %v344 = vpack.c.b16 %v317, %v314
    %v345 = vpack.c.b16 %v318, %v315
    %v346 = vpack.c.b16 %v322, %v319
    %v347 = vpack.c.b16 %v323, %v320
    %v348 = vpack.c.b16 %v324, %v321
    %373 = vmatpush.bf16.msra.mxu0 %v346
    %374 = vmatpush.bf16.msra.mxu0 %v343
    %375 = vmatpush.bf16.msra.mxu0 %v340
    %376 = vmatpush.bf16.msra.mxu0 %v337
    %377 = vmatpush.bf16.msra.mxu0 %v334
    %378 = vmatpush.bf16.msra.mxu0 %v331
    %379 = vmatpush.bf16.msra.mxu0 %v328
    %380 = vmatpush.bf16.msra.mxu0 %v325
    %381 = vmatmul.bf16.gmra.mxu0 %v203
    %v382 = vpop.f32.mrf.mxu0
    %v383 = vadd.f32 %v239, %v382
    %v384 = vpop.f32.mrf.mxu0
    %v385 = vadd.f32 %v239, %v384
    %386 = vmatmul.bf16.gmra.mxu0 %v204
    %v387 = vpop.f32.mrf.mxu0
    %v388 = vadd.f32 %v239, %v387
    %v389 = vpop.f32.mrf.mxu0
    %v390 = vadd.f32 %v239, %v389
    %391 = vdwg.mxu0
    %392 = vmatpush.bf16.msra.mxu0 %v347
    %393 = vmatpush.bf16.msra.mxu0 %v344
    %394 = vmatpush.bf16.msra.mxu0 %v341
    %395 = vmatpush.bf16.msra.mxu0 %v338
    %396 = vmatpush.bf16.msra.mxu0 %v335
    %397 = vmatpush.bf16.msra.mxu0 %v332
    %398 = vmatpush.bf16.msra.mxu0 %v329
    %399 = vmatpush.bf16.msra.mxu0 %v326
    %400 = vmatmul.bf16.gmra.mxu0 %v203
    %v401 = vpop.f32.mrf.mxu0
    %v402 = vadd.f32 %v240, %v401
    %v403 = vpop.f32.mrf.mxu0
    %v404 = vadd.f32 %v240, %v403
    %405 = vmatmul.bf16.gmra.mxu0 %v204
    %v406 = vpop.f32.mrf.mxu0
    %v407 = vadd.f32 %v240, %v406
    %v408 = vpop.f32.mrf.mxu0
    %v409 = vadd.f32 %v240, %v408
    %410 = vdwg.mxu0
    %411 = vmatpush.bf16.msra.mxu0 %v348
    %412 = vmatpush.bf16.msra.mxu0 %v345
    %413 = vmatpush.bf16.msra.mxu0 %v342
    %414 = vmatpush.bf16.msra.mxu0 %v339
    %415 = vmatpush.bf16.msra.mxu0 %v336
    %416 = vmatpush.bf16.msra.mxu0 %v333
    %417 = vmatpush.bf16.msra.mxu0 %v330
    %418 = vmatpush.bf16.msra.mxu0 %v327
    %419 = vmatmul.bf16.gmra.mxu0 %v203
    %v420 = vpop.f32.mrf.mxu0
    %v421 = vadd.f32 %v241, %v420
    %v422 = vpop.f32.mrf.mxu0
    %v423 = vadd.f32 %v241, %v422
    %424 = vmatmul.bf16.gmra.mxu0 %v204
    %v425 = vpop.f32.mrf.mxu0
    %v426 = vadd.f32 %v241, %v425
    %v427 = vpop.f32.mrf.mxu0
    %v428 = vadd.f32 %v241, %v427
    %429 = vdwg.mxu0
    %v430 = vpack.c.bf16 %v385, %v383
    %v431 = vpack.c.bf16 %v390, %v388
    %v432 = vpack.c.bf16 %v404, %v402
    %v433 = vpack.c.bf16 %v409, %v407
    %v434 = vpack.c.bf16 %v423, %v421
    %v435 = vpack.c.bf16 %v428, %v426
    %vm436 = vcmask 261120
    %v438 = vsel %vm436, %v430, 0
    %v441 = vsel %vm436, %v431, 0
    %v444 = vsel %vm436, %v432, 0
    %v447 = vsel %vm436, %v433, 0
    %449 = vmatpush.bf16.xpose.msra.mxu0 0
    %450 = vmatpush.bf16.xpose.msra.mxu0 0
    %451 = vmatpush.bf16.xpose.msra.mxu0 0
    %452 = vmatpush.bf16.xpose.msra.mxu0 0
    %453 = vmatpush.bf16.xpose.msra.mxu0 0
    %454 = vmatpush.bf16.xpose.msra.mxu0 0
    %455 = vmatpush.bf16.xpose.msra.mxu0 %v447
    %456 = vmatpush.bf16.xpose.msra.mxu0 %v444
    %457 = vmatmul.bf16.gmra.mxu0 %v438
    %v458 = vpop.f32.mrf.mxu0
    %v459 = vadd.f32 0.0, %v458
    %v460 = vpop.f32.mrf.mxu0
    %v461 = vadd.f32 0.0, %v460
    %462 = vmatmul.bf16.gmra.mxu0 %v441
    %v463 = vpop.f32.mrf.mxu0
    %v464 = vadd.f32 0.0, %v463
    %v465 = vpop.f32.mrf.mxu0
    %v466 = vadd.f32 0.0, %v465
    %467 = vdwg.mxu0
    %v468 = vmul.f32 %v459, 0.17677669
    %v469 = vmul.f32 %v461, 0.17677669
    %v470 = vmul.f32 %v464, 0.17677669
    %v471 = vmul.f32 %v466, 0.17677669
    %v472 = vadd.f32 %v468, %v199
    %v473 = vadd.f32 %v469, %v200
    %v474 = vadd.f32 %v470, %v201
    %v475 = vadd.f32 %v471, %v202
    %v476 = vsel %vm436, %v472, -inf
    %477 = vmax.xlane.f32.xlu0 %v476
    %v478 = vpop.xlane.xlu0 %477
    %v479 = vsel %vm436, %v473, -inf
    %480 = vmax.xlane.f32.xlu0 %v479
    %v481 = vpop.xlane.xlu0 %480
    %v482 = vsel %vm436, %v474, -inf
    %483 = vmax.xlane.f32.xlu0 %v482
    %v484 = vpop.xlane.xlu0 %483
    %v485 = vsel %vm436, %v475, -inf
    %486 = vmax.xlane.f32.xlu0 %v485
    %v487 = vpop.xlane.xlu0 %486
    %v488 = vsub.f32 %v472, %v478
    %v489 = vsub.f32 %v473, %v481
    %v490 = vsub.f32 %v474, %v484
    %v491 = vsub.f32 %v475, %v487
    %v492 = vmul.f32 %v488, 1.442695
    %v493 = vpow.pop %v492
    %v494 = vmul.f32 %v489, 1.442695
    %v495 = vpow.pop %v494
    %v496 = vmul.f32 %v490, 1.442695
    %v497 = vpow.pop %v496
    %v498 = vmul.f32 %v491, 1.442695
    %v499 = vpow.pop %v498
    %v500 = vsel %vm436, %v493, 0.0
    %501 = vadd.xlane.f32.xlu0 %v500
    %v502 = vpop.xlane.xlu0 %501
    %v503 = vsel %vm436, %v495, 0.0
    %504 = vadd.xlane.f32.xlu0 %v503
    %v505 = vpop.xlane.xlu0 %504
    %v506 = vsel %vm436, %v497, 0.0
    %507 = vadd.xlane.f32.xlu0 %v506
    %v508 = vpop.xlane.xlu0 %507
    %v509 = vsel %vm436, %v499, 0.0
    %510 = vadd.xlane.f32.xlu0 %v509
    %v511 = vpop.xlane.xlu0 %510
    %v512 = vrcp.pop %v502
    %v513 = vrcp.pop %v505
    %v514 = vrcp.pop %v508
    %v515 = vrcp.pop %v511
    %v516 = vmul.f32 %v493, %v512
    %v517 = vmul.f32 %v495, %v513
    %v518 = vmul.f32 %v497, %v514
    %v519 = vmul.f32 %v499, %v515
    %v520 = vpack.c.bf16 %v517, %v516
    %v521 = vpack.c.bf16 %v519, %v518
    %v523 = vsel %vm436, %v520, 0
    %v526 = vsel %vm436, %v521, 0
    %528 = vmatpush.bf16.msra.mxu0 0
    %529 = vmatpush.bf16.msra.mxu0 0
    %530 = vmatpush.bf16.msra.mxu0 0
    %531 = vmatpush.bf16.msra.mxu0 0
    %532 = vmatpush.bf16.msra.mxu0 0
    %533 = vmatpush.bf16.msra.mxu0 0
    %534 = vmatpush.bf16.msra.mxu0 %v435
    %535 = vmatpush.bf16.msra.mxu0 %v434
    %536 = vmatmul.bf16.gmra.mxu0 %v523
    %v537 = vpop.f32.mrf.mxu0
    %v538 = vadd.f32 0.0, %v537
    %v539 = vpop.f32.mrf.mxu0
    %v540 = vadd.f32 0.0, %v539
    %541 = vmatmul.bf16.gmra.mxu0 %v526
    %v542 = vpop.f32.mrf.mxu0
    %v543 = vadd.f32 0.0, %v542
    %v544 = vpop.f32.mrf.mxu0
    %v545 = vadd.f32 0.0, %v544
    %546 = vdwg.mxu0
    %549 = vrot.lane.b32.xlu0 %v430, 96
    %v550 = vpop.permute.xlu0 %549
    %551 = vrot.lane.b32.xlu0 %v431, 96
    %v552 = vpop.permute.xlu0 %551
    %555 = vrot.lane.b32.xlu0 %v432, 96
    %v556 = vpop.permute.xlu0 %555
    %557 = vrot.lane.b32.xlu0 %v433, 96
    %v558 = vpop.permute.xlu0 %557
    %v560 = vsel %vm436, %v550, 0
    %v563 = vsel %vm436, %v552, 0
    %v566 = vsel %vm436, %v556, 0
    %v569 = vsel %vm436, %v558, 0
    %571 = vmatpush.bf16.xpose.msra.mxu0 0
    %572 = vmatpush.bf16.xpose.msra.mxu0 0
    %573 = vmatpush.bf16.xpose.msra.mxu0 0
    %574 = vmatpush.bf16.xpose.msra.mxu0 0
    %575 = vmatpush.bf16.xpose.msra.mxu0 0
    %576 = vmatpush.bf16.xpose.msra.mxu0 0
    %577 = vmatpush.bf16.xpose.msra.mxu0 %v569
    %578 = vmatpush.bf16.xpose.msra.mxu0 %v566
    %579 = vmatmul.bf16.gmra.mxu0 %v560
    %v580 = vpop.f32.mrf.mxu0
    %v581 = vadd.f32 0.0, %v580
    %v582 = vpop.f32.mrf.mxu0
    %v583 = vadd.f32 0.0, %v582
    %584 = vmatmul.bf16.gmra.mxu0 %v563
    %v585 = vpop.f32.mrf.mxu0
    %v586 = vadd.f32 0.0, %v585
    %v587 = vpop.f32.mrf.mxu0
    %v588 = vadd.f32 0.0, %v587
    %589 = vdwg.mxu0
    %v590 = vmul.f32 %v581, 0.17677669
    %v591 = vmul.f32 %v583, 0.17677669
    %v592 = vmul.f32 %v586, 0.17677669
    %v593 = vmul.f32 %v588, 0.17677669
    %v594 = vadd.f32 %v590, %v199
    %v595 = vadd.f32 %v591, %v200
    %v596 = vadd.f32 %v592, %v201
    %v597 = vadd.f32 %v593, %v202
    %v598 = vsel %vm436, %v594, -inf
    %599 = vmax.xlane.f32.xlu0 %v598
    %v600 = vpop.xlane.xlu0 %599
    %v601 = vsel %vm436, %v595, -inf
    %602 = vmax.xlane.f32.xlu0 %v601
    %v603 = vpop.xlane.xlu0 %602
    %v604 = vsel %vm436, %v596, -inf
    %605 = vmax.xlane.f32.xlu0 %v604
    %v606 = vpop.xlane.xlu0 %605
    %v607 = vsel %vm436, %v597, -inf
    %608 = vmax.xlane.f32.xlu0 %v607
    %v609 = vpop.xlane.xlu0 %608
    %v610 = vsub.f32 %v594, %v600
    %v611 = vsub.f32 %v595, %v603
    %v612 = vsub.f32 %v596, %v606
    %v613 = vsub.f32 %v597, %v609
    %v614 = vmul.f32 %v610, 1.442695
    %v615 = vpow.pop %v614
    %v616 = vmul.f32 %v611, 1.442695
    %v617 = vpow.pop %v616
    %v618 = vmul.f32 %v612, 1.442695
    %v619 = vpow.pop %v618
    %v620 = vmul.f32 %v613, 1.442695
    %v621 = vpow.pop %v620
    %v622 = vsel %vm436, %v615, 0.0
    %623 = vadd.xlane.f32.xlu0 %v622
    %v624 = vpop.xlane.xlu0 %623
    %v625 = vsel %vm436, %v617, 0.0
    %626 = vadd.xlane.f32.xlu0 %v625
    %v627 = vpop.xlane.xlu0 %626
    %v628 = vsel %vm436, %v619, 0.0
    %629 = vadd.xlane.f32.xlu0 %v628
    %v630 = vpop.xlane.xlu0 %629
    %v631 = vsel %vm436, %v621, 0.0
    %632 = vadd.xlane.f32.xlu0 %v631
    %v633 = vpop.xlane.xlu0 %632
    %v634 = vrcp.pop %v624
    %v635 = vrcp.pop %v627
    %v636 = vrcp.pop %v630
    %v637 = vrcp.pop %v633
    %v638 = vmul.f32 %v615, %v634
    %v639 = vmul.f32 %v617, %v635
    %v640 = vmul.f32 %v619, %v636
    %v641 = vmul.f32 %v621, %v637
    %v642 = vpack.c.bf16 %v639, %v638
    %v643 = vpack.c.bf16 %v641, %v640
    %646 = vrot.lane.b32.xlu0 %v434, 96
    %v647 = vpop.permute.xlu0 %646
    %648 = vrot.lane.b32.xlu0 %v435, 96
    %v649 = vpop.permute.xlu0 %648
    %v653 = vsel %vm436, %v642, 0
    %v656 = vsel %vm436, %v643, 0
    %658 = vmatpush.bf16.msra.mxu0 0
    %659 = vmatpush.bf16.msra.mxu0 0
    %660 = vmatpush.bf16.msra.mxu0 0
    %661 = vmatpush.bf16.msra.mxu0 0
    %662 = vmatpush.bf16.msra.mxu0 0
    %663 = vmatpush.bf16.msra.mxu0 0
    %664 = vmatpush.bf16.msra.mxu0 %v649
    %665 = vmatpush.bf16.msra.mxu0 %v647
    %666 = vmatmul.bf16.gmra.mxu0 %v653
    %v667 = vpop.f32.mrf.mxu0
    %v668 = vadd.f32 0.0, %v667
    %v669 = vpop.f32.mrf.mxu0
    %v670 = vadd.f32 0.0, %v669
    %671 = vmatmul.bf16.gmra.mxu0 %v656
    %v672 = vpop.f32.mrf.mxu0
    %v673 = vadd.f32 0.0, %v672
    %v674 = vpop.f32.mrf.mxu0
    %v675 = vadd.f32 0.0, %v674
    %676 = vdwg.mxu0
    %677 = vrot.lane.b32.xlu0 %v430, 64
    %v678 = vpop.permute.xlu0 %677
    %679 = vrot.lane.b32.xlu0 %v431, 64
    %v680 = vpop.permute.xlu0 %679
    %681 = vrot.lane.b32.xlu0 %v432, 64
    %v682 = vpop.permute.xlu0 %681
    %683 = vrot.lane.b32.xlu0 %v433, 64
    %v684 = vpop.permute.xlu0 %683
    %v686 = vsel %vm436, %v678, 0
    %v689 = vsel %vm436, %v680, 0
    %v692 = vsel %vm436, %v682, 0
    %v695 = vsel %vm436, %v684, 0
    %697 = vmatpush.bf16.xpose.msra.mxu0 0
    %698 = vmatpush.bf16.xpose.msra.mxu0 0
    %699 = vmatpush.bf16.xpose.msra.mxu0 0
    %700 = vmatpush.bf16.xpose.msra.mxu0 0
    %701 = vmatpush.bf16.xpose.msra.mxu0 0
    %702 = vmatpush.bf16.xpose.msra.mxu0 0
    %703 = vmatpush.bf16.xpose.msra.mxu0 %v695
    %704 = vmatpush.bf16.xpose.msra.mxu0 %v692
    %705 = vmatmul.bf16.gmra.mxu0 %v686
    %v706 = vpop.f32.mrf.mxu0
    %v707 = vadd.f32 0.0, %v706
    %v708 = vpop.f32.mrf.mxu0
    %v709 = vadd.f32 0.0, %v708
    %710 = vmatmul.bf16.gmra.mxu0 %v689
    %v711 = vpop.f32.mrf.mxu0
    %v712 = vadd.f32 0.0, %v711
    %v713 = vpop.f32.mrf.mxu0
    %v714 = vadd.f32 0.0, %v713
    %715 = vdwg.mxu0
    %v716 = vmul.f32 %v707, 0.17677669
    %v717 = vmul.f32 %v709, 0.17677669
    %v718 = vmul.f32 %v712, 0.17677669
    %v719 = vmul.f32 %v714, 0.17677669
    %v720 = vadd.f32 %v716, %v199
    %v721 = vadd.f32 %v717, %v200
    %v722 = vadd.f32 %v718, %v201
    %v723 = vadd.f32 %v719, %v202
    %v724 = vsel %vm436, %v720, -inf
    %725 = vmax.xlane.f32.xlu0 %v724
    %v726 = vpop.xlane.xlu0 %725
    %v727 = vsel %vm436, %v721, -inf
    %728 = vmax.xlane.f32.xlu0 %v727
    %v729 = vpop.xlane.xlu0 %728
    %v730 = vsel %vm436, %v722, -inf
    %731 = vmax.xlane.f32.xlu0 %v730
    %v732 = vpop.xlane.xlu0 %731
    %v733 = vsel %vm436, %v723, -inf
    %734 = vmax.xlane.f32.xlu0 %v733
    %v735 = vpop.xlane.xlu0 %734
    %v736 = vsub.f32 %v720, %v726
    %v737 = vsub.f32 %v721, %v729
    %v738 = vsub.f32 %v722, %v732
    %v739 = vsub.f32 %v723, %v735
    %v740 = vmul.f32 %v736, 1.442695
    %v741 = vpow.pop %v740
    %v742 = vmul.f32 %v737, 1.442695
    %v743 = vpow.pop %v742
    %v744 = vmul.f32 %v738, 1.442695
    %v745 = vpow.pop %v744
    %v746 = vmul.f32 %v739, 1.442695
    %v747 = vpow.pop %v746
    %v748 = vsel %vm436, %v741, 0.0
    %749 = vadd.xlane.f32.xlu0 %v748
    %v750 = vpop.xlane.xlu0 %749
    %v751 = vsel %vm436, %v743, 0.0
    %752 = vadd.xlane.f32.xlu0 %v751
    %v753 = vpop.xlane.xlu0 %752
    %v754 = vsel %vm436, %v745, 0.0
    %755 = vadd.xlane.f32.xlu0 %v754
    %v756 = vpop.xlane.xlu0 %755
    %v757 = vsel %vm436, %v747, 0.0
    %758 = vadd.xlane.f32.xlu0 %v757
    %v759 = vpop.xlane.xlu0 %758
    %v760 = vrcp.pop %v750
    %v761 = vrcp.pop %v753
    %v762 = vrcp.pop %v756
    %v763 = vrcp.pop %v759
    %v764 = vmul.f32 %v741, %v760
    %v765 = vmul.f32 %v743, %v761
    %v766 = vmul.f32 %v745, %v762
    %v767 = vmul.f32 %v747, %v763
    %v768 = vpack.c.bf16 %v765, %v764
    %v769 = vpack.c.bf16 %v767, %v766
    %770 = vrot.lane.b32.xlu0 %v434, 64
    %v771 = vpop.permute.xlu0 %770
    %772 = vrot.lane.b32.xlu0 %v435, 64
    %v773 = vpop.permute.xlu0 %772
    %v777 = vsel %vm436, %v768, 0
    %v780 = vsel %vm436, %v769, 0
    %782 = vmatpush.bf16.msra.mxu0 0
    %783 = vmatpush.bf16.msra.mxu0 0
    %784 = vmatpush.bf16.msra.mxu0 0
    %785 = vmatpush.bf16.msra.mxu0 0
    %786 = vmatpush.bf16.msra.mxu0 0
    %787 = vmatpush.bf16.msra.mxu0 0
    %788 = vmatpush.bf16.msra.mxu0 %v773
    %789 = vmatpush.bf16.msra.mxu0 %v771
    %790 = vmatmul.bf16.gmra.mxu0 %v777
    %v791 = vpop.f32.mrf.mxu0
    %v792 = vadd.f32 0.0, %v791
    %v793 = vpop.f32.mrf.mxu0
    %v794 = vadd.f32 0.0, %v793
    %795 = vmatmul.bf16.gmra.mxu0 %v780
    %v796 = vpop.f32.mrf.mxu0
    %v797 = vadd.f32 0.0, %v796
    %v798 = vpop.f32.mrf.mxu0
    %v799 = vadd.f32 0.0, %v798
    %800 = vdwg.mxu0
    %801 = vrot.lane.b32.xlu0 %v430, 32
    %v802 = vpop.permute.xlu0 %801
    %803 = vrot.lane.b32.xlu0 %v431, 32
    %v804 = vpop.permute.xlu0 %803
    %805 = vrot.lane.b32.xlu0 %v432, 32
    %v806 = vpop.permute.xlu0 %805
    %807 = vrot.lane.b32.xlu0 %v433, 32
    %v808 = vpop.permute.xlu0 %807
    %v810 = vsel %vm436, %v802, 0
    %v813 = vsel %vm436, %v804, 0
    %v816 = vsel %vm436, %v806, 0
    %v819 = vsel %vm436, %v808, 0
    %821 = vmatpush.bf16.xpose.msra.mxu0 0
    %822 = vmatpush.bf16.xpose.msra.mxu0 0
    %823 = vmatpush.bf16.xpose.msra.mxu0 0
    %824 = vmatpush.bf16.xpose.msra.mxu0 0
    %825 = vmatpush.bf16.xpose.msra.mxu0 0
    %826 = vmatpush.bf16.xpose.msra.mxu0 0
    %827 = vmatpush.bf16.xpose.msra.mxu0 %v819
    %828 = vmatpush.bf16.xpose.msra.mxu0 %v816
    %829 = vmatmul.bf16.gmra.mxu0 %v810
    %v830 = vpop.f32.mrf.mxu0
    %v831 = vadd.f32 0.0, %v830
    %v832 = vpop.f32.mrf.mxu0
    %v833 = vadd.f32 0.0, %v832
    %834 = vmatmul.bf16.gmra.mxu0 %v813
    %v835 = vpop.f32.mrf.mxu0
    %v836 = vadd.f32 0.0, %v835
    %v837 = vpop.f32.mrf.mxu0
    %v838 = vadd.f32 0.0, %v837
    %839 = vdwg.mxu0
    %v840 = vmul.f32 %v831, 0.17677669
    %v841 = vmul.f32 %v833, 0.17677669
    %v842 = vmul.f32 %v836, 0.17677669
    %v843 = vmul.f32 %v838, 0.17677669
    %v844 = vadd.f32 %v840, %v199
    %v845 = vadd.f32 %v841, %v200
    %v846 = vadd.f32 %v842, %v201
    %v847 = vadd.f32 %v843, %v202
    %v848 = vsel %vm436, %v844, -inf
    %849 = vmax.xlane.f32.xlu0 %v848
    %v850 = vpop.xlane.xlu0 %849
    %v851 = vsel %vm436, %v845, -inf
    %852 = vmax.xlane.f32.xlu0 %v851
    %v853 = vpop.xlane.xlu0 %852
    %v854 = vsel %vm436, %v846, -inf
    %855 = vmax.xlane.f32.xlu0 %v854
    %v856 = vpop.xlane.xlu0 %855
    %v857 = vsel %vm436, %v847, -inf
    %858 = vmax.xlane.f32.xlu0 %v857
    %v859 = vpop.xlane.xlu0 %858
    %v860 = vsub.f32 %v844, %v850
    %v861 = vsub.f32 %v845, %v853
    %v862 = vsub.f32 %v846, %v856
    %v863 = vsub.f32 %v847, %v859
    %v864 = vmul.f32 %v860, 1.442695
    %v865 = vpow.pop %v864
    %v866 = vmul.f32 %v861, 1.442695
    %v867 = vpow.pop %v866
    %v868 = vmul.f32 %v862, 1.442695
    %v869 = vpow.pop %v868
    %v870 = vmul.f32 %v863, 1.442695
    %v871 = vpow.pop %v870
    %v872 = vsel %vm436, %v865, 0.0
    %873 = vadd.xlane.f32.xlu0 %v872
    %v874 = vpop.xlane.xlu0 %873
    %v875 = vsel %vm436, %v867, 0.0
    %876 = vadd.xlane.f32.xlu0 %v875
    %v877 = vpop.xlane.xlu0 %876
    %v878 = vsel %vm436, %v869, 0.0
    %879 = vadd.xlane.f32.xlu0 %v878
    %v880 = vpop.xlane.xlu0 %879
    %v881 = vsel %vm436, %v871, 0.0
    %882 = vadd.xlane.f32.xlu0 %v881
    %v883 = vpop.xlane.xlu0 %882
    %v884 = vrcp.pop %v874
    %v885 = vrcp.pop %v877
    %v886 = vrcp.pop %v880
    %v887 = vrcp.pop %v883
    %v888 = vmul.f32 %v865, %v884
    %v889 = vmul.f32 %v867, %v885
    %v890 = vmul.f32 %v869, %v886
    %v891 = vmul.f32 %v871, %v887
    %v892 = vpack.c.bf16 %v889, %v888
    %v893 = vpack.c.bf16 %v891, %v890
    %894 = vrot.lane.b32.xlu0 %v434, 32
    %v895 = vpop.permute.xlu0 %894
    %896 = vrot.lane.b32.xlu0 %v435, 32
    %v897 = vpop.permute.xlu0 %896
    %v901 = vsel %vm436, %v892, 0
    %v904 = vsel %vm436, %v893, 0
    %906 = vmatpush.bf16.msra.mxu0 0
    %907 = vmatpush.bf16.msra.mxu0 0
    %908 = vmatpush.bf16.msra.mxu0 0
    %909 = vmatpush.bf16.msra.mxu0 0
    %910 = vmatpush.bf16.msra.mxu0 0
    %911 = vmatpush.bf16.msra.mxu0 0
    %912 = vmatpush.bf16.msra.mxu0 %v897
    %913 = vmatpush.bf16.msra.mxu0 %v895
    %914 = vmatmul.bf16.gmra.mxu0 %v901
    %v915 = vpop.f32.mrf.mxu0
    %v916 = vadd.f32 0.0, %v915
    %v917 = vpop.f32.mrf.mxu0
    %v918 = vadd.f32 0.0, %v917
    %919 = vmatmul.bf16.gmra.mxu0 %v904
    %v920 = vpop.f32.mrf.mxu0
    %v921 = vadd.f32 0.0, %v920
    %v922 = vpop.f32.mrf.mxu0
    %v923 = vadd.f32 0.0, %v922
    %924 = vdwg.mxu0
    %929 = vrot.lane.b32.xlu0 %v668, 32
    %v930 = vpop.permute.xlu0 %929
    %931 = vrot.lane.b32.xlu0 %v670, 32
    %v932 = vpop.permute.xlu0 %931
    %933 = vrot.lane.b32.xlu0 %v673, 32
    %v934 = vpop.permute.xlu0 %933
    %935 = vrot.lane.b32.xlu0 %v675, 32
    %v936 = vpop.permute.xlu0 %935
    %945 = vrot.lane.b32.xlu0 %v792, 64
    %v946 = vpop.permute.xlu0 %945
    %947 = vrot.lane.b32.xlu0 %v794, 64
    %v948 = vpop.permute.xlu0 %947
    %949 = vrot.lane.b32.xlu0 %v797, 64
    %v950 = vpop.permute.xlu0 %949
    %951 = vrot.lane.b32.xlu0 %v799, 64
    %v952 = vpop.permute.xlu0 %951
    %961 = vrot.lane.b32.xlu0 %v916, 96
    %v962 = vpop.permute.xlu0 %961
    %963 = vrot.lane.b32.xlu0 %v918, 96
    %v964 = vpop.permute.xlu0 %963
    %965 = vrot.lane.b32.xlu0 %v921, 96
    %v966 = vpop.permute.xlu0 %965
    %967 = vrot.lane.b32.xlu0 %v923, 96
    %v968 = vpop.permute.xlu0 %967
    %v973 = vsel %vm436, %v538, %v930
    %v974 = vsel %vm436, %v540, %v932
    %v975 = vsel %vm436, %v543, %v934
    %v976 = vsel %vm436, %v545, %v936
    %vm977 = vcmask 523264
    %v978 = vsel %vm977, %v973, %v946
    %v979 = vsel %vm977, %v974, %v948
    %v980 = vsel %vm977, %v975, %v950
    %v981 = vsel %vm977, %v976, %v952
    %vm982 = vcmask 785408
    %v983 = vsel %vm982, %v978, %v962
    %v984 = vsel %vm982, %v979, %v964
    %v985 = vsel %vm982, %v980, %v966
    %v986 = vsel %vm982, %v981, %v968
    %v987 = vpack.c.bf16 %v984, %v983
    %v988 = vpack.c.bf16 %v986, %v985
    %v989 = vld [vmem:[#allocation8] sm:$0xf]
    %v990 = vld [vmem:[#allocation8 + $0x4] sm:$0xf]
    %v991 = vld [vmem:[#allocation8 + $0x8] sm:$0xf]
    %v992 = vld [vmem:[#allocation8 + $0xc] sm:$0xf]
    %v993 = vld [vmem:[#allocation8 + $0x10] sm:$0xf]
    %v994 = vld [vmem:[#allocation8 + $0x14] sm:$0xf]
    %v995 = vld [vmem:[#allocation8 + $0x18] sm:$0xf]
    %v996 = vld [vmem:[#allocation8 + $0x1c] sm:$0xf]
    %v997 = vld [vmem:[#allocation8 + $0x20] sm:$0xf]
    %v998 = vld [vmem:[#allocation8 + $0x24] sm:$0xf]
    %v999 = vld [vmem:[#allocation8 + $0x28] sm:$0xf]
    %v1000 = vld [vmem:[#allocation8 + $0x2c] sm:$0xf]
    %v1001 = vld [vmem:[#allocation8 + $0x30] sm:$0xf]
    %v1002 = vld [vmem:[#allocation8 + $0x34] sm:$0xf]
    %v1003 = vld [vmem:[#allocation8 + $0x38] sm:$0xf]
    %v1004 = vld [vmem:[#allocation8 + $0x3c] sm:$0xf]
    %v1005 = vld [vmem:[%s8] sm:$0x1]
    %v1007 = vperm.slane %v1005, 0
    %v1025 = vunpack.c.l.b16 %v989
    %v1026 = vunpack.c.l.b16 %v990
    %v1027 = vunpack.c.l.b16 %v991
    %v1028 = vunpack.c.l.b16 %v992
    %v1029 = vunpack.c.l.b16 %v993
    %v1030 = vunpack.c.l.b16 %v994
    %v1031 = vunpack.c.l.b16 %v995
    %v1032 = vunpack.c.l.b16 %v996
    %v1033 = vunpack.c.l.b16 %v997
    %v1034 = vunpack.c.l.b16 %v998
    %v1035 = vunpack.c.l.b16 %v999
    %v1036 = vunpack.c.l.b16 %v1000
    %v1037 = vunpack.c.l.b16 %v1001
    %v1038 = vunpack.c.l.b16 %v1002
    %v1039 = vunpack.c.l.b16 %v1003
    %v1040 = vunpack.c.l.b16 %v1004
    %v1041 = vpack.c.b16 %v1026, %v1025
    %v1042 = vpack.c.b16 %v1028, %v1027
    %v1043 = vpack.c.b16 %v1030, %v1029
    %v1044 = vpack.c.b16 %v1032, %v1031
    %v1045 = vpack.c.b16 %v1034, %v1033
    %v1046 = vpack.c.b16 %v1036, %v1035
    %v1047 = vpack.c.b16 %v1038, %v1037
    %v1048 = vpack.c.b16 %v1040, %v1039
    %1057 = vmatpush.bf16.msra.mxu0 %v1048
    %1058 = vmatpush.bf16.msra.mxu0 %v1047
    %1059 = vmatpush.bf16.msra.mxu0 %v1046
    %1060 = vmatpush.bf16.msra.mxu0 %v1045
    %1061 = vmatpush.bf16.msra.mxu0 %v1044
    %1062 = vmatpush.bf16.msra.mxu0 %v1043
    %1063 = vmatpush.bf16.msra.mxu0 %v1042
    %1064 = vmatpush.bf16.msra.mxu0 %v1041
    %1065 = vmatmul.bf16.gmra.mxu0 %v987
    %v1066 = vpop.f32.mrf.mxu0
    %v1067 = vadd.f32 %v1007, %v1066
    %v1068 = vpop.f32.mrf.mxu0
    %v1069 = vadd.f32 %v1007, %v1068
    %1070 = vmatmul.bf16.gmra.mxu0 %v988
    %v1071 = vpop.f32.mrf.mxu0
    %v1072 = vadd.f32 %v1007, %v1071
    %v1073 = vpop.f32.mrf.mxu0
    %v1074 = vadd.f32 %v1007, %v1073
    %1075 = vdwg.mxu0
    %v1076 = vadd.f32 %v195, %v1067
    %v1077 = vadd.f32 %v196, %v1069
    %v1078 = vadd.f32 %v197, %v1072
    %v1079 = vadd.f32 %v198, %v1074
    %v1080 = vld [vmem:[%s9] sm:$0x1]
    %v1081 = vld [vmem:[%s10] sm:$0x1]
    %1082 = vadd.xlane.f32.xlu0 %v1076
    %v1083 = vpop.xlane.xlu0 %1082
    %1084 = vadd.xlane.f32.xlu0 %v1077
    %v1085 = vpop.xlane.xlu0 %1084
    %1086 = vadd.xlane.f32.xlu0 %v1078
    %v1087 = vpop.xlane.xlu0 %1086
    %1088 = vadd.xlane.f32.xlu0 %v1079
    %v1089 = vpop.xlane.xlu0 %1088
    %v1090 = vrcp.pop 128.0
    %v1091 = vmul.f32 128.0, %v1090
    %v1092 = vsub.f32 1.0, %v1091
    %v1093 = vmul.f32 %v1090, %v1092
    %v1094 = vadd.f32 %v1090, %v1093
    %vm1095 = vweird.f32 %v1090
    %v1096 = vsel %vm1095, %v1090, %v1094
    %v1097 = vmul.f32 %v1083, %v1096
    %v1098 = vmul.f32 %v1085, %v1096
    %v1099 = vmul.f32 %v1087, %v1096
    %v1100 = vmul.f32 %v1089, %v1096
    %v1101 = vsub.f32 %v1076, %v1097
    %v1102 = vsub.f32 %v1077, %v1098
    %v1103 = vsub.f32 %v1078, %v1099
    %v1104 = vsub.f32 %v1079, %v1100
    %v1105 = vmul.f32 %v1101, %v1101
    %v1106 = vmul.f32 %v1102, %v1102
    %v1107 = vmul.f32 %v1103, %v1103
    %v1108 = vmul.f32 %v1104, %v1104
    %1109 = vadd.xlane.f32.xlu0 %v1105
    %v1110 = vpop.xlane.xlu0 %1109
    %1111 = vadd.xlane.f32.xlu0 %v1106
    %v1112 = vpop.xlane.xlu0 %1111
    %1113 = vadd.xlane.f32.xlu0 %v1107
    %v1114 = vpop.xlane.xlu0 %1113
    %1115 = vadd.xlane.f32.xlu0 %v1108
    %v1116 = vpop.xlane.xlu0 %1115
    %v1117 = vmul.f32 %v1110, %v1096
    %v1118 = vmul.f32 %v1112, %v1096
    %v1119 = vmul.f32 %v1114, %v1096
    %v1120 = vmul.f32 %v1116, %v1096
    %v1121 = vadd.f32 %v1117, 1e-05
    %v1122 = vadd.f32 %v1118, 1e-05
    %v1123 = vadd.f32 %v1119, 1e-05
    %v1124 = vadd.f32 %v1120, 1e-05
    %v1125 = vrsqrt.pop %v1121
    %v1126 = vmul.f32 %v1125, %v1121
    %v1127 = vmul.f32 %v1126, %v1125
    %v1128 = vmul.f32 0.5, %v1127
    %v1129 = vsub.f32 1.5, %v1128
    %v1130 = vmul.f32 %v1125, %v1129
    %vm1131 = vweird.f32 %v1121
    %vm1132 = vweird.f32 %v1125
    %vm1133 = vmor %vm1131, %vm1132
    %v1134 = vsel %vm1133, %v1125, %v1130
    %v1135 = vrsqrt.pop %v1122
    %v1136 = vmul.f32 %v1135, %v1122
    %v1137 = vmul.f32 %v1136, %v1135
    %v1138 = vmul.f32 0.5, %v1137
    %v1139 = vsub.f32 1.5, %v1138
    %v1140 = vmul.f32 %v1135, %v1139
    %vm1141 = vweird.f32 %v1122
    %vm1142 = vweird.f32 %v1135
    %vm1143 = vmor %vm1141, %vm1142
    %v1144 = vsel %vm1143, %v1135, %v1140
    %v1145 = vrsqrt.pop %v1123
    %v1146 = vmul.f32 %v1145, %v1123
    %v1147 = vmul.f32 %v1146, %v1145
    %v1148 = vmul.f32 0.5, %v1147
    %v1149 = vsub.f32 1.5, %v1148
    %v1150 = vmul.f32 %v1145, %v1149
    %vm1151 = vweird.f32 %v1123
    %vm1152 = vweird.f32 %v1145
    %vm1153 = vmor %vm1151, %vm1152
    %v1154 = vsel %vm1153, %v1145, %v1150
    %v1155 = vrsqrt.pop %v1124
    %v1156 = vmul.f32 %v1155, %v1124
    %v1157 = vmul.f32 %v1156, %v1155
    %v1158 = vmul.f32 0.5, %v1157
    %v1159 = vsub.f32 1.5, %v1158
    %v1160 = vmul.f32 %v1155, %v1159
    %vm1161 = vweird.f32 %v1124
    %vm1162 = vweird.f32 %v1155
    %vm1163 = vmor %vm1161, %vm1162
    %v1164 = vsel %vm1163, %v1155, %v1160
    %v1165 = vmul.f32 %v1101, %v1134
    %v1166 = vmul.f32 %v1102, %v1144
    %v1167 = vmul.f32 %v1103, %v1154
    %v1168 = vmul.f32 %v1104, %v1164
    %v1170 = vperm.slane %v1080, 0
    %v1172 = vmul.f32 %v1165, %v1170
    %v1173 = vmul.f32 %v1166, %v1170
    %v1174 = vmul.f32 %v1167, %v1170
    %v1175 = vmul.f32 %v1168, %v1170
    %v1177 = vperm.slane %v1081, 0
    %v1179 = vadd.f32 %v1172, %v1177
    %v1180 = vadd.f32 %v1173, %v1177
    %v1181 = vadd.f32 %v1174, %v1177
    %v1182 = vadd.f32 %v1175, %v1177
    %v1183 = vpack.c.bf16 %v1180, %v1179
    %v1184 = vpack.c.bf16 %v1182, %v1181
    %v1185 = vld [vmem:[#allocation10] sm:$0xff]
    %v1186 = vld [vmem:[#allocation10 + $0x8] sm:$0xff]
    %v1187 = vld [vmem:[#allocation10 + $0x10] sm:$0xff]
    %v1188 = vld [vmem:[#allocation10 + $0x18] sm:$0xff]
    %v1189 = vld [vmem:[#allocation10 + $0x20] sm:$0xff]
    %v1190 = vld [vmem:[#allocation10 + $0x28] sm:$0xff]
    %v1191 = vld [vmem:[#allocation10 + $0x30] sm:$0xff]
    %v1192 = vld [vmem:[#allocation10 + $0x38] sm:$0xff]
    %v1193 = vld [vmem:[#allocation10 + $0x40] sm:$0xff]
    %v1194 = vld [vmem:[#allocation10 + $0x48] sm:$0xff]
    %v1195 = vld [vmem:[#allocation10 + $0x50] sm:$0xff]
    %v1196 = vld [vmem:[#allocation10 + $0x58] sm:$0xff]
    %v1197 = vld [vmem:[#allocation10 + $0x60] sm:$0xff]
    %v1198 = vld [vmem:[#allocation10 + $0x68] sm:$0xff]
    %v1199 = vld [vmem:[#allocation10 + $0x70] sm:$0xff]
    %v1200 = vld [vmem:[#allocation10 + $0x78] sm:$0xff]
    %v1201 = vld [vmem:[%s12] sm:$0x3]
    %v1203 = vperm.slane %v1201, 0
    %v1204 = vperm.slane %v1201, 1
    %v1223 = vunpack.c.l.b16 %v1185
    %v1224 = vunpack.c.h.b16 %v1185
    %v1225 = vunpack.c.l.b16 %v1186
    %v1226 = vunpack.c.h.b16 %v1186
    %v1227 = vunpack.c.l.b16 %v1187
    %v1228 = vunpack.c.h.b16 %v1187
    %v1229 = vunpack.c.l.b16 %v1188
    %v1230 = vunpack.c.h.b16 %v1188
    %v1231 = vunpack.c.l.b16 %v1189
    %v1232 = vunpack.c.h.b16 %v1189
    %v1233 = vunpack.c.l.b16 %v1190
    %v1234 = vunpack.c.h.b16 %v1190
    %v1235 = vunpack.c.l.b16 %v1191
    %v1236 = vunpack.c.h.b16 %v1191
    %v1237 = vunpack.c.l.b16 %v1192
    %v1238 = vunpack.c.h.b16 %v1192
    %v1239 = vunpack.c.l.b16 %v1193
    %v1240 = vunpack.c.h.b16 %v1193
    %v1241 = vunpack.c.l.b16 %v1194
    %v1242 = vunpack.c.h.b16 %v1194
    %v1243 = vunpack.c.l.b16 %v1195
    %v1244 = vunpack.c.h.b16 %v1195
    %v1245 = vunpack.c.l.b16 %v1196
    %v1246 = vunpack.c.h.b16 %v1196
    %v1247 = vunpack.c.l.b16 %v1197
    %v1248 = vunpack.c.h.b16 %v1197
    %v1249 = vunpack.c.l.b16 %v1198
    %v1250 = vunpack.c.h.b16 %v1198
    %v1251 = vunpack.c.l.b16 %v1199
    %v1252 = vunpack.c.h.b16 %v1199
    %v1253 = vunpack.c.l.b16 %v1200
    %v1254 = vunpack.c.h.b16 %v1200
    %v1255 = vpack.c.b16 %v1225, %v1223
    %v1256 = vpack.c.b16 %v1226, %v1224
    %v1257 = vpack.c.b16 %v1229, %v1227
    %v1258 = vpack.c.b16 %v1230, %v1228
    %v1259 = vpack.c.b16 %v1233, %v1231
    %v1260 = vpack.c.b16 %v1234, %v1232
    %v1261 = vpack.c.b16 %v1237, %v1235
    %v1262 = vpack.c.b16 %v1238, %v1236
    %v1263 = vpack.c.b16 %v1241, %v1239
    %v1264 = vpack.c.b16 %v1242, %v1240
    %v1265 = vpack.c.b16 %v1245, %v1243
    %v1266 = vpack.c.b16 %v1246, %v1244
    %v1267 = vpack.c.b16 %v1249, %v1247
    %v1268 = vpack.c.b16 %v1250, %v1248
    %v1269 = vpack.c.b16 %v1253, %v1251
    %v1270 = vpack.c.b16 %v1254, %v1252
    %1287 = vmatpush.bf16.msra.mxu0 %v1269
    %1288 = vmatpush.bf16.msra.mxu0 %v1267
    %1289 = vmatpush.bf16.msra.mxu0 %v1265
    %1290 = vmatpush.bf16.msra.mxu0 %v1263
    %1291 = vmatpush.bf16.msra.mxu0 %v1261
    %1292 = vmatpush.bf16.msra.mxu0 %v1259
    %1293 = vmatpush.bf16.msra.mxu0 %v1257
    %1294 = vmatpush.bf16.msra.mxu0 %v1255
    %1295 = vmatmul.bf16.gmra.mxu0 %v1183
    %v1296 = vpop.f32.mrf.mxu0
    %v1297 = vadd.f32 %v1203, %v1296
    %v1298 = vpop.f32.mrf.mxu0
    %v1299 = vadd.f32 %v1203, %v1298
    %1300 = vmatmul.bf16.gmra.mxu0 %v1184
    %v1301 = vpop.f32.mrf.mxu0
    %v1302 = vadd.f32 %v1203, %v1301
    %v1303 = vpop.f32.mrf.mxu0
    %v1304 = vadd.f32 %v1203, %v1303
    %1305 = vdwg.mxu0
    %1306 = vmatpush.bf16.msra.mxu0 %v1270
    %1307 = vmatpush.bf16.msra.mxu0 %v1268
    %1308 = vmatpush.bf16.msra.mxu0 %v1266
    %1309 = vmatpush.bf16.msra.mxu0 %v1264
    %1310 = vmatpush.bf16.msra.mxu0 %v1262
    %1311 = vmatpush.bf16.msra.mxu0 %v1260
    %1312 = vmatpush.bf16.msra.mxu0 %v1258
    %1313 = vmatpush.bf16.msra.mxu0 %v1256
    %1314 = vmatmul.bf16.gmra.mxu0 %v1183
    %v1315 = vpop.f32.mrf.mxu0
    %v1316 = vadd.f32 %v1204, %v1315
    %v1317 = vpop.f32.mrf.mxu0
    %v1318 = vadd.f32 %v1204, %v1317
    %1319 = vmatmul.bf16.gmra.mxu0 %v1184
    %v1320 = vpop.f32.mrf.mxu0
    %v1321 = vadd.f32 %v1204, %v1320
    %v1322 = vpop.f32.mrf.mxu0
    %v1323 = vadd.f32 %v1204, %v1322
    %1324 = vdwg.mxu0
    %v1325 = vmax.f32 %v1297, 0.0
    %v1326 = vmax.f32 %v1316, 0.0
    %v1327 = vmax.f32 %v1299, 0.0
    %v1328 = vmax.f32 %v1318, 0.0
    %v1329 = vmax.f32 %v1302, 0.0
    %v1330 = vmax.f32 %v1321, 0.0
    %v1331 = vmax.f32 %v1304, 0.0
    %v1332 = vmax.f32 %v1323, 0.0
    %v1333 = vpack.c.bf16 %v1327, %v1325
    %v1334 = vpack.c.bf16 %v1328, %v1326
    %v1335 = vpack.c.bf16 %v1331, %v1329
    %v1336 = vpack.c.bf16 %v1332, %v1330
    %v1337 = vld [vmem:[#allocation11] sm:$0xf]
    %v1338 = vld [vmem:[#allocation11 + $0x4] sm:$0xf]
    %v1339 = vld [vmem:[#allocation11 + $0x8] sm:$0xf]
    %v1340 = vld [vmem:[#allocation11 + $0xc] sm:$0xf]
    %v1341 = vld [vmem:[#allocation11 + $0x10] sm:$0xf]
    %v1342 = vld [vmem:[#allocation11 + $0x14] sm:$0xf]
    %v1343 = vld [vmem:[#allocation11 + $0x18] sm:$0xf]
    %v1344 = vld [vmem:[#allocation11 + $0x1c] sm:$0xf]
    %v1345 = vld [vmem:[#allocation11 + $0x20] sm:$0xf]
    %v1346 = vld [vmem:[#allocation11 + $0x24] sm:$0xf]
    %v1347 = vld [vmem:[#allocation11 + $0x28] sm:$0xf]
    %v1348 = vld [vmem:[#allocation11 + $0x2c] sm:$0xf]
    %v1349 = vld [vmem:[#allocation11 + $0x30] sm:$0xf]
    %v1350 = vld [vmem:[#allocation11 + $0x34] sm:$0xf]
    %v1351 = vld [vmem:[#allocation11 + $0x38] sm:$0xf]
    %v1352 = vld [vmem:[#allocation11 + $0x3c] sm:$0xf]
    %v1353 = vld [vmem:[#allocation11 + $0x40] sm:$0xf]
    %v1354 = vld [vmem:[#allocation11 + $0x44] sm:$0xf]
    %v1355 = vld [vmem:[#allocation11 + $0x48] sm:$0xf]
    %v1356 = vld [vmem:[#allocation11 + $0x4c] sm:$0xf]
    %v1357 = vld [vmem:[#allocation11 + $0x50] sm:$0xf]
    %v1358 = vld [vmem:[#allocation11 + $0x54] sm:$0xf]
    %v1359 = vld [vmem:[#allocation11 + $0x58] sm:$0xf]
    %v1360 = vld [vmem:[#allocation11 + $0x5c] sm:$0xf]
    %v1361 = vld [vmem:[#allocation11 + $0x60] sm:$0xf]
    %v1362 = vld [vmem:[#allocation11 + $0x64] sm:$0xf]
    %v1363 = vld [vmem:[#allocation11 + $0x68] sm:$0xf]
    %v1364 = vld [vmem:[#allocation11 + $0x6c] sm:$0xf]
    %v1365 = vld [vmem:[#allocation11 + $0x70] sm:$0xf]
    %v1366 = vld [vmem:[#allocation11 + $0x74] sm:$0xf]
    %v1367 = vld [vmem:[#allocation11 + $0x78] sm:$0xf]
    %v1368 = vld [vmem:[#allocation11 + $0x7c] sm:$0xf]
    %v1369 = vld [vmem:[%s14] sm:$0x1]
    %v1371 = vperm.slane %v1369, 0
    %v1405 = vunpack.c.l.b16 %v1337
    %v1406 = vunpack.c.l.b16 %v1338
    %v1407 = vunpack.c.l.b16 %v1339
    %v1408 = vunpack.c.l.b16 %v1340
    %v1409 = vunpack.c.l.b16 %v1341
    %v1410 = vunpack.c.l.b16 %v1342
    %v1411 = vunpack.c.l.b16 %v1343
    %v1412 = vunpack.c.l.b16 %v1344
    %v1413 = vunpack.c.l.b16 %v1345
    %v1414 = vunpack.c.l.b16 %v1346
    %v1415 = vunpack.c.l.b16 %v1347
    %v1416 = vunpack.c.l.b16 %v1348
    %v1417 = vunpack.c.l.b16 %v1349
    %v1418 = vunpack.c.l.b16 %v1350
    %v1419 = vunpack.c.l.b16 %v1351
    %v1420 = vunpack.c.l.b16 %v1352
    %v1421 = vunpack.c.l.b16 %v1353
    %v1422 = vunpack.c.l.b16 %v1354
    %v1423 = vunpack.c.l.b16 %v1355
    %v1424 = vunpack.c.l.b16 %v1356
    %v1425 = vunpack.c.l.b16 %v1357
    %v1426 = vunpack.c.l.b16 %v1358
    %v1427 = vunpack.c.l.b16 %v1359
    %v1428 = vunpack.c.l.b16 %v1360
    %v1429 = vunpack.c.l.b16 %v1361
    %v1430 = vunpack.c.l.b16 %v1362
    %v1431 = vunpack.c.l.b16 %v1363
    %v1432 = vunpack.c.l.b16 %v1364
    %v1433 = vunpack.c.l.b16 %v1365
    %v1434 = vunpack.c.l.b16 %v1366
    %v1435 = vunpack.c.l.b16 %v1367
    %v1436 = vunpack.c.l.b16 %v1368
    %v1437 = vpack.c.b16 %v1406, %v1405
    %v1438 = vpack.c.b16 %v1408, %v1407
    %v1439 = vpack.c.b16 %v1410, %v1409
    %v1440 = vpack.c.b16 %v1412, %v1411
    %v1441 = vpack.c.b16 %v1414, %v1413
    %v1442 = vpack.c.b16 %v1416, %v1415
    %v1443 = vpack.c.b16 %v1418, %v1417
    %v1444 = vpack.c.b16 %v1420, %v1419
    %v1445 = vpack.c.b16 %v1422, %v1421
    %v1446 = vpack.c.b16 %v1424, %v1423
    %v1447 = vpack.c.b16 %v1426, %v1425
    %v1448 = vpack.c.b16 %v1428, %v1427
    %v1449 = vpack.c.b16 %v1430, %v1429
    %v1450 = vpack.c.b16 %v1432, %v1431
    %v1451 = vpack.c.b16 %v1434, %v1433
    %v1452 = vpack.c.b16 %v1436, %v1435
    %1469 = vmatpush.bf16.msra.mxu0 %v1444
    %1470 = vmatpush.bf16.msra.mxu0 %v1443
    %1471 = vmatpush.bf16.msra.mxu0 %v1442
    %1472 = vmatpush.bf16.msra.mxu0 %v1441
    %1473 = vmatpush.bf16.msra.mxu0 %v1440
    %1474 = vmatpush.bf16.msra.mxu0 %v1439
    %1475 = vmatpush.bf16.msra.mxu0 %v1438
    %1476 = vmatpush.bf16.msra.mxu0 %v1437
    %1477 = vmatmul.bf16.gmra.mxu0 %v1333
    %v1478 = vpop.f32.mrf.mxu0
    %v1479 = vadd.f32 %v1371, %v1478
    %v1480 = vpop.f32.mrf.mxu0
    %v1481 = vadd.f32 %v1371, %v1480
    %1482 = vmatmul.bf16.gmra.mxu0 %v1335
    %v1483 = vpop.f32.mrf.mxu0
    %v1484 = vadd.f32 %v1371, %v1483
    %v1485 = vpop.f32.mrf.mxu0
    %v1486 = vadd.f32 %v1371, %v1485
    %1487 = vdwg.mxu0
    %1488 = vmatpush.bf16.msra.mxu0 %v1452
    %1489 = vmatpush.bf16.msra.mxu0 %v1451
    %1490 = vmatpush.bf16.msra.mxu0 %v1450
    %1491 = vmatpush.bf16.msra.mxu0 %v1449
    %1492 = vmatpush.bf16.msra.mxu0 %v1448
    %1493 = vmatpush.bf16.msra.mxu0 %v1447
    %1494 = vmatpush.bf16.msra.mxu0 %v1446
    %1495 = vmatpush.bf16.msra.mxu0 %v1445
    %1496 = vmatmul.bf16.gmra.mxu0 %v1334
    %v1497 = vpop.f32.mrf.mxu0
    %v1498 = vadd.f32 %v1479, %v1497
    %v1499 = vpop.f32.mrf.mxu0
    %v1500 = vadd.f32 %v1481, %v1499
    %1501 = vmatmul.bf16.gmra.mxu0 %v1336
    %v1502 = vpop.f32.mrf.mxu0
    %v1503 = vadd.f32 %v1484, %v1502
    %v1504 = vpop.f32.mrf.mxu0
    %v1505 = vadd.f32 %v1486, %v1504
    %1506 = vdwg.mxu0
    %v1507 = vadd.f32 %v1179, %v1498
    %v1508 = vadd.f32 %v1180, %v1500
    %v1509 = vadd.f32 %v1181, %v1503
    %v1510 = vadd.f32 %v1182, %v1505
    %v1511 = vld [vmem:[%s15] sm:$0x1]
    %v1512 = vld [vmem:[%s16] sm:$0x1]
    %1513 = vadd.xlane.f32.xlu0 %v1507
    %v1514 = vpop.xlane.xlu0 %1513
    %1515 = vadd.xlane.f32.xlu0 %v1508
    %v1516 = vpop.xlane.xlu0 %1515
    %1517 = vadd.xlane.f32.xlu0 %v1509
    %v1518 = vpop.xlane.xlu0 %1517
    %1519 = vadd.xlane.f32.xlu0 %v1510
    %v1520 = vpop.xlane.xlu0 %1519
    %v1521 = vmul.f32 %v1514, %v1096
    %v1522 = vmul.f32 %v1516, %v1096
    %v1523 = vmul.f32 %v1518, %v1096
    %v1524 = vmul.f32 %v1520, %v1096
    %v1525 = vsub.f32 %v1507, %v1521
    %v1526 = vsub.f32 %v1508, %v1522
    %v1527 = vsub.f32 %v1509, %v1523
    %v1528 = vsub.f32 %v1510, %v1524
    %v1529 = vmul.f32 %v1525, %v1525
    %v1530 = vmul.f32 %v1526, %v1526
    %v1531 = vmul.f32 %v1527, %v1527
    %v1532 = vmul.f32 %v1528, %v1528
    %1533 = vadd.xlane.f32.xlu0 %v1529
    %v1534 = vpop.xlane.xlu0 %1533
    %1535 = vadd.xlane.f32.xlu0 %v1530
    %v1536 = vpop.xlane.xlu0 %1535
    %1537 = vadd.xlane.f32.xlu0 %v1531
    %v1538 = vpop.xlane.xlu0 %1537
    %1539 = vadd.xlane.f32.xlu0 %v1532
    %v1540 = vpop.xlane.xlu0 %1539
    %v1541 = vmul.f32 %v1534, %v1096
    %v1542 = vmul.f32 %v1536, %v1096
    %v1543 = vmul.f32 %v1538, %v1096
    %v1544 = vmul.f32 %v1540, %v1096
    %v1545 = vadd.f32 %v1541, 1e-05
    %v1546 = vadd.f32 %v1542, 1e-05
    %v1547 = vadd.f32 %v1543, 1e-05
    %v1548 = vadd.f32 %v1544, 1e-05
    %v1549 = vrsqrt.pop %v1545
    %v1550 = vmul.f32 %v1549, %v1545
    %v1551 = vmul.f32 %v1550, %v1549
    %v1552 = vmul.f32 0.5, %v1551
    %v1553 = vsub.f32 1.5, %v1552
    %v1554 = vmul.f32 %v1549, %v1553
    %vm1555 = vweird.f32 %v1545
    %vm1556 = vweird.f32 %v1549
    %vm1557 = vmor %vm1555, %vm1556
    %v1558 = vsel %vm1557, %v1549, %v1554
    %v1559 = vrsqrt.pop %v1546
    %v1560 = vmul.f32 %v1559, %v1546
    %v1561 = vmul.f32 %v1560, %v1559
    %v1562 = vmul.f32 0.5, %v1561
    %v1563 = vsub.f32 1.5, %v1562
    %v1564 = vmul.f32 %v1559, %v1563
    %vm1565 = vweird.f32 %v1546
    %vm1566 = vweird.f32 %v1559
    %vm1567 = vmor %vm1565, %vm1566
    %v1568 = vsel %vm1567, %v1559, %v1564
    %v1569 = vrsqrt.pop %v1547
    %v1570 = vmul.f32 %v1569, %v1547
    %v1571 = vmul.f32 %v1570, %v1569
    %v1572 = vmul.f32 0.5, %v1571
    %v1573 = vsub.f32 1.5, %v1572
    %v1574 = vmul.f32 %v1569, %v1573
    %vm1575 = vweird.f32 %v1547
    %vm1576 = vweird.f32 %v1569
    %vm1577 = vmor %vm1575, %vm1576
    %v1578 = vsel %vm1577, %v1569, %v1574
    %v1579 = vrsqrt.pop %v1548
    %v1580 = vmul.f32 %v1579, %v1548
    %v1581 = vmul.f32 %v1580, %v1579
    %v1582 = vmul.f32 0.5, %v1581
    %v1583 = vsub.f32 1.5, %v1582
    %v1584 = vmul.f32 %v1579, %v1583
    %vm1585 = vweird.f32 %v1548
    %vm1586 = vweird.f32 %v1579
    %vm1587 = vmor %vm1585, %vm1586
    %v1588 = vsel %vm1587, %v1579, %v1584
    %v1589 = vmul.f32 %v1525, %v1558
    %v1590 = vmul.f32 %v1526, %v1568
    %v1591 = vmul.f32 %v1527, %v1578
    %v1592 = vmul.f32 %v1528, %v1588
    %v1594 = vperm.slane %v1511, 0
    %v1596 = vmul.f32 %v1589, %v1594
    %v1597 = vmul.f32 %v1590, %v1594
    %v1598 = vmul.f32 %v1591, %v1594
    %v1599 = vmul.f32 %v1592, %v1594
    %v1601 = vperm.slane %v1512, 0
    %v1603 = vadd.f32 %v1596, %v1601
    %v1604 = vadd.f32 %v1597, %v1601
    %v1605 = vadd.f32 %v1598, %v1601
    %v1606 = vadd.f32 %v1599, %v1601
    %v1607 = vpack.c.bf16 %v1604, %v1603
    %v1608 = vpack.c.bf16 %v1606, %v1605
    %s1609 = scalar_lea.vmem [#allocation7], 192
    %v1610 = vld [vmem:[%s1609] sm:$0xff]
    %v1611 = vld [vmem:[%s1609 + $0x8] sm:$0xf]
    %v1612 = vld [vmem:[%s1609 + $0xc] sm:$0xff]
    %v1613 = vld [vmem:[%s1609 + $0x14] sm:$0xf]
    %v1614 = vld [vmem:[%s1609 + $0x18] sm:$0xff]
    %v1615 = vld [vmem:[%s1609 + $0x20] sm:$0xf]
    %v1616 = vld [vmem:[%s1609 + $0x24] sm:$0xff]
    %v1617 = vld [vmem:[%s1609 + $0x2c] sm:$0xf]
    %v1618 = vld [vmem:[%s1609 + $0x30] sm:$0xff]
    %v1619 = vld [vmem:[%s1609 + $0x38] sm:$0xf]
    %v1620 = vld [vmem:[%s1609 + $0x3c] sm:$0xff]
    %v1621 = vld [vmem:[%s1609 + $0x44] sm:$0xf]
    %v1622 = vld [vmem:[%s1609 + $0x48] sm:$0xff]
    %v1623 = vld [vmem:[%s1609 + $0x50] sm:$0xf]
    %v1624 = vld [vmem:[%s1609 + $0x54] sm:$0xff]
    %v1625 = vld [vmem:[%s1609 + $0x5c] sm:$0xf]
    %v1626 = vld [vmem:[%s1609 + $0x60] sm:$0xff]
    %v1627 = vld [vmem:[%s1609 + $0x68] sm:$0xf]
    %v1628 = vld [vmem:[%s1609 + $0x6c] sm:$0xff]
    %v1629 = vld [vmem:[%s1609 + $0x74] sm:$0xf]
    %v1630 = vld [vmem:[%s1609 + $0x78] sm:$0xff]
    %v1631 = vld [vmem:[%s1609 + $0x80] sm:$0xf]
    %v1632 = vld [vmem:[%s1609 + $0x84] sm:$0xff]
    %v1633 = vld [vmem:[%s1609 + $0x8c] sm:$0xf]
    %v1634 = vld [vmem:[%s1609 + $0x90] sm:$0xff]
    %v1635 = vld [vmem:[%s1609 + $0x98] sm:$0xf]
    %v1636 = vld [vmem:[%s1609 + $0x9c] sm:$0xff]
    %v1637 = vld [vmem:[%s1609 + $0xa4] sm:$0xf]
    %v1638 = vld [vmem:[%s1609 + $0xa8] sm:$0xff]
    %v1639 = vld [vmem:[%s1609 + $0xb0] sm:$0xf]
    %v1640 = vld [vmem:[%s1609 + $0xb4] sm:$0xff]
    %v1641 = vld [vmem:[%s1609 + $0xbc] sm:$0xf]
    %s1642 = scalar_lea.vmem %s6, 3
    %v1643 = vld [vmem:[%s1642] sm:$0x7]
    %v1645 = vperm.slane %v1643, 0
    %v1646 = vperm.slane %v1643, 1
    %v1647 = vperm.slane %v1643, 2
    %v1683 = vunpack.c.l.b16 %v1610
    %v1684 = vunpack.c.h.b16 %v1610
    %v1685 = vunpack.c.l.b16 %v1611
    %v1686 = vunpack.c.l.b16 %v1612
    %v1687 = vunpack.c.h.b16 %v1612
    %v1688 = vunpack.c.l.b16 %v1613
    %v1689 = vunpack.c.l.b16 %v1614
    %v1690 = vunpack.c.h.b16 %v1614
    %v1691 = vunpack.c.l.b16 %v1615
    %v1692 = vunpack.c.l.b16 %v1616
    %v1693 = vunpack.c.h.b16 %v1616
    %v1694 = vunpack.c.l.b16 %v1617
    %v1695 = vunpack.c.l.b16 %v1618
    %v1696 = vunpack.c.h.b16 %v1618
    %v1697 = vunpack.c.l.b16 %v1619
    %v1698 = vunpack.c.l.b16 %v1620
    %v1699 = vunpack.c.h.b16 %v1620
    %v1700 = vunpack.c.l.b16 %v1621
    %v1701 = vunpack.c.l.b16 %v1622
    %v1702 = vunpack.c.h.b16 %v1622
    %v1703 = vunpack.c.l.b16 %v1623
    %v1704 = vunpack.c.l.b16 %v1624
    %v1705 = vunpack.c.h.b16 %v1624
    %v1706 = vunpack.c.l.b16 %v1625
    %v1707 = vunpack.c.l.b16 %v1626
    %v1708 = vunpack.c.h.b16 %v1626
    %v1709 = vunpack.c.l.b16 %v1627
    %v1710 = vunpack.c.l.b16 %v1628
    %v1711 = vunpack.c.h.b16 %v1628
    %v1712 = vunpack.c.l.b16 %v1629
    %v1713 = vunpack.c.l.b16 %v1630
    %v1714 = vunpack.c.h.b16 %v1630
    %v1715 = vunpack.c.l.b16 %v1631
    %v1716 = vunpack.c.l.b16 %v1632
    %v1717 = vunpack.c.h.b16 %v1632
    %v1718 = vunpack.c.l.b16 %v1633
    %v1719 = vunpack.c.l.b16 %v1634
    %v1720 = vunpack.c.h.b16 %v1634
    %v1721 = vunpack.c.l.b16 %v1635
    %v1722 = vunpack.c.l.b16 %v1636
    %v1723 = vunpack.c.h.b16 %v1636
    %v1724 = vunpack.c.l.b16 %v1637
    %v1725 = vunpack.c.l.b16 %v1638
    %v1726 = vunpack.c.h.b16 %v1638
    %v1727 = vunpack.c.l.b16 %v1639
    %v1728 = vunpack.c.l.b16 %v1640
    %v1729 = vunpack.c.h.b16 %v1640
    %v1730 = vunpack.c.l.b16 %v1641
    %v1731 = vpack.c.b16 %v1686, %v1683
    %v1732 = vpack.c.b16 %v1687, %v1684
    %v1733 = vpack.c.b16 %v1688, %v1685
    %v1734 = vpack.c.b16 %v1692, %v1689
    %v1735 = vpack.c.b16 %v1693, %v1690
    %v1736 = vpack.c.b16 %v1694, %v1691
    %v1737 = vpack.c.b16 %v1698, %v1695
    %v1738 = vpack.c.b16 %v1699, %v1696
    %v1739 = vpack.c.b16 %v1700, %v1697
    %v1740 = vpack.c.b16 %v1704, %v1701
    %v1741 = vpack.c.b16 %v1705, %v1702
    %v1742 = vpack.c.b16 %v1706, %v1703
    %v1743 = vpack.c.b16 %v1710, %v1707
    %v1744 = vpack.c.b16 %v1711, %v1708
    %v1745 = vpack.c.b16 %v1712, %v1709
    %v1746 = vpack.c.b16 %v1716, %v1713
    %v1747 = vpack.c.b16 %v1717, %v1714
    %v1748 = vpack.c.b16 %v1718, %v1715
    %v1749 = vpack.c.b16 %v1722, %v1719
    %v1750 = vpack.c.b16 %v1723, %v1720
    %v1751 = vpack.c.b16 %v1724, %v1721
    %v1752 = vpack.c.b16 %v1728, %v1725
    %v1753 = vpack.c.b16 %v1729, %v1726
    %v1754 = vpack.c.b16 %v1730, %v1727
    %1779 = vmatpush.bf16.msra.mxu0 %v1752
    %1780 = vmatpush.bf16.msra.mxu0 %v1749
    %1781 = vmatpush.bf16.msra.mxu0 %v1746
    %1782 = vmatpush.bf16.msra.mxu0 %v1743
    %1783 = vmatpush.bf16.msra.mxu0 %v1740
    %1784 = vmatpush.bf16.msra.mxu0 %v1737
    %1785 = vmatpush.bf16.msra.mxu0 %v1734
    %1786 = vmatpush.bf16.msra.mxu0 %v1731
    %1787 = vmatmul.bf16.gmra.mxu0 %v1607
    %v1788 = vpop.f32.mrf.mxu0
    %v1789 = vadd.f32 %v1645, %v1788
    %v1790 = vpop.f32.mrf.mxu0
    %v1791 = vadd.f32 %v1645, %v1790
    %1792 = vmatmul.bf16.gmra.mxu0 %v1608
    %v1793 = vpop.f32.mrf.mxu0
    %v1794 = vadd.f32 %v1645, %v1793
    %v1795 = vpop.f32.mrf.mxu0
    %v1796 = vadd.f32 %v1645, %v1795
    %1797 = vdwg.mxu0
    %1798 = vmatpush.bf16.msra.mxu0 %v1753
    %1799 = vmatpush.bf16.msra.mxu0 %v1750
    %1800 = vmatpush.bf16.msra.mxu0 %v1747
    %1801 = vmatpush.bf16.msra.mxu0 %v1744
    %1802 = vmatpush.bf16.msra.mxu0 %v1741
    %1803 = vmatpush.bf16.msra.mxu0 %v1738
    %1804 = vmatpush.bf16.msra.mxu0 %v1735
    %1805 = vmatpush.bf16.msra.mxu0 %v1732
    %1806 = vmatmul.bf16.gmra.mxu0 %v1607
    %v1807 = vpop.f32.mrf.mxu0
    %v1808 = vadd.f32 %v1646, %v1807
    %v1809 = vpop.f32.mrf.mxu0
    %v1810 = vadd.f32 %v1646, %v1809
    %1811 = vmatmul.bf16.gmra.mxu0 %v1608
    %v1812 = vpop.f32.mrf.mxu0
    %v1813 = vadd.f32 %v1646, %v1812
    %v1814 = vpop.f32.mrf.mxu0
    %v1815 = vadd.f32 %v1646, %v1814
    %1816 = vdwg.mxu0
    %1817 = vmatpush.bf16.msra.mxu0 %v1754
    %1818 = vmatpush.bf16.msra.mxu0 %v1751
    %1819 = vmatpush.bf16.msra.mxu0 %v1748
    %1820 = vmatpush.bf16.msra.mxu0 %v1745
    %1821 = vmatpush.bf16.msra.mxu0 %v1742
    %1822 = vmatpush.bf16.msra.mxu0 %v1739
    %1823 = vmatpush.bf16.msra.mxu0 %v1736
    %1824 = vmatpush.bf16.msra.mxu0 %v1733
    %1825 = vmatmul.bf16.gmra.mxu0 %v1607
    %v1826 = vpop.f32.mrf.mxu0
    %v1827 = vadd.f32 %v1647, %v1826
    %v1828 = vpop.f32.mrf.mxu0
    %v1829 = vadd.f32 %v1647, %v1828
    %1830 = vmatmul.bf16.gmra.mxu0 %v1608
    %v1831 = vpop.f32.mrf.mxu0
    %v1832 = vadd.f32 %v1647, %v1831
    %v1833 = vpop.f32.mrf.mxu0
    %v1834 = vadd.f32 %v1647, %v1833
    %1835 = vdwg.mxu0
    %v1836 = vpack.c.bf16 %v1791, %v1789
    %v1837 = vpack.c.bf16 %v1796, %v1794
    %v1838 = vpack.c.bf16 %v1810, %v1808
    %v1839 = vpack.c.bf16 %v1815, %v1813
    %v1840 = vpack.c.bf16 %v1829, %v1827
    %v1841 = vpack.c.bf16 %v1834, %v1832
    %v1843 = vsel %vm436, %v1836, 0
    %v1846 = vsel %vm436, %v1837, 0
    %v1849 = vsel %vm436, %v1838, 0
    %v1852 = vsel %vm436, %v1839, 0
    %1854 = vmatpush.bf16.xpose.msra.mxu0 0
    %1855 = vmatpush.bf16.xpose.msra.mxu0 0
    %1856 = vmatpush.bf16.xpose.msra.mxu0 0
    %1857 = vmatpush.bf16.xpose.msra.mxu0 0
    %1858 = vmatpush.bf16.xpose.msra.mxu0 0
    %1859 = vmatpush.bf16.xpose.msra.mxu0 0
    %1860 = vmatpush.bf16.xpose.msra.mxu0 %v1852
    %1861 = vmatpush.bf16.xpose.msra.mxu0 %v1849
    %1862 = vmatmul.bf16.gmra.mxu0 %v1843
    %v1863 = vpop.f32.mrf.mxu0
    %v1864 = vadd.f32 0.0, %v1863
    %v1865 = vpop.f32.mrf.mxu0
    %v1866 = vadd.f32 0.0, %v1865
    %1867 = vmatmul.bf16.gmra.mxu0 %v1846
    %v1868 = vpop.f32.mrf.mxu0
    %v1869 = vadd.f32 0.0, %v1868
    %v1870 = vpop.f32.mrf.mxu0
    %v1871 = vadd.f32 0.0, %v1870
    %1872 = vdwg.mxu0
    %v1873 = vmul.f32 %v1864, 0.17677669
    %v1874 = vmul.f32 %v1866, 0.17677669
    %v1875 = vmul.f32 %v1869, 0.17677669
    %v1876 = vmul.f32 %v1871, 0.17677669
    %v1877 = vadd.f32 %v1873, %v199
    %v1878 = vadd.f32 %v1874, %v200
    %v1879 = vadd.f32 %v1875, %v201
    %v1880 = vadd.f32 %v1876, %v202
    %v1881 = vsel %vm436, %v1877, -inf
    %1882 = vmax.xlane.f32.xlu0 %v1881
    %v1883 = vpop.xlane.xlu0 %1882
    %v1884 = vsel %vm436, %v1878, -inf
    %1885 = vmax.xlane.f32.xlu0 %v1884
    %v1886 = vpop.xlane.xlu0 %1885
    %v1887 = vsel %vm436, %v1879, -inf
    %1888 = vmax.xlane.f32.xlu0 %v1887
    %v1889 = vpop.xlane.xlu0 %1888
    %v1890 = vsel %vm436, %v1880, -inf
    %1891 = vmax.xlane.f32.xlu0 %v1890
    %v1892 = vpop.xlane.xlu0 %1891
    %v1893 = vsub.f32 %v1877, %v1883
    %v1894 = vsub.f32 %v1878, %v1886
    %v1895 = vsub.f32 %v1879, %v1889
    %v1896 = vsub.f32 %v1880, %v1892
    %v1897 = vmul.f32 %v1893, 1.442695
    %v1898 = vpow.pop %v1897
    %v1899 = vmul.f32 %v1894, 1.442695
    %v1900 = vpow.pop %v1899
    %v1901 = vmul.f32 %v1895, 1.442695
    %v1902 = vpow.pop %v1901
    %v1903 = vmul.f32 %v1896, 1.442695
    %v1904 = vpow.pop %v1903
    %v1905 = vsel %vm436, %v1898, 0.0
    %1906 = vadd.xlane.f32.xlu0 %v1905
    %v1907 = vpop.xlane.xlu0 %1906
    %v1908 = vsel %vm436, %v1900, 0.0
    %1909 = vadd.xlane.f32.xlu0 %v1908
    %v1910 = vpop.xlane.xlu0 %1909
    %v1911 = vsel %vm436, %v1902, 0.0
    %1912 = vadd.xlane.f32.xlu0 %v1911
    %v1913 = vpop.xlane.xlu0 %1912
    %v1914 = vsel %vm436, %v1904, 0.0
    %1915 = vadd.xlane.f32.xlu0 %v1914
    %v1916 = vpop.xlane.xlu0 %1915
    %v1917 = vrcp.pop %v1907
    %v1918 = vrcp.pop %v1910
    %v1919 = vrcp.pop %v1913
    %v1920 = vrcp.pop %v1916
    %v1921 = vmul.f32 %v1898, %v1917
    %v1922 = vmul.f32 %v1900, %v1918
    %v1923 = vmul.f32 %v1902, %v1919
    %v1924 = vmul.f32 %v1904, %v1920
    %v1925 = vpack.c.bf16 %v1922, %v1921
    %v1926 = vpack.c.bf16 %v1924, %v1923
    %v1928 = vsel %vm436, %v1925, 0
    %v1931 = vsel %vm436, %v1926, 0
    %1933 = vmatpush.bf16.msra.mxu0 0
    %1934 = vmatpush.bf16.msra.mxu0 0
    %1935 = vmatpush.bf16.msra.mxu0 0
    %1936 = vmatpush.bf16.msra.mxu0 0
    %1937 = vmatpush.bf16.msra.mxu0 0
    %1938 = vmatpush.bf16.msra.mxu0 0
    %1939 = vmatpush.bf16.msra.mxu0 %v1841
    %1940 = vmatpush.bf16.msra.mxu0 %v1840
    %1941 = vmatmul.bf16.gmra.mxu0 %v1928
    %v1942 = vpop.f32.mrf.mxu0
    %v1943 = vadd.f32 0.0, %v1942
    %v1944 = vpop.f32.mrf.mxu0
    %v1945 = vadd.f32 0.0, %v1944
    %1946 = vmatmul.bf16.gmra.mxu0 %v1931
    %v1947 = vpop.f32.mrf.mxu0
    %v1948 = vadd.f32 0.0, %v1947
    %v1949 = vpop.f32.mrf.mxu0
    %v1950 = vadd.f32 0.0, %v1949
    %1951 = vdwg.mxu0
    %1954 = vrot.lane.b32.xlu0 %v1836, 96
    %v1955 = vpop.permute.xlu0 %1954
    %1956 = vrot.lane.b32.xlu0 %v1837, 96
    %v1957 = vpop.permute.xlu0 %1956
    %1960 = vrot.lane.b32.xlu0 %v1838, 96
    %v1961 = vpop.permute.xlu0 %1960
    %1962 = vrot.lane.b32.xlu0 %v1839, 96
    %v1963 = vpop.permute.xlu0 %1962
    %v1965 = vsel %vm436, %v1955, 0
    %v1968 = vsel %vm436, %v1957, 0
    %v1971 = vsel %vm436, %v1961, 0
    %v1974 = vsel %vm436, %v1963, 0
    %1976 = vmatpush.bf16.xpose.msra.mxu0 0
    %1977 = vmatpush.bf16.xpose.msra.mxu0 0
    %1978 = vmatpush.bf16.xpose.msra.mxu0 0
    %1979 = vmatpush.bf16.xpose.msra.mxu0 0
    %1980 = vmatpush.bf16.xpose.msra.mxu0 0
    %1981 = vmatpush.bf16.xpose.msra.mxu0 0
    %1982 = vmatpush.bf16.xpose.msra.mxu0 %v1974
    %1983 = vmatpush.bf16.xpose.msra.mxu0 %v1971
    %1984 = vmatmul.bf16.gmra.mxu0 %v1965
    %v1985 = vpop.f32.mrf.mxu0
    %v1986 = vadd.f32 0.0, %v1985
    %v1987 = vpop.f32.mrf.mxu0
    %v1988 = vadd.f32 0.0, %v1987
    %1989 = vmatmul.bf16.gmra.mxu0 %v1968
    %v1990 = vpop.f32.mrf.mxu0
    %v1991 = vadd.f32 0.0, %v1990
    %v1992 = vpop.f32.mrf.mxu0
    %v1993 = vadd.f32 0.0, %v1992
    %1994 = vdwg.mxu0
    %v1995 = vmul.f32 %v1986, 0.17677669
    %v1996 = vmul.f32 %v1988, 0.17677669
    %v1997 = vmul.f32 %v1991, 0.17677669
    %v1998 = vmul.f32 %v1993, 0.17677669
    %v1999 = vadd.f32 %v1995, %v199
    %v2000 = vadd.f32 %v1996, %v200
    %v2001 = vadd.f32 %v1997, %v201
    %v2002 = vadd.f32 %v1998, %v202
    %v2003 = vsel %vm436, %v1999, -inf
    %2004 = vmax.xlane.f32.xlu0 %v2003
    %v2005 = vpop.xlane.xlu0 %2004
    %v2006 = vsel %vm436, %v2000, -inf
    %2007 = vmax.xlane.f32.xlu0 %v2006
    %v2008 = vpop.xlane.xlu0 %2007
    %v2009 = vsel %vm436, %v2001, -inf
    %2010 = vmax.xlane.f32.xlu0 %v2009
    %v2011 = vpop.xlane.xlu0 %2010
    %v2012 = vsel %vm436, %v2002, -inf
    %2013 = vmax.xlane.f32.xlu0 %v2012
    %v2014 = vpop.xlane.xlu0 %2013
    %v2015 = vsub.f32 %v1999, %v2005
    %v2016 = vsub.f32 %v2000, %v2008
    %v2017 = vsub.f32 %v2001, %v2011
    %v2018 = vsub.f32 %v2002, %v2014
    %v2019 = vmul.f32 %v2015, 1.442695
    %v2020 = vpow.pop %v2019
    %v2021 = vmul.f32 %v2016, 1.442695
    %v2022 = vpow.pop %v2021
    %v2023 = vmul.f32 %v2017, 1.442695
    %v2024 = vpow.pop %v2023
    %v2025 = vmul.f32 %v2018, 1.442695
    %v2026 = vpow.pop %v2025
    %v2027 = vsel %vm436, %v2020, 0.0
    %2028 = vadd.xlane.f32.xlu0 %v2027
    %v2029 = vpop.xlane.xlu0 %2028
    %v2030 = vsel %vm436, %v2022, 0.0
    %2031 = vadd.xlane.f32.xlu0 %v2030
    %v2032 = vpop.xlane.xlu0 %2031
    %v2033 = vsel %vm436, %v2024, 0.0
    %2034 = vadd.xlane.f32.xlu0 %v2033
    %v2035 = vpop.xlane.xlu0 %2034
    %v2036 = vsel %vm436, %v2026, 0.0
    %2037 = vadd.xlane.f32.xlu0 %v2036
    %v2038 = vpop.xlane.xlu0 %2037
    %v2039 = vrcp.pop %v2029
    %v2040 = vrcp.pop %v2032
    %v2041 = vrcp.pop %v2035
    %v2042 = vrcp.pop %v2038
    %v2043 = vmul.f32 %v2020, %v2039
    %v2044 = vmul.f32 %v2022, %v2040
    %v2045 = vmul.f32 %v2024, %v2041
    %v2046 = vmul.f32 %v2026, %v2042
    %v2047 = vpack.c.bf16 %v2044, %v2043
    %v2048 = vpack.c.bf16 %v2046, %v2045
    %2051 = vrot.lane.b32.xlu0 %v1840, 96
    %v2052 = vpop.permute.xlu0 %2051
    %2053 = vrot.lane.b32.xlu0 %v1841, 96
    %v2054 = vpop.permute.xlu0 %2053
    %v2058 = vsel %vm436, %v2047, 0
    %v2061 = vsel %vm436, %v2048, 0
    %2063 = vmatpush.bf16.msra.mxu0 0
    %2064 = vmatpush.bf16.msra.mxu0 0
    %2065 = vmatpush.bf16.msra.mxu0 0
    %2066 = vmatpush.bf16.msra.mxu0 0
    %2067 = vmatpush.bf16.msra.mxu0 0
    %2068 = vmatpush.bf16.msra.mxu0 0
    %2069 = vmatpush.bf16.msra.mxu0 %v2054
    %2070 = vmatpush.bf16.msra.mxu0 %v2052
    %2071 = vmatmul.bf16.gmra.mxu0 %v2058
    %v2072 = vpop.f32.mrf.mxu0
    %v2073 = vadd.f32 0.0, %v2072
    %v2074 = vpop.f32.mrf.mxu0
    %v2075 = vadd.f32 0.0, %v2074
    %2076 = vmatmul.bf16.gmra.mxu0 %v2061
    %v2077 = vpop.f32.mrf.mxu0
    %v2078 = vadd.f32 0.0, %v2077
    %v2079 = vpop.f32.mrf.mxu0
    %v2080 = vadd.f32 0.0, %v2079
    %2081 = vdwg.mxu0
    %2082 = vrot.lane.b32.xlu0 %v1836, 64
    %v2083 = vpop.permute.xlu0 %2082
    %2084 = vrot.lane.b32.xlu0 %v1837, 64
    %v2085 = vpop.permute.xlu0 %2084
    %2086 = vrot.lane.b32.xlu0 %v1838, 64
    %v2087 = vpop.permute.xlu0 %2086
    %2088 = vrot.lane.b32.xlu0 %v1839, 64
    %v2089 = vpop.permute.xlu0 %2088
    %v2091 = vsel %vm436, %v2083, 0
    %v2094 = vsel %vm436, %v2085, 0
    %v2097 = vsel %vm436, %v2087, 0
    %v2100 = vsel %vm436, %v2089, 0
    %2102 = vmatpush.bf16.xpose.msra.mxu0 0
    %2103 = vmatpush.bf16.xpose.msra.mxu0 0
    %2104 = vmatpush.bf16.xpose.msra.mxu0 0
    %2105 = vmatpush.bf16.xpose.msra.mxu0 0
    %2106 = vmatpush.bf16.xpose.msra.mxu0 0
    %2107 = vmatpush.bf16.xpose.msra.mxu0 0
    %2108 = vmatpush.bf16.xpose.msra.mxu0 %v2100
    %2109 = vmatpush.bf16.xpose.msra.mxu0 %v2097
    %2110 = vmatmul.bf16.gmra.mxu0 %v2091
    %v2111 = vpop.f32.mrf.mxu0
    %v2112 = vadd.f32 0.0, %v2111
    %v2113 = vpop.f32.mrf.mxu0
    %v2114 = vadd.f32 0.0, %v2113
    %2115 = vmatmul.bf16.gmra.mxu0 %v2094
    %v2116 = vpop.f32.mrf.mxu0
    %v2117 = vadd.f32 0.0, %v2116
    %v2118 = vpop.f32.mrf.mxu0
    %v2119 = vadd.f32 0.0, %v2118
    %2120 = vdwg.mxu0
    %v2121 = vmul.f32 %v2112, 0.17677669
    %v2122 = vmul.f32 %v2114, 0.17677669
    %v2123 = vmul.f32 %v2117, 0.17677669
    %v2124 = vmul.f32 %v2119, 0.17677669
    %v2125 = vadd.f32 %v2121, %v199
    %v2126 = vadd.f32 %v2122, %v200
    %v2127 = vadd.f32 %v2123, %v201
    %v2128 = vadd.f32 %v2124, %v202
    %v2129 = vsel %vm436, %v2125, -inf
    %2130 = vmax.xlane.f32.xlu0 %v2129
    %v2131 = vpop.xlane.xlu0 %2130
    %v2132 = vsel %vm436, %v2126, -inf
    %2133 = vmax.xlane.f32.xlu0 %v2132
    %v2134 = vpop.xlane.xlu0 %2133
    %v2135 = vsel %vm436, %v2127, -inf
    %2136 = vmax.xlane.f32.xlu0 %v2135
    %v2137 = vpop.xlane.xlu0 %2136
    %v2138 = vsel %vm436, %v2128, -inf
    %2139 = vmax.xlane.f32.xlu0 %v2138
    %v2140 = vpop.xlane.xlu0 %2139
    %v2141 = vsub.f32 %v2125, %v2131
    %v2142 = vsub.f32 %v2126, %v2134
    %v2143 = vsub.f32 %v2127, %v2137
    %v2144 = vsub.f32 %v2128, %v2140
    %v2145 = vmul.f32 %v2141, 1.442695
    %v2146 = vpow.pop %v2145
    %v2147 = vmul.f32 %v2142, 1.442695
    %v2148 = vpow.pop %v2147
    %v2149 = vmul.f32 %v2143, 1.442695
    %v2150 = vpow.pop %v2149
    %v2151 = vmul.f32 %v2144, 1.442695
    %v2152 = vpow.pop %v2151
    %v2153 = vsel %vm436, %v2146, 0.0
    %2154 = vadd.xlane.f32.xlu0 %v2153
    %v2155 = vpop.xlane.xlu0 %2154
    %v2156 = vsel %vm436, %v2148, 0.0
    %2157 = vadd.xlane.f32.xlu0 %v2156
    %v2158 = vpop.xlane.xlu0 %2157
    %v2159 = vsel %vm436, %v2150, 0.0
    %2160 = vadd.xlane.f32.xlu0 %v2159
    %v2161 = vpop.xlane.xlu0 %2160
    %v2162 = vsel %vm436, %v2152, 0.0
    %2163 = vadd.xlane.f32.xlu0 %v2162
    %v2164 = vpop.xlane.xlu0 %2163
    %v2165 = vrcp.pop %v2155
    %v2166 = vrcp.pop %v2158
    %v2167 = vrcp.pop %v2161
    %v2168 = vrcp.pop %v2164
    %v2169 = vmul.f32 %v2146, %v2165
    %v2170 = vmul.f32 %v2148, %v2166
    %v2171 = vmul.f32 %v2150, %v2167
    %v2172 = vmul.f32 %v2152, %v2168
    %v2173 = vpack.c.bf16 %v2170, %v2169
    %v2174 = vpack.c.bf16 %v2172, %v2171
    %2175 = vrot.lane.b32.xlu0 %v1840, 64
    %v2176 = vpop.permute.xlu0 %2175
    %2177 = vrot.lane.b32.xlu0 %v1841, 64
    %v2178 = vpop.permute.xlu0 %2177
    %v2182 = vsel %vm436, %v2173, 0
    %v2185 = vsel %vm436, %v2174, 0
    %2187 = vmatpush.bf16.msra.mxu0 0
    %2188 = vmatpush.bf16.msra.mxu0 0
    %2189 = vmatpush.bf16.msra.mxu0 0
    %2190 = vmatpush.bf16.msra.mxu0 0
    %2191 = vmatpush.bf16.msra.mxu0 0
    %2192 = vmatpush.bf16.msra.mxu0 0
    %2193 = vmatpush.bf16.msra.mxu0 %v2178
    %2194 = vmatpush.bf16.msra.mxu0 %v2176
    %2195 = vmatmul.bf16.gmra.mxu0 %v2182
    %v2196 = vpop.f32.mrf.mxu0
    %v2197 = vadd.f32 0.0, %v2196
    %v2198 = vpop.f32.mrf.mxu0
    %v2199 = vadd.f32 0.0, %v2198
    %2200 = vmatmul.bf16.gmra.mxu0 %v2185
    %v2201 = vpop.f32.mrf.mxu0
    %v2202 = vadd.f32 0.0, %v2201
    %v2203 = vpop.f32.mrf.mxu0
    %v2204 = vadd.f32 0.0, %v2203
    %2205 = vdwg.mxu0
    %2206 = vrot.lane.b32.xlu0 %v1836, 32
    %v2207 = vpop.permute.xlu0 %2206
    %2208 = vrot.lane.b32.xlu0 %v1837, 32
    %v2209 = vpop.permute.xlu0 %2208
    %2210 = vrot.lane.b32.xlu0 %v1838, 32
    %v2211 = vpop.permute.xlu0 %2210
    %2212 = vrot.lane.b32.xlu0 %v1839, 32
    %v2213 = vpop.permute.xlu0 %2212
    %v2215 = vsel %vm436, %v2207, 0
    %v2218 = vsel %vm436, %v2209, 0
    %v2221 = vsel %vm436, %v2211, 0
    %v2224 = vsel %vm436, %v2213, 0
    %2226 = vmatpush.bf16.xpose.msra.mxu0 0
    %2227 = vmatpush.bf16.xpose.msra.mxu0 0
    %2228 = vmatpush.bf16.xpose.msra.mxu0 0
    %2229 = vmatpush.bf16.xpose.msra.mxu0 0
    %2230 = vmatpush.bf16.xpose.msra.mxu0 0
    %2231 = vmatpush.bf16.xpose.msra.mxu0 0
    %2232 = vmatpush.bf16.xpose.msra.mxu0 %v2224
    %2233 = vmatpush.bf16.xpose.msra.mxu0 %v2221
    %2234 = vmatmul.bf16.gmra.mxu0 %v2215
    %v2235 = vpop.f32.mrf.mxu0
    %v2236 = vadd.f32 0.0, %v2235
    %v2237 = vpop.f32.mrf.mxu0
    %v2238 = vadd.f32 0.0, %v2237
    %2239 = vmatmul.bf16.gmra.mxu0 %v2218
    %v2240 = vpop.f32.mrf.mxu0
    %v2241 = vadd.f32 0.0, %v2240
    %v2242 = vpop.f32.mrf.mxu0
    %v2243 = vadd.f32 0.0, %v2242
    %2244 = vdwg.mxu0
    %v2245 = vmul.f32 %v2236, 0.17677669
    %v2246 = vmul.f32 %v2238, 0.17677669
    %v2247 = vmul.f32 %v2241, 0.17677669
    %v2248 = vmul.f32 %v2243, 0.17677669
    %v2249 = vadd.f32 %v2245, %v199
    %v2250 = vadd.f32 %v2246, %v200
    %v2251 = vadd.f32 %v2247, %v201
    %v2252 = vadd.f32 %v2248, %v202
    %v2253 = vsel %vm436, %v2249, -inf
    %2254 = vmax.xlane.f32.xlu0 %v2253
    %v2255 = vpop.xlane.xlu0 %2254
    %v2256 = vsel %vm436, %v2250, -inf
    %2257 = vmax.xlane.f32.xlu0 %v2256
    %v2258 = vpop.xlane.xlu0 %2257
    %v2259 = vsel %vm436, %v2251, -inf
    %2260 = vmax.xlane.f32.xlu0 %v2259
    %v2261 = vpop.xlane.xlu0 %2260
    %v2262 = vsel %vm436, %v2252, -inf
    %2263 = vmax.xlane.f32.xlu0 %v2262
    %v2264 = vpop.xlane.xlu0 %2263
    %v2265 = vsub.f32 %v2249, %v2255
    %v2266 = vsub.f32 %v2250, %v2258
    %v2267 = vsub.f32 %v2251, %v2261
    %v2268 = vsub.f32 %v2252, %v2264
    %v2269 = vmul.f32 %v2265, 1.442695
    %v2270 = vpow.pop %v2269
    %v2271 = vmul.f32 %v2266, 1.442695
    %v2272 = vpow.pop %v2271
    %v2273 = vmul.f32 %v2267, 1.442695
    %v2274 = vpow.pop %v2273
    %v2275 = vmul.f32 %v2268, 1.442695
    %v2276 = vpow.pop %v2275
    %v2277 = vsel %vm436, %v2270, 0.0
    %2278 = vadd.xlane.f32.xlu0 %v2277
    %v2279 = vpop.xlane.xlu0 %2278
    %v2280 = vsel %vm436, %v2272, 0.0
    %2281 = vadd.xlane.f32.xlu0 %v2280
    %v2282 = vpop.xlane.xlu0 %2281
    %v2283 = vsel %vm436, %v2274, 0.0
    %2284 = vadd.xlane.f32.xlu0 %v2283
    %v2285 = vpop.xlane.xlu0 %2284
    %v2286 = vsel %vm436, %v2276, 0.0
    %2287 = vadd.xlane.f32.xlu0 %v2286
    %v2288 = vpop.xlane.xlu0 %2287
    %v2289 = vrcp.pop %v2279
    %v2290 = vrcp.pop %v2282
    %v2291 = vrcp.pop %v2285
    %v2292 = vrcp.pop %v2288
    %v2293 = vmul.f32 %v2270, %v2289
    %v2294 = vmul.f32 %v2272, %v2290
    %v2295 = vmul.f32 %v2274, %v2291
    %v2296 = vmul.f32 %v2276, %v2292
    %v2297 = vpack.c.bf16 %v2294, %v2293
    %v2298 = vpack.c.bf16 %v2296, %v2295
    %2299 = vrot.lane.b32.xlu0 %v1840, 32
    %v2300 = vpop.permute.xlu0 %2299
    %2301 = vrot.lane.b32.xlu0 %v1841, 32
    %v2302 = vpop.permute.xlu0 %2301
    %v2306 = vsel %vm436, %v2297, 0
    %v2309 = vsel %vm436, %v2298, 0
    %2311 = vmatpush.bf16.msra.mxu0 0
    %2312 = vmatpush.bf16.msra.mxu0 0
    %2313 = vmatpush.bf16.msra.mxu0 0
    %2314 = vmatpush.bf16.msra.mxu0 0
    %2315 = vmatpush.bf16.msra.mxu0 0
    %2316 = vmatpush.bf16.msra.mxu0 0
    %2317 = vmatpush.bf16.msra.mxu0 %v2302
    %2318 = vmatpush.bf16.msra.mxu0 %v2300
    %2319 = vmatmul.bf16.gmra.mxu0 %v2306
    %v2320 = vpop.f32.mrf.mxu0
    %v2321 = vadd.f32 0.0, %v2320
    %v2322 = vpop.f32.mrf.mxu0
    %v2323 = vadd.f32 0.0, %v2322
    %2324 = vmatmul.bf16.gmra.mxu0 %v2309
    %v2325 = vpop.f32.mrf.mxu0
    %v2326 = vadd.f32 0.0, %v2325
    %v2327 = vpop.f32.mrf.mxu0
    %v2328 = vadd.f32 0.0, %v2327
    %2329 = vdwg.mxu0
    %2334 = vrot.lane.b32.xlu0 %v2073, 32
    %v2335 = vpop.permute.xlu0 %2334
    %2336 = vrot.lane.b32.xlu0 %v2075, 32
    %v2337 = vpop.permute.xlu0 %2336
    %2338 = vrot.lane.b32.xlu0 %v2078, 32
    %v2339 = vpop.permute.xlu0 %2338
    %2340 = vrot.lane.b32.xlu0 %v2080, 32
    %v2341 = vpop.permute.xlu0 %2340
    %2350 = vrot.lane.b32.xlu0 %v2197, 64
    %v2351 = vpop.permute.xlu0 %2350
    %2352 = vrot.lane.b32.xlu0 %v2199, 64
    %v2353 = vpop.permute.xlu0 %2352
    %2354 = vrot.lane.b32.xlu0 %v2202, 64
    %v2355 = vpop.permute.xlu0 %2354
    %2356 = vrot.lane.b32.xlu0 %v2204, 64
    %v2357 = vpop.permute.xlu0 %2356
    %2366 = vrot.lane.b32.xlu0 %v2321, 96
    %v2367 = vpop.permute.xlu0 %2366
    %2368 = vrot.lane.b32.xlu0 %v2323, 96
    %v2369 = vpop.permute.xlu0 %2368
    %2370 = vrot.lane.b32.xlu0 %v2326, 96
    %v2371 = vpop.permute.xlu0 %2370
    %2372 = vrot.lane.b32.xlu0 %v2328, 96
    %v2373 = vpop.permute.xlu0 %2372
    %v2378 = vsel %vm436, %v1943, %v2335
    %v2379 = vsel %vm436, %v1945, %v2337
    %v2380 = vsel %vm436, %v1948, %v2339
    %v2381 = vsel %vm436, %v1950, %v2341
    %v2382 = vsel %vm977, %v2378, %v2351
    %v2383 = vsel %vm977, %v2379, %v2353
    %v2384 = vsel %vm977, %v2380, %v2355
    %v2385 = vsel %vm977, %v2381, %v2357
    %v2386 = vsel %vm982, %v2382, %v2367
    %v2387 = vsel %vm982, %v2383, %v2369
    %v2388 = vsel %vm982, %v2384, %v2371
    %v2389 = vsel %vm982, %v2385, %v2373
    %v2390 = vpack.c.bf16 %v2387, %v2386
    %v2391 = vpack.c.bf16 %v2389, %v2388
    %s2392 = scalar_lea.vmem [#allocation8], 64
    %v2393 = vld [vmem:[%s2392] sm:$0xf]
    %v2394 = vld [vmem:[%s2392 + $0x4] sm:$0xf]
    %v2395 = vld [vmem:[%s2392 + $0x8] sm:$0xf]
    %v2396 = vld [vmem:[%s2392 + $0xc] sm:$0xf]
    %v2397 = vld [vmem:[%s2392 + $0x10] sm:$0xf]
    %v2398 = vld [vmem:[%s2392 + $0x14] sm:$0xf]
    %v2399 = vld [vmem:[%s2392 + $0x18] sm:$0xf]
    %v2400 = vld [vmem:[%s2392 + $0x1c] sm:$0xf]
    %v2401 = vld [vmem:[%s2392 + $0x20] sm:$0xf]
    %v2402 = vld [vmem:[%s2392 + $0x24] sm:$0xf]
    %v2403 = vld [vmem:[%s2392 + $0x28] sm:$0xf]
    %v2404 = vld [vmem:[%s2392 + $0x2c] sm:$0xf]
    %v2405 = vld [vmem:[%s2392 + $0x30] sm:$0xf]
    %v2406 = vld [vmem:[%s2392 + $0x34] sm:$0xf]
    %v2407 = vld [vmem:[%s2392 + $0x38] sm:$0xf]
    %v2408 = vld [vmem:[%s2392 + $0x3c] sm:$0xf]
    %s2409 = scalar_lea.vmem %s8, 1
    %v2410 = vld [vmem:[%s2409] sm:$0x1]
    %v2412 = vperm.slane %v2410, 0
    %v2430 = vunpack.c.l.b16 %v2393
    %v2431 = vunpack.c.l.b16 %v2394
    %v2432 = vunpack.c.l.b16 %v2395
    %v2433 = vunpack.c.l.b16 %v2396
    %v2434 = vunpack.c.l.b16 %v2397
    %v2435 = vunpack.c.l.b16 %v2398
    %v2436 = vunpack.c.l.b16 %v2399
    %v2437 = vunpack.c.l.b16 %v2400
    %v2438 = vunpack.c.l.b16 %v2401
    %v2439 = vunpack.c.l.b16 %v2402
    %v2440 = vunpack.c.l.b16 %v2403
    %v2441 = vunpack.c.l.b16 %v2404
    %v2442 = vunpack.c.l.b16 %v2405
    %v2443 = vunpack.c.l.b16 %v2406
    %v2444 = vunpack.c.l.b16 %v2407
    %v2445 = vunpack.c.l.b16 %v2408
    %v2446 = vpack.c.b16 %v2431, %v2430
    %v2447 = vpack.c.b16 %v2433, %v2432
    %v2448 = vpack.c.b16 %v2435, %v2434
    %v2449 = vpack.c.b16 %v2437, %v2436
    %v2450 = vpack.c.b16 %v2439, %v2438
    %v2451 = vpack.c.b16 %v2441, %v2440
    %v2452 = vpack.c.b16 %v2443, %v2442
    %v2453 = vpack.c.b16 %v2445, %v2444
    %2462 = vmatpush.bf16.msra.mxu0 %v2453
    %2463 = vmatpush.bf16.msra.mxu0 %v2452
    %2464 = vmatpush.bf16.msra.mxu0 %v2451
    %2465 = vmatpush.bf16.msra.mxu0 %v2450
    %2466 = vmatpush.bf16.msra.mxu0 %v2449
    %2467 = vmatpush.bf16.msra.mxu0 %v2448
    %2468 = vmatpush.bf16.msra.mxu0 %v2447
    %2469 = vmatpush.bf16.msra.mxu0 %v2446
    %2470 = vmatmul.bf16.gmra.mxu0 %v2390
    %v2471 = vpop.f32.mrf.mxu0
    %v2472 = vadd.f32 %v2412, %v2471
    %v2473 = vpop.f32.mrf.mxu0
    %v2474 = vadd.f32 %v2412, %v2473
    %2475 = vmatmul.bf16.gmra.mxu0 %v2391
    %v2476 = vpop.f32.mrf.mxu0
    %v2477 = vadd.f32 %v2412, %v2476
    %v2478 = vpop.f32.mrf.mxu0
    %v2479 = vadd.f32 %v2412, %v2478
    %2480 = vdwg.mxu0
    %v2481 = vadd.f32 %v1603, %v2472
    %v2482 = vadd.f32 %v1604, %v2474
    %v2483 = vadd.f32 %v1605, %v2477
    %v2484 = vadd.f32 %v1606, %v2479
    %s2485 = scalar_lea.vmem %s9, 1
    %v2486 = vld [vmem:[%s2485] sm:$0x1]
    %s2487 = scalar_lea.vmem %s10, 1
    %v2488 = vld [vmem:[%s2487] sm:$0x1]
    %2489 = vadd.xlane.f32.xlu0 %v2481
    %v2490 = vpop.xlane.xlu0 %2489
    %2491 = vadd.xlane.f32.xlu0 %v2482
    %v2492 = vpop.xlane.xlu0 %2491
    %2493 = vadd.xlane.f32.xlu0 %v2483
    %v2494 = vpop.xlane.xlu0 %2493
    %2495 = vadd.xlane.f32.xlu0 %v2484
    %v2496 = vpop.xlane.xlu0 %2495
    %v2497 = vmul.f32 %v2490, %v1096
    %v2498 = vmul.f32 %v2492, %v1096
    %v2499 = vmul.f32 %v2494, %v1096
    %v2500 = vmul.f32 %v2496, %v1096
    %v2501 = vsub.f32 %v2481, %v2497
    %v2502 = vsub.f32 %v2482, %v2498
    %v2503 = vsub.f32 %v2483, %v2499
    %v2504 = vsub.f32 %v2484, %v2500
    %v2505 = vmul.f32 %v2501, %v2501
    %v2506 = vmul.f32 %v2502, %v2502
    %v2507 = vmul.f32 %v2503, %v2503
    %v2508 = vmul.f32 %v2504, %v2504
    %2509 = vadd.xlane.f32.xlu0 %v2505
    %v2510 = vpop.xlane.xlu0 %2509
    %2511 = vadd.xlane.f32.xlu0 %v2506
    %v2512 = vpop.xlane.xlu0 %2511
    %2513 = vadd.xlane.f32.xlu0 %v2507
    %v2514 = vpop.xlane.xlu0 %2513
    %2515 = vadd.xlane.f32.xlu0 %v2508
    %v2516 = vpop.xlane.xlu0 %2515
    %v2517 = vmul.f32 %v2510, %v1096
    %v2518 = vmul.f32 %v2512, %v1096
    %v2519 = vmul.f32 %v2514, %v1096
    %v2520 = vmul.f32 %v2516, %v1096
    %v2521 = vadd.f32 %v2517, 1e-05
    %v2522 = vadd.f32 %v2518, 1e-05
    %v2523 = vadd.f32 %v2519, 1e-05
    %v2524 = vadd.f32 %v2520, 1e-05
    %v2525 = vrsqrt.pop %v2521
    %v2526 = vmul.f32 %v2525, %v2521
    %v2527 = vmul.f32 %v2526, %v2525
    %v2528 = vmul.f32 0.5, %v2527
    %v2529 = vsub.f32 1.5, %v2528
    %v2530 = vmul.f32 %v2525, %v2529
    %vm2531 = vweird.f32 %v2521
    %vm2532 = vweird.f32 %v2525
    %vm2533 = vmor %vm2531, %vm2532
    %v2534 = vsel %vm2533, %v2525, %v2530
    %v2535 = vrsqrt.pop %v2522
    %v2536 = vmul.f32 %v2535, %v2522
    %v2537 = vmul.f32 %v2536, %v2535
    %v2538 = vmul.f32 0.5, %v2537
    %v2539 = vsub.f32 1.5, %v2538
    %v2540 = vmul.f32 %v2535, %v2539
    %vm2541 = vweird.f32 %v2522
    %vm2542 = vweird.f32 %v2535
    %vm2543 = vmor %vm2541, %vm2542
    %v2544 = vsel %vm2543, %v2535, %v2540
    %v2545 = vrsqrt.pop %v2523
    %v2546 = vmul.f32 %v2545, %v2523
    %v2547 = vmul.f32 %v2546, %v2545
    %v2548 = vmul.f32 0.5, %v2547
    %v2549 = vsub.f32 1.5, %v2548
    %v2550 = vmul.f32 %v2545, %v2549
    %vm2551 = vweird.f32 %v2523
    %vm2552 = vweird.f32 %v2545
    %vm2553 = vmor %vm2551, %vm2552
    %v2554 = vsel %vm2553, %v2545, %v2550
    %v2555 = vrsqrt.pop %v2524
    %v2556 = vmul.f32 %v2555, %v2524
    %v2557 = vmul.f32 %v2556, %v2555
    %v2558 = vmul.f32 0.5, %v2557
    %v2559 = vsub.f32 1.5, %v2558
    %v2560 = vmul.f32 %v2555, %v2559
    %vm2561 = vweird.f32 %v2524
    %vm2562 = vweird.f32 %v2555
    %vm2563 = vmor %vm2561, %vm2562
    %v2564 = vsel %vm2563, %v2555, %v2560
    %v2565 = vmul.f32 %v2501, %v2534
    %v2566 = vmul.f32 %v2502, %v2544
    %v2567 = vmul.f32 %v2503, %v2554
    %v2568 = vmul.f32 %v2504, %v2564
    %v2570 = vperm.slane %v2486, 0
    %v2572 = vmul.f32 %v2565, %v2570
    %v2573 = vmul.f32 %v2566, %v2570
    %v2574 = vmul.f32 %v2567, %v2570
    %v2575 = vmul.f32 %v2568, %v2570
    %v2577 = vperm.slane %v2488, 0
    %v2579 = vadd.f32 %v2572, %v2577
    %v2580 = vadd.f32 %v2573, %v2577
    %v2581 = vadd.f32 %v2574, %v2577
    %v2582 = vadd.f32 %v2575, %v2577
    %v2583 = vpack.c.bf16 %v2580, %v2579
    %v2584 = vpack.c.bf16 %v2582, %v2581
    %s2585 = scalar_lea.vmem [#allocation10], 128
    %v2586 = vld [vmem:[%s2585] sm:$0xff]
    %v2587 = vld [vmem:[%s2585 + $0x8] sm:$0xff]
    %v2588 = vld [vmem:[%s2585 + $0x10] sm:$0xff]
    %v2589 = vld [vmem:[%s2585 + $0x18] sm:$0xff]
    %v2590 = vld [vmem:[%s2585 + $0x20] sm:$0xff]
    %v2591 = vld [vmem:[%s2585 + $0x28] sm:$0xff]
    %v2592 = vld [vmem:[%s2585 + $0x30] sm:$0xff]
    %v2593 = vld [vmem:[%s2585 + $0x38] sm:$0xff]
    %v2594 = vld [vmem:[%s2585 + $0x40] sm:$0xff]
    %v2595 = vld [vmem:[%s2585 + $0x48] sm:$0xff]
    %v2596 = vld [vmem:[%s2585 + $0x50] sm:$0xff]
    %v2597 = vld [vmem:[%s2585 + $0x58] sm:$0xff]
    %v2598 = vld [vmem:[%s2585 + $0x60] sm:$0xff]
    %v2599 = vld [vmem:[%s2585 + $0x68] sm:$0xff]
    %v2600 = vld [vmem:[%s2585 + $0x70] sm:$0xff]
    %v2601 = vld [vmem:[%s2585 + $0x78] sm:$0xff]
    %s2602 = scalar_lea.vmem %s12, 2
    %v2603 = vld [vmem:[%s2602] sm:$0x3]
    %v2605 = vperm.slane %v2603, 0
    %v2606 = vperm.slane %v2603, 1
    %v2625 = vunpack.c.l.b16 %v2586
    %v2626 = vunpack.c.h.b16 %v2586
    %v2627 = vunpack.c.l.b16 %v2587
    %v2628 = vunpack.c.h.b16 %v2587
    %v2629 = vunpack.c.l.b16 %v2588
    %v2630 = vunpack.c.h.b16 %v2588
    %v2631 = vunpack.c.l.b16 %v2589
    %v2632 = vunpack.c.h.b16 %v2589
    %v2633 = vunpack.c.l.b16 %v2590
    %v2634 = vunpack.c.h.b16 %v2590
    %v2635 = vunpack.c.l.b16 %v2591
    %v2636 = vunpack.c.h.b16 %v2591
    %v2637 = vunpack.c.l.b16 %v2592
    %v2638 = vunpack.c.h.b16 %v2592
    %v2639 = vunpack.c.l.b16 %v2593
    %v2640 = vunpack.c.h.b16 %v2593
    %v2641 = vunpack.c.l.b16 %v2594
    %v2642 = vunpack.c.h.b16 %v2594
    %v2643 = vunpack.c.l.b16 %v2595
    %v2644 = vunpack.c.h.b16 %v2595
    %v2645 = vunpack.c.l.b16 %v2596
    %v2646 = vunpack.c.h.b16 %v2596
    %v2647 = vunpack.c.l.b16 %v2597
    %v2648 = vunpack.c.h.b16 %v2597
    %v2649 = vunpack.c.l.b16 %v2598
    %v2650 = vunpack.c.h.b16 %v2598
    %v2651 = vunpack.c.l.b16 %v2599
    %v2652 = vunpack.c.h.b16 %v2599
    %v2653 = vunpack.c.l.b16 %v2600
    %v2654 = vunpack.c.h.b16 %v2600
    %v2655 = vunpack.c.l.b16 %v2601
    %v2656 = vunpack.c.h.b16 %v2601
    %v2657 = vpack.c.b16 %v2627, %v2625
    %v2658 = vpack.c.b16 %v2628, %v2626
    %v2659 = vpack.c.b16 %v2631, %v2629
    %v2660 = vpack.c.b16 %v2632, %v2630
    %v2661 = vpack.c.b16 %v2635, %v2633
    %v2662 = vpack.c.b16 %v2636, %v2634
    %v2663 = vpack.c.b16 %v2639, %v2637
    %v2664 = vpack.c.b16 %v2640, %v2638
    %v2665 = vpack.c.b16 %v2643, %v2641
    %v2666 = vpack.c.b16 %v2644, %v2642
    %v2667 = vpack.c.b16 %v2647, %v2645
    %v2668 = vpack.c.b16 %v2648, %v2646
    %v2669 = vpack.c.b16 %v2651, %v2649
    %v2670 = vpack.c.b16 %v2652, %v2650
    %v2671 = vpack.c.b16 %v2655, %v2653
    %v2672 = vpack.c.b16 %v2656, %v2654
    %2689 = vmatpush.bf16.msra.mxu0 %v2671
    %2690 = vmatpush.bf16.msra.mxu0 %v2669
    %2691 = vmatpush.bf16.msra.mxu0 %v2667
    %2692 = vmatpush.bf16.msra.mxu0 %v2665
    %2693 = vmatpush.bf16.msra.mxu0 %v2663
    %2694 = vmatpush.bf16.msra.mxu0 %v2661
    %2695 = vmatpush.bf16.msra.mxu0 %v2659
    %2696 = vmatpush.bf16.msra.mxu0 %v2657
    %2697 = vmatmul.bf16.gmra.mxu0 %v2583
    %v2698 = vpop.f32.mrf.mxu0
    %v2699 = vadd.f32 %v2605, %v2698
    %v2700 = vpop.f32.mrf.mxu0
    %v2701 = vadd.f32 %v2605, %v2700
    %2702 = vmatmul.bf16.gmra.mxu0 %v2584
    %v2703 = vpop.f32.mrf.mxu0
    %v2704 = vadd.f32 %v2605, %v2703
    %v2705 = vpop.f32.mrf.mxu0
    %v2706 = vadd.f32 %v2605, %v2705
    %2707 = vdwg.mxu0
    %2708 = vmatpush.bf16.msra.mxu0 %v2672
    %2709 = vmatpush.bf16.msra.mxu0 %v2670
    %2710 = vmatpush.bf16.msra.mxu0 %v2668
    %2711 = vmatpush.bf16.msra.mxu0 %v2666
    %2712 = vmatpush.bf16.msra.mxu0 %v2664
    %2713 = vmatpush.bf16.msra.mxu0 %v2662
    %2714 = vmatpush.bf16.msra.mxu0 %v2660
    %2715 = vmatpush.bf16.msra.mxu0 %v2658
    %2716 = vmatmul.bf16.gmra.mxu0 %v2583
    %v2717 = vpop.f32.mrf.mxu0
    %v2718 = vadd.f32 %v2606, %v2717
    %v2719 = vpop.f32.mrf.mxu0
    %v2720 = vadd.f32 %v2606, %v2719
    %2721 = vmatmul.bf16.gmra.mxu0 %v2584
    %v2722 = vpop.f32.mrf.mxu0
    %v2723 = vadd.f32 %v2606, %v2722
    %v2724 = vpop.f32.mrf.mxu0
    %v2725 = vadd.f32 %v2606, %v2724
    %2726 = vdwg.mxu0
    %v2727 = vmax.f32 %v2699, 0.0
    %v2728 = vmax.f32 %v2718, 0.0
    %v2729 = vmax.f32 %v2701, 0.0
    %v2730 = vmax.f32 %v2720, 0.0
    %v2731 = vmax.f32 %v2704, 0.0
    %v2732 = vmax.f32 %v2723, 0.0
    %v2733 = vmax.f32 %v2706, 0.0
    %v2734 = vmax.f32 %v2725, 0.0
    %v2735 = vpack.c.bf16 %v2729, %v2727
    %v2736 = vpack.c.bf16 %v2730, %v2728
    %v2737 = vpack.c.bf16 %v2733, %v2731
    %v2738 = vpack.c.bf16 %v2734, %v2732
    %s2739 = scalar_lea.vmem [#allocation11], 128
    %v2740 = vld [vmem:[%s2739] sm:$0xf]
    %v2741 = vld [vmem:[%s2739 + $0x4] sm:$0xf]
    %v2742 = vld [vmem:[%s2739 + $0x8] sm:$0xf]
    %v2743 = vld [vmem:[%s2739 + $0xc] sm:$0xf]
    %v2744 = vld [vmem:[%s2739 + $0x10] sm:$0xf]
    %v2745 = vld [vmem:[%s2739 + $0x14] sm:$0xf]
    %v2746 = vld [vmem:[%s2739 + $0x18] sm:$0xf]
    %v2747 = vld [vmem:[%s2739 + $0x1c] sm:$0xf]
    %v2748 = vld [vmem:[%s2739 + $0x20] sm:$0xf]
    %v2749 = vld [vmem:[%s2739 + $0x24] sm:$0xf]
    %v2750 = vld [vmem:[%s2739 + $0x28] sm:$0xf]
    %v2751 = vld [vmem:[%s2739 + $0x2c] sm:$0xf]
    %v2752 = vld [vmem:[%s2739 + $0x30] sm:$0xf]
    %v2753 = vld [vmem:[%s2739 + $0x34] sm:$0xf]
    %v2754 = vld [vmem:[%s2739 + $0x38] sm:$0xf]
    %v2755 = vld [vmem:[%s2739 + $0x3c] sm:$0xf]
    %v2756 = vld [vmem:[%s2739 + $0x40] sm:$0xf]
    %v2757 = vld [vmem:[%s2739 + $0x44] sm:$0xf]
    %v2758 = vld [vmem:[%s2739 + $0x48] sm:$0xf]
    %v2759 = vld [vmem:[%s2739 + $0x4c] sm:$0xf]
    %v2760 = vld [vmem:[%s2739 + $0x50] sm:$0xf]
    %v2761 = vld [vmem:[%s2739 + $0x54] sm:$0xf]
    %v2762 = vld [vmem:[%s2739 + $0x58] sm:$0xf]
    %v2763 = vld [vmem:[%s2739 + $0x5c] sm:$0xf]
    %v2764 = vld [vmem:[%s2739 + $0x60] sm:$0xf]
    %v2765 = vld [vmem:[%s2739 + $0x64] sm:$0xf]
    %v2766 = vld [vmem:[%s2739 + $0x68] sm:$0xf]
    %v2767 = vld [vmem:[%s2739 + $0x6c] sm:$0xf]
    %v2768 = vld [vmem:[%s2739 + $0x70] sm:$0xf]
    %v2769 = vld [vmem:[%s2739 + $0x74] sm:$0xf]
    %v2770 = vld [vmem:[%s2739 + $0x78] sm:$0xf]
    %v2771 = vld [vmem:[%s2739 + $0x7c] sm:$0xf]
    %s2772 = scalar_lea.vmem %s14, 1
    %v2773 = vld [vmem:[%s2772] sm:$0x1]
    %v2775 = vperm.slane %v2773, 0
    %v2809 = vunpack.c.l.b16 %v2740
    %v2810 = vunpack.c.l.b16 %v2741
    %v2811 = vunpack.c.l.b16 %v2742
    %v2812 = vunpack.c.l.b16 %v2743
    %v2813 = vunpack.c.l.b16 %v2744
    %v2814 = vunpack.c.l.b16 %v2745
    %v2815 = vunpack.c.l.b16 %v2746
    %v2816 = vunpack.c.l.b16 %v2747
    %v2817 = vunpack.c.l.b16 %v2748
    %v2818 = vunpack.c.l.b16 %v2749
    %v2819 = vunpack.c.l.b16 %v2750
    %v2820 = vunpack.c.l.b16 %v2751
    %v2821 = vunpack.c.l.b16 %v2752
    %v2822 = vunpack.c.l.b16 %v2753
    %v2823 = vunpack.c.l.b16 %v2754
    %v2824 = vunpack.c.l.b16 %v2755
    %v2825 = vunpack.c.l.b16 %v2756
    %v2826 = vunpack.c.l.b16 %v2757
    %v2827 = vunpack.c.l.b16 %v2758
    %v2828 = vunpack.c.l.b16 %v2759
    %v2829 = vunpack.c.l.b16 %v2760
    %v2830 = vunpack.c.l.b16 %v2761
    %v2831 = vunpack.c.l.b16 %v2762
    %v2832 = vunpack.c.l.b16 %v2763
    %v2833 = vunpack.c.l.b16 %v2764
    %v2834 = vunpack.c.l.b16 %v2765
    %v2835 = vunpack.c.l.b16 %v2766
    %v2836 = vunpack.c.l.b16 %v2767
    %v2837 = vunpack.c.l.b16 %v2768
    %v2838 = vunpack.c.l.b16 %v2769
    %v2839 = vunpack.c.l.b16 %v2770
    %v2840 = vunpack.c.l.b16 %v2771
    %v2841 = vpack.c.b16 %v2810, %v2809
    %v2842 = vpack.c.b16 %v2812, %v2811
    %v2843 = vpack.c.b16 %v2814, %v2813
    %v2844 = vpack.c.b16 %v2816, %v2815
    %v2845 = vpack.c.b16 %v2818, %v2817
    %v2846 = vpack.c.b16 %v2820, %v2819
    %v2847 = vpack.c.b16 %v2822, %v2821
    %v2848 = vpack.c.b16 %v2824, %v2823
    %v2849 = vpack.c.b16 %v2826, %v2825
    %v2850 = vpack.c.b16 %v2828, %v2827
    %v2851 = vpack.c.b16 %v2830, %v2829
    %v2852 = vpack.c.b16 %v2832, %v2831
    %v2853 = vpack.c.b16 %v2834, %v2833
    %v2854 = vpack.c.b16 %v2836, %v2835
    %v2855 = vpack.c.b16 %v2838, %v2837
    %v2856 = vpack.c.b16 %v2840, %v2839
    %2873 = vmatpush.bf16.msra.mxu0 %v2848
    %2874 = vmatpush.bf16.msra.mxu0 %v2847
    %2875 = vmatpush.bf16.msra.mxu0 %v2846
    %2876 = vmatpush.bf16.msra.mxu0 %v2845
    %2877 = vmatpush.bf16.msra.mxu0 %v2844
    %2878 = vmatpush.bf16.msra.mxu0 %v2843
    %2879 = vmatpush.bf16.msra.mxu0 %v2842
    %2880 = vmatpush.bf16.msra.mxu0 %v2841
    %2881 = vmatmul.bf16.gmra.mxu0 %v2735
    %v2882 = vpop.f32.mrf.mxu0
    %v2883 = vadd.f32 %v2775, %v2882
    %v2884 = vpop.f32.mrf.mxu0
    %v2885 = vadd.f32 %v2775, %v2884
    %2886 = vmatmul.bf16.gmra.mxu0 %v2737
    %v2887 = vpop.f32.mrf.mxu0
    %v2888 = vadd.f32 %v2775, %v2887
    %v2889 = vpop.f32.mrf.mxu0
    %v2890 = vadd.f32 %v2775, %v2889
    %2891 = vdwg.mxu0
    %2892 = vmatpush.bf16.msra.mxu0 %v2856
    %2893 = vmatpush.bf16.msra.mxu0 %v2855
    %2894 = vmatpush.bf16.msra.mxu0 %v2854
    %2895 = vmatpush.bf16.msra.mxu0 %v2853
    %2896 = vmatpush.bf16.msra.mxu0 %v2852
    %2897 = vmatpush.bf16.msra.mxu0 %v2851
    %2898 = vmatpush.bf16.msra.mxu0 %v2850
    %2899 = vmatpush.bf16.msra.mxu0 %v2849
    %2900 = vmatmul.bf16.gmra.mxu0 %v2736
    %v2901 = vpop.f32.mrf.mxu0
    %v2902 = vadd.f32 %v2883, %v2901
    %v2903 = vpop.f32.mrf.mxu0
    %v2904 = vadd.f32 %v2885, %v2903
    %2905 = vmatmul.bf16.gmra.mxu0 %v2738
    %v2906 = vpop.f32.mrf.mxu0
    %v2907 = vadd.f32 %v2888, %v2906
    %v2908 = vpop.f32.mrf.mxu0
    %v2909 = vadd.f32 %v2890, %v2908
    %2910 = vdwg.mxu0
    %v2911 = vadd.f32 %v2579, %v2902
    %v2912 = vadd.f32 %v2580, %v2904
    %v2913 = vadd.f32 %v2581, %v2907
    %v2914 = vadd.f32 %v2582, %v2909
    %s2915 = scalar_lea.vmem %s15, 1
    %v2916 = vld [vmem:[%s2915] sm:$0x1]
    %s2917 = scalar_lea.vmem %s16, 1
    %v2918 = vld [vmem:[%s2917] sm:$0x1]
    %2919 = vadd.xlane.f32.xlu0 %v2911
    %v2920 = vpop.xlane.xlu0 %2919
    %2921 = vadd.xlane.f32.xlu0 %v2912
    %v2922 = vpop.xlane.xlu0 %2921
    %2923 = vadd.xlane.f32.xlu0 %v2913
    %v2924 = vpop.xlane.xlu0 %2923
    %2925 = vadd.xlane.f32.xlu0 %v2914
    %v2926 = vpop.xlane.xlu0 %2925
    %v2927 = vmul.f32 %v2920, %v1096
    %v2928 = vmul.f32 %v2922, %v1096
    %v2929 = vmul.f32 %v2924, %v1096
    %v2930 = vmul.f32 %v2926, %v1096
    %v2931 = vsub.f32 %v2911, %v2927
    %v2932 = vsub.f32 %v2912, %v2928
    %v2933 = vsub.f32 %v2913, %v2929
    %v2934 = vsub.f32 %v2914, %v2930
    %v2935 = vmul.f32 %v2931, %v2931
    %v2936 = vmul.f32 %v2932, %v2932
    %v2937 = vmul.f32 %v2933, %v2933
    %v2938 = vmul.f32 %v2934, %v2934
    %2939 = vadd.xlane.f32.xlu0 %v2935
    %v2940 = vpop.xlane.xlu0 %2939
    %2941 = vadd.xlane.f32.xlu0 %v2936
    %v2942 = vpop.xlane.xlu0 %2941
    %2943 = vadd.xlane.f32.xlu0 %v2937
    %v2944 = vpop.xlane.xlu0 %2943
    %2945 = vadd.xlane.f32.xlu0 %v2938
    %v2946 = vpop.xlane.xlu0 %2945
    %v2947 = vmul.f32 %v2940, %v1096
    %v2948 = vmul.f32 %v2942, %v1096
    %v2949 = vmul.f32 %v2944, %v1096
    %v2950 = vmul.f32 %v2946, %v1096
    %v2951 = vadd.f32 %v2947, 1e-05
    %v2952 = vadd.f32 %v2948, 1e-05
    %v2953 = vadd.f32 %v2949, 1e-05
    %v2954 = vadd.f32 %v2950, 1e-05
    %v2955 = vrsqrt.pop %v2951
    %v2956 = vmul.f32 %v2955, %v2951
    %v2957 = vmul.f32 %v2956, %v2955
    %v2958 = vmul.f32 0.5, %v2957
    %v2959 = vsub.f32 1.5, %v2958
    %v2960 = vmul.f32 %v2955, %v2959
    %vm2961 = vweird.f32 %v2951
    %vm2962 = vweird.f32 %v2955
    %vm2963 = vmor %vm2961, %vm2962
    %v2964 = vsel %vm2963, %v2955, %v2960
    %v2965 = vrsqrt.pop %v2952
    %v2966 = vmul.f32 %v2965, %v2952
    %v2967 = vmul.f32 %v2966, %v2965
    %v2968 = vmul.f32 0.5, %v2967
    %v2969 = vsub.f32 1.5, %v2968
    %v2970 = vmul.f32 %v2965, %v2969
    %vm2971 = vweird.f32 %v2952
    %vm2972 = vweird.f32 %v2965
    %vm2973 = vmor %vm2971, %vm2972
    %v2974 = vsel %vm2973, %v2965, %v2970
    %v2975 = vrsqrt.pop %v2953
    %v2976 = vmul.f32 %v2975, %v2953
    %v2977 = vmul.f32 %v2976, %v2975
    %v2978 = vmul.f32 0.5, %v2977
    %v2979 = vsub.f32 1.5, %v2978
    %v2980 = vmul.f32 %v2975, %v2979
    %vm2981 = vweird.f32 %v2953
    %vm2982 = vweird.f32 %v2975
    %vm2983 = vmor %vm2981, %vm2982
    %v2984 = vsel %vm2983, %v2975, %v2980
    %v2985 = vrsqrt.pop %v2954
    %v2986 = vmul.f32 %v2985, %v2954
    %v2987 = vmul.f32 %v2986, %v2985
    %v2988 = vmul.f32 0.5, %v2987
    %v2989 = vsub.f32 1.5, %v2988
    %v2990 = vmul.f32 %v2985, %v2989
    %vm2991 = vweird.f32 %v2954
    %vm2992 = vweird.f32 %v2985
    %vm2993 = vmor %vm2991, %vm2992
    %v2994 = vsel %vm2993, %v2985, %v2990
    %v2995 = vmul.f32 %v2931, %v2964
    %v2996 = vmul.f32 %v2932, %v2974
    %v2997 = vmul.f32 %v2933, %v2984
    %v2998 = vmul.f32 %v2934, %v2994
    %v3000 = vperm.slane %v2916, 0
    %v3002 = vmul.f32 %v2995, %v3000
    %v3003 = vmul.f32 %v2996, %v3000
    %v3004 = vmul.f32 %v2997, %v3000
    %v3005 = vmul.f32 %v2998, %v3000
    %v3007 = vperm.slane %v2918, 0
    %v3009 = vadd.f32 %v3002, %v3007
    %v3010 = vadd.f32 %v3003, %v3007
    %v3011 = vadd.f32 %v3004, %v3007
    %v3012 = vadd.f32 %v3005, %v3007
    %v3013 = vld [vmem:[%s17] sm:$0xff]
    %v3014 = vld [vmem:[%s17 + $0x8] sm:$0xff]
    %v3015 = vld [vmem:[%s17 + $0x10] sm:$0xff]
    %v3016 = vld [vmem:[%s17 + $0x18] sm:$0xff]
    %v3017 = vmul.f32 %v3009, %v3013
    %v3018 = vmul.f32 %v3010, %v3014
    %v3019 = vmul.f32 %v3011, %v3015
    %v3020 = vmul.f32 %v3012, %v3016
    %v3021 = vld [vmem:[%s4] sm:$0x3]
    %v3023 = vsel %vm436, %v3021, 0
    %3025 = vmatpush.msra.mxu0 0.0
    %3026 = vmatpush.msra.mxu0 0.0
    %3027 = vmatpush.msra.mxu0 0.0
    %3028 = vmatpush.msra.mxu0 0.0
    %3029 = vmatpush.msra.mxu0 0.0
    %3030 = vmatpush.msra.mxu0 0.0
    %3031 = vmatpush.msra.mxu0 0.0
    %3032 = vmatpush.msra.mxu0 0.0
    %3033 = vmatpush.msra.mxu0 0.0
    %3034 = vmatpush.msra.mxu0 0.0
    %3035 = vmatpush.msra.mxu0 0.0
    %3036 = vmatpush.msra.mxu0 0.0
    %3037 = vmatpush.msra.mxu0 %v3020
    %3038 = vmatpush.msra.mxu0 %v3019
    %3039 = vmatpush.msra.mxu0 %v3018
    %3040 = vmatpush.msra.mxu0 %v3017
    %3041 = vmatmul.f32.gmra.mxu0 %v3023
    %v3042 = vpop.f32.mrf.mxu0
    %v3043 = vadd.f32 0.0, %v3042
    %3044 = vdwg.mxu0
    %vm3045 = vcmask 1041408
    %v3046 = vsel %vm3045, %v3043, 0.0
    %3047 = vadd.xlane.f32.xlu0 %v3046
    %v3048 = vpop.xlane.xlu0 %3047
    %v3049 = vld [vmem:[#allocation2] sm:$0x1]
    %v3051 = vperm.slane %v3049, 0
    %v3053 = vadd.f32 %v3048, %v3051
    %vm3054 = vcmask 1024
    %3055 = vst.msk [vmem:[%s19] sm:$0x3] %vm3054, %v3053
    // Predicated region
    $region102: #{_lambda_.1} parent=1 // pred_check
      _
    $region103: #{_lambda_.1} parent=1 // pred_check_branch
      %3057 = sbr.rel (0) target = $region105
    $region104: #{_lambda_.1} parent=1 // pred_region
      _
    $region105: #{_lambda_.1} parent=1 // pred_fallthru
      _
    // Predicated region
    $region106: #{_lambda_.1} parent=1 // pred_check
      _
    $region107: #{_lambda_.1} parent=1 // pred_check_branch
      %3059 = sbr.rel (0) target = $region109
    $region108: #{_lambda_.1} parent=1 // pred_region
      _
    $region109: #{_lambda_.1} parent=1 // pred_fallthru
      _
    %3060 = vsyncpa [#allocation4], 1
    %3061 = vsyncpa [#allocation6], 1
    %3062 = vsyncpa [#allocation9], 1
    %3063 = vsyncpa [#allocation12], 1

</llo_original>
